<compile_context>
chip_gen: v7x
topology: tpu7x:2x2x1
jax: 0.10.0
libtpu: 0.0.40
codegen_flags: <defaults>
</compile_context>

<pallas_src>
import jax
import jax.numpy as jnp
import numpy as np
from jax.experimental import pallas as pl
from jax.experimental.pallas import tpu as pltpu


# Cap the lane tile so per-h (M, tile) intermediates stay well inside the
# 64-vreg register file (e.g. 32 x 512 f32 = 16 vregs).
_MAX_TILE_N = 512


def _ceil_to(v, m):
    return -(-v // m) * m


def _vmem_capacity_bytes():
    try:
        return int(pltpu.get_tpu_info().vmem_capacity_bytes)
    except Exception:
        return 64 * 1024 * 1024          # conservative fallback (v7x per-core VMEM)


def _step_vmem_bytes(H, C, M, O, tile_n, itemsize):
    """Worst-case VMEM bytes per grid step, padded to the (8, 128) layout."""
    lanes = _ceil_to(tile_n, 128)
    x_blk = H * _ceil_to(C, 8) * lanes * itemsize
    o_blk = H * _ceil_to(O, 8) * lanes * itemsize
    p_scr = H * _ceil_to(M, 8) * lanes * 4
    stats = 2 * _ceil_to(M, 8) * lanes * 4
    params = (_ceil_to(M, 8) * 128 + _ceil_to(O, 8) * _ceil_to(M, 128)) * itemsize
    # Input/output blocks are double-buffered by the pipeline.
    return 2 * (x_blk + o_blk) + p_scr + stats + 2 * params


def _pick_tile_n(N):
    """Lane tile of the folded spatial axis (B*W).

    Block last dims must be a multiple of 128 or equal to the full axis.
    Prefers >=2 tiles so the v7x megacore gets >=2 parallel grid steps.
    """
    if N % 128 != 0:
        # Not lane-tileable without padding: take the whole axis (legal since
        # a block dim equal to the full array dim is always allowed).
        # TODO(synk): pad B*W up to a 128 multiple for very large odd widths.
        return N
    if N <= _MAX_TILE_N:
        half = N // 2
        if N >= 256 and half % 128 == 0:
            return half                  # 2 parallel steps for the v7x megacore
        return N
    tn = _MAX_TILE_N
    while tn >= 128:
        if N % tn == 0:
            return tn
        tn -= 128
    return 128


def _kcm_kernel(keyT_ref, memT_ref, x_ref, o_ref, p_ref, mx_ref, den_ref):
    # keyT_ref: VMEM (M, C)      key^T, MXU lhs of the channel projection
    # memT_ref: VMEM (O, M)      memory^T, MXU lhs of the readout
    # x_ref:    VMEM (H, C, TN)  activations; TN = folded (B*W) lane tile
    # o_ref:    VMEM (H, O, TN)  output slab (lane-dense stores)
    # p_ref:    VMEM (H, M, TN)  f32 scratch: logits, then exp(logits - max)
    # mx_ref:   VMEM (M, TN)     f32 scratch: running max over H
    # den_ref:  VMEM (M, TN)     f32 scratch: denominator, then its reciprocal
    H = x_ref.shape[0]
    keyT = keyT_ref[...]
    memT = memT_ref[...]

    # ---- Pass 1: channel projection on the MXU + running max over H ----
    for h in range(H):
        y_h = jnp.dot(keyT, x_ref[h], preferred_element_type=jnp.float32)  # (M, TN)
        p_ref[h] = y_h
        if h == 0:
            mx_ref[...] = y_h
        else:
            mx_ref[...] = jnp.maximum(mx_ref[...], y_h)

    # ---- Pass 2: exponentials (EUP) + denominator; probs overwrite logits ----
    for h in range(H):
        e_h = jnp.exp(p_ref[h] - mx_ref[...])
        p_ref[h] = e_h
        if h == 0:
            den_ref[...] = e_h
        else:
            den_ref[...] = den_ref[...] + e_h

    # Reciprocal of the denominator: EUP approx recip + two Newton steps
    # (restores ~f32 accuracy; denominator is in [1, H], so this is benign).
    den = den_ref[...]
    inv = pl.reciprocal(den, approx=True)
    inv = inv * (2.0 - den * inv)
    inv = inv * (2.0 - den * inv)
    den_ref[...] = inv

    # ---- Pass 3: normalize + memory readout on the MXU, per-h dense store ----
    for h in range(H):
        p_h = (p_ref[h] * den_ref[...]).astype(memT.dtype)
        z_h = jnp.dot(memT, p_h, preferred_element_type=jnp.float32)       # (O, TN)
        o_ref[h] = z_h.astype(o_ref.dtype)


def key_channelwise_memory(x, key, memory, *, tile_n=None):
    """x: [B, in_dim, H, W]; key: [in_dim, M]; memory: [M, out_dim].

    Returns [B, out_dim, H, W], matching the PyTorch module's forward.
    """
    B, C, H, W = x.shape
    assert key.shape[0] == C
    M = key.shape[1]
    assert memory.shape[0] == M
    O = memory.shape[1]

    N = B * W
    # Fold batch into the spatial lane axis: (B, C, H, W) -> (H, C, B*W).
    xr = jnp.transpose(x, (2, 1, 0, 3)).reshape(H, C, N)

    # Tiny pre-transposed parameter operands for the MXU. Match x's dtype so
    # bf16 inputs get the native bf16 MXU rate; softmax math stays in f32.
    keyT = jnp.transpose(key).astype(x.dtype)        # (M, C)
    memT = jnp.transpose(memory).astype(x.dtype)     # (O, M)

    if tile_n is None:
        tile_n = _pick_tile_n(N)
    assert N % tile_n == 0, "tile_n must divide B*W"
    grid = (N // tile_n,)

    itemsize = jnp.dtype(x.dtype).itemsize
    need = _step_vmem_bytes(H, C, M, O, tile_n, itemsize)
    cap = _vmem_capacity_bytes()
    vmem_limit = int(min(0.75 * cap, max(need + (8 << 20), 32 << 20)))

    out = pl.pallas_call(
        _kcm_kernel,
        out_shape=jax.ShapeDtypeStruct((H, O, N), x.dtype),
        grid=grid,
        in_specs=[
            pl.BlockSpec((M, C), lambda i: (0, 0)),            # key^T  (VMEM resident)
            pl.BlockSpec((O, M), lambda i: (0, 0)),            # mem^T  (VMEM resident)
            pl.BlockSpec((H, C, tile_n), lambda i: (0, 0, i)),  # activations
        ],
        out_specs=pl.BlockSpec((H, O, tile_n), lambda i: (0, 0, i)),
        scratch_shapes=[
            pltpu.VMEM((H, M, tile_n), jnp.float32),   # logits / probs
            pltpu.VMEM((M, tile_n), jnp.float32),      # running max over H
            pltpu.VMEM((M, tile_n), jnp.float32),      # denominator -> reciprocal
        ],
        compiler_params=pltpu.CompilerParams(
            dimension_semantics=("parallel",),
            vmem_limit_bytes=vmem_limit,
        ),
    )(keyT, memT, xr)

    # (H, O, B*W) -> (B, out_dim, H, W)
    return jnp.transpose(out.reshape(H, O, B, W), (2, 1, 0, 3))


def _reference_f64(x, key, memory):
    """Exact float64 NumPy reference of the module's forward."""
    x64 = np.asarray(x, dtype=np.float64)
    k64 = np.asarray(key, dtype=np.float64)
    m64 = np.asarray(memory, dtype=np.float64)
    y = np.einsum('ki,bkhw->bihw', k64, x64)
    y = y - y.max(axis=2, keepdims=True)
    e = np.exp(y)
    p = e / e.sum(axis=2, keepdims=True)
    return np.einsum('ki,bkhw->bihw', m64, p)


if __name__ == "__main__":
    # Small shapes consistent with the module's forward.
    B, in_dim, H, W = 2, 4, 16, 16
    memory_dim, out_dim = 32, 8

    root = jax.random.PRNGKey(0)
    k_key, k_mem, k_x = jax.random.split(root, 3)

    # Deterministic parameter init mirroring the module's __init__:
    #   key    ~ U[0, 1)           shape [in_dim, memory_dim]
    #   memory ~ U[0, 1) * 2 - 1   shape [memory_dim, out_dim]
    key_param = jax.random.uniform(k_key, (in_dim, memory_dim), dtype=jnp.float32)
    memory_param = (jax.random.uniform(k_mem, (memory_dim, out_dim),
                                       dtype=jnp.float32) * 2.0 - 1.0)
    x = jax.random.normal(k_x, (B, in_dim, H, W), dtype=jnp.float32)

    out = jax.block_until_ready(key_channelwise_memory(x, key_param, memory_param))
    assert out.shape == (B, out_dim, H, W), out.shape

    ref = _reference_f64(x, key_param, memory_param)
    np.testing.assert_allclose(np.asarray(out, dtype=np.float64), ref,
                               rtol=1e-5, atol=1e-5)

    print("KERNEL_OK")
</pallas_src>

<mosaic_0001>
module attributes {stable_mosaic.version = 11 : i64} {
  func.func @_kcm_kernel(%arg0: i32, %arg1: memref<32x4xf32, #tpu.memory_space<vmem>>, %arg2: memref<8x32xf32, #tpu.memory_space<vmem>>, %arg3: memref<16x4x32xf32, #tpu.memory_space<vmem>>, %arg4: memref<16x8x32xf32, #tpu.memory_space<vmem>>, %arg5: memref<16x32x32xf32, #tpu.memory_space<vmem>>, %arg6: memref<32x32xf32, #tpu.memory_space<vmem>>, %arg7: memref<32x32xf32, #tpu.memory_space<vmem>>) attributes {dimension_semantics = [#tpu.dimension_semantics<parallel>], iteration_bounds = array<i64: 1>, scalar_prefetch = 0 : i64, scratch_operands = 3 : i64, tpu.core_type = #tpu.core_type<tc>, window_params = [{pipeline_mode = #tpu.pipeline_mode<synchronous>, transform_indices = @transform_0, window_bounds = array<i64: 32, 4>}, {pipeline_mode = #tpu.pipeline_mode<synchronous>, transform_indices = @transform_1, window_bounds = array<i64: 8, 32>}, {transform_indices = @transform_2, window_bounds = array<i64: 16, 4, 32>}, {transform_indices = @transform_3, window_bounds = array<i64: 16, 8, 32>}]} {
    %c0 = arith.constant 0 : index
    %c0_0 = arith.constant 0 : index
    %0 = vector.load %arg1[%c0, %c0_0] : memref<32x4xf32, #tpu.memory_space<vmem>>, vector<32x4xf32>
    %c0_1 = arith.constant 0 : index
    %c0_2 = arith.constant 0 : index
    %1 = vector.load %arg2[%c0_1, %c0_2] : memref<8x32xf32, #tpu.memory_space<vmem>>, vector<8x32xf32>
    %c0_3 = arith.constant 0 : index
    %c0_4 = arith.constant 0 : index
    %c0_5 = arith.constant 0 : index
    %2 = vector.load %arg3[%c0_3, %c0_4, %c0_5] : memref<16x4x32xf32, #tpu.memory_space<vmem>>, vector<1x4x32xf32>
    %3 = vector.shape_cast %2 : vector<1x4x32xf32> to vector<4x32xf32>
    %cst = arith.constant dense<0.000000e+00> : vector<32x32xf32>
    %4 = tpu.matmul %0, %3, %cst {dimension_numbers = #tpu.dot_dimension_numbers<[1], [0], [0], [1], [0, 0, 1, 1], [], []>} : vector<32x4xf32>, vector<4x32xf32>, vector<32x32xf32> -> vector<32x32xf32>
    %c0_6 = arith.constant 0 : index
    %c0_7 = arith.constant 0 : index
    %c0_8 = arith.constant 0 : index
    %5 = vector.load %arg5[%c0_6, %c0_7, %c0_8] : memref<16x32x32xf32, #tpu.memory_space<vmem>>, vector<1x32x32xf32>
    %6 = vector.shape_cast %5 : vector<1x32x32xf32> to vector<32x32xf32>
    %7 = vector.shape_cast %4 : vector<32x32xf32> to vector<1x32x32xf32>
    tpu.vector_store %arg5[%c0_6, %c0_7, %c0_8], %7 {strides = array<i32>} : memref<16x32x32xf32, #tpu.memory_space<vmem>>, vector<1x32x32xf32>,
    %c0_9 = arith.constant 0 : index
    %c0_10 = arith.constant 0 : index
    %8 = vector.load %arg6[%c0_9, %c0_10] : memref<32x32xf32, #tpu.memory_space<vmem>>, vector<32x32xf32>
    tpu.vector_store %arg6[%c0_9, %c0_10], %4 {strides = array<i32>} : memref<32x32xf32, #tpu.memory_space<vmem>>, vector<32x32xf32>,
    %c1 = arith.constant 1 : index
    %c0_11 = arith.constant 0 : index
    %c0_12 = arith.constant 0 : index
    %9 = vector.load %arg3[%c1, %c0_11, %c0_12] : memref<16x4x32xf32, #tpu.memory_space<vmem>>, vector<1x4x32xf32>
    %10 = vector.shape_cast %9 : vector<1x4x32xf32> to vector<4x32xf32>
    %cst_13 = arith.constant dense<0.000000e+00> : vector<32x32xf32>
    %11 = tpu.matmul %0, %10, %cst_13 {dimension_numbers = #tpu.dot_dimension_numbers<[1], [0], [0], [1], [0, 0, 1, 1], [], []>} : vector<32x4xf32>, vector<4x32xf32>, vector<32x32xf32> -> vector<32x32xf32>
    %c1_14 = arith.constant 1 : index
    %c0_15 = arith.constant 0 : index
    %c0_16 = arith.constant 0 : index
    %12 = vector.load %arg5[%c1_14, %c0_15, %c0_16] : memref<16x32x32xf32, #tpu.memory_space<vmem>>, vector<1x32x32xf32>
    %13 = vector.shape_cast %12 : vector<1x32x32xf32> to vector<32x32xf32>
    %14 = vector.shape_cast %11 : vector<32x32xf32> to vector<1x32x32xf32>
    tpu.vector_store %arg5[%c1_14, %c0_15, %c0_16], %14 {strides = array<i32>} : memref<16x32x32xf32, #tpu.memory_space<vmem>>, vector<1x32x32xf32>,
    %c0_17 = arith.constant 0 : index
    %c0_18 = arith.constant 0 : index
    %15 = vector.load %arg6[%c0_17, %c0_18] : memref<32x32xf32, #tpu.memory_space<vmem>>, vector<32x32xf32>
    %16 = arith.maximumf %15, %11 : vector<32x32xf32>
    %c0_19 = arith.constant 0 : index
    %c0_20 = arith.constant 0 : index
    %17 = vector.load %arg6[%c0_19, %c0_20] : memref<32x32xf32, #tpu.memory_space<vmem>>, vector<32x32xf32>
    tpu.vector_store %arg6[%c0_19, %c0_20], %16 {strides = array<i32>} : memref<32x32xf32, #tpu.memory_space<vmem>>, vector<32x32xf32>,
    %c2 = arith.constant 2 : index
    %c0_21 = arith.constant 0 : index
    %c0_22 = arith.constant 0 : index
    %18 = vector.load %arg3[%c2, %c0_21, %c0_22] : memref<16x4x32xf32, #tpu.memory_space<vmem>>, vector<1x4x32xf32>
    %19 = vector.shape_cast %18 : vector<1x4x32xf32> to vector<4x32xf32>
    %cst_23 = arith.constant dense<0.000000e+00> : vector<32x32xf32>
    %20 = tpu.matmul %0, %19, %cst_23 {dimension_numbers = #tpu.dot_dimension_numbers<[1], [0], [0], [1], [0, 0, 1, 1], [], []>} : vector<32x4xf32>, vector<4x32xf32>, vector<32x32xf32> -> vector<32x32xf32>
    %c2_24 = arith.constant 2 : index
    %c0_25 = arith.constant 0 : index
    %c0_26 = arith.constant 0 : index
    %21 = vector.load %arg5[%c2_24, %c0_25, %c0_26] : memref<16x32x32xf32, #tpu.memory_space<vmem>>, vector<1x32x32xf32>
    %22 = vector.shape_cast %21 : vector<1x32x32xf32> to vector<32x32xf32>
    %23 = vector.shape_cast %20 : vector<32x32xf32> to vector<1x32x32xf32>
    tpu.vector_store %arg5[%c2_24, %c0_25, %c0_26], %23 {strides = array<i32>} : memref<16x32x32xf32, #tpu.memory_space<vmem>>, vector<1x32x32xf32>,
    %c0_27 = arith.constant 0 : index
    %c0_28 = arith.constant 0 : index
    %24 = vector.load %arg6[%c0_27, %c0_28] : memref<32x32xf32, #tpu.memory_space<vmem>>, vector<32x32xf32>
    %25 = arith.maximumf %24, %20 : vector<32x32xf32>
    %c0_29 = arith.constant 0 : index
    %c0_30 = arith.constant 0 : index
    %26 = vector.load %arg6[%c0_29, %c0_30] : memref<32x32xf32, #tpu.memory_space<vmem>>, vector<32x32xf32>
    tpu.vector_store %arg6[%c0_29, %c0_30], %25 {strides = array<i32>} : memref<32x32xf32, #tpu.memory_space<vmem>>, vector<32x32xf32>,
    %c3 = arith.constant 3 : index
    %c0_31 = arith.constant 0 : index
    %c0_32 = arith.constant 0 : index
    %27 = vector.load %arg3[%c3, %c0_31, %c0_32] : memref<16x4x32xf32, #tpu.memory_space<vmem>>, vector<1x4x32xf32>
    %28 = vector.shape_cast %27 : vector<1x4x32xf32> to vector<4x32xf32>
    %cst_33 = arith.constant dense<0.000000e+00> : vector<32x32xf32>
    %29 = tpu.matmul %0, %28, %cst_33 {dimension_numbers = #tpu.dot_dimension_numbers<[1], [0], [0], [1], [0, 0, 1, 1], [], []>} : vector<32x4xf32>, vector<4x32xf32>, vector<32x32xf32> -> vector<32x32xf32>
    %c3_34 = arith.constant 3 : index
    %c0_35 = arith.constant 0 : index
    %c0_36 = arith.constant 0 : index
    %30 = vector.load %arg5[%c3_34, %c0_35, %c0_36] : memref<16x32x32xf32, #tpu.memory_space<vmem>>, vector<1x32x32xf32>
    %31 = vector.shape_cast %30 : vector<1x32x32xf32> to vector<32x32xf32>
    %32 = vector.shape_cast %29 : vector<32x32xf32> to vector<1x32x32xf32>
    tpu.vector_store %arg5[%c3_34, %c0_35, %c0_36], %32 {strides = array<i32>} : memref<16x32x32xf32, #tpu.memory_space<vmem>>, vector<1x32x32xf32>,
    %c0_37 = arith.constant 0 : index
    %c0_38 = arith.constant 0 : index
    %33 = vector.load %arg6[%c0_37, %c0_38] : memref<32x32xf32, #tpu.memory_space<vmem>>, vector<32x32xf32>
    %34 = arith.maximumf %33, %29 : vector<32x32xf32>
    %c0_39 = arith.constant 0 : index
    %c0_40 = arith.constant 0 : index
    %35 = vector.load %arg6[%c0_39, %c0_40] : memref<32x32xf32, #tpu.memory_space<vmem>>, vector<32x32xf32>
    tpu.vector_store %arg6[%c0_39, %c0_40], %34 {strides = array<i32>} : memref<32x32xf32, #tpu.memory_space<vmem>>, vector<32x32xf32>,
    %c4 = arith.constant 4 : index
    %c0_41 = arith.constant 0 : index
    %c0_42 = arith.constant 0 : index
    %36 = vector.load %arg3[%c4, %c0_41, %c0_42] : memref<16x4x32xf32, #tpu.memory_space<vmem>>, vector<1x4x32xf32>
    %37 = vector.shape_cast %36 : vector<1x4x32xf32> to vector<4x32xf32>
    %cst_43 = arith.constant dense<0.000000e+00> : vector<32x32xf32>
    %38 = tpu.matmul %0, %37, %cst_43 {dimension_numbers = #tpu.dot_dimension_numbers<[1], [0], [0], [1], [0, 0, 1, 1], [], []>} : vector<32x4xf32>, vector<4x32xf32>, vector<32x32xf32> -> vector<32x32xf32>
    %c4_44 = arith.constant 4 : index
    %c0_45 = arith.constant 0 : index
    %c0_46 = arith.constant 0 : index
    %39 = vector.load %arg5[%c4_44, %c0_45, %c0_46] : memref<16x32x32xf32, #tpu.memory_space<vmem>>, vector<1x32x32xf32>
    %40 = vector.shape_cast %39 : vector<1x32x32xf32> to vector<32x32xf32>
    %41 = vector.shape_cast %38 : vector<32x32xf32> to vector<1x32x32xf32>
    tpu.vector_store %arg5[%c4_44, %c0_45, %c0_46], %41 {strides = array<i32>} : memref<16x32x32xf32, #tpu.memory_space<vmem>>, vector<1x32x32xf32>,
    %c0_47 = arith.constant 0 : index
    %c0_48 = arith.constant 0 : index
    %42 = vector.load %arg6[%c0_47, %c0_48] : memref<32x32xf32, #tpu.memory_space<vmem>>, vector<32x32xf32>
    %43 = arith.maximumf %42, %38 : vector<32x32xf32>
    %c0_49 = arith.constant 0 : index
    %c0_50 = arith.constant 0 : index
    %44 = vector.load %arg6[%c0_49, %c0_50] : memref<32x32xf32, #tpu.memory_space<vmem>>, vector<32x32xf32>
    tpu.vector_store %arg6[%c0_49, %c0_50], %43 {strides = array<i32>} : memref<32x32xf32, #tpu.memory_space<vmem>>, vector<32x32xf32>,
    %c5 = arith.constant 5 : index
    %c0_51 = arith.constant 0 : index
    %c0_52 = arith.constant 0 : index
    %45 = vector.load %arg3[%c5, %c0_51, %c0_52] : memref<16x4x32xf32, #tpu.memory_space<vmem>>, vector<1x4x32xf32>
    %46 = vector.shape_cast %45 : vector<1x4x32xf32> to vector<4x32xf32>
    %cst_53 = arith.constant dense<0.000000e+00> : vector<32x32xf32>
    %47 = tpu.matmul %0, %46, %cst_53 {dimension_numbers = #tpu.dot_dimension_numbers<[1], [0], [0], [1], [0, 0, 1, 1], [], []>} : vector<32x4xf32>, vector<4x32xf32>, vector<32x32xf32> -> vector<32x32xf32>
    %c5_54 = arith.constant 5 : index
    %c0_55 = arith.constant 0 : index
    %c0_56 = arith.constant 0 : index
    %48 = vector.load %arg5[%c5_54, %c0_55, %c0_56] : memref<16x32x32xf32, #tpu.memory_space<vmem>>, vector<1x32x32xf32>
    %49 = vector.shape_cast %48 : vector<1x32x32xf32> to vector<32x32xf32>
    %50 = vector.shape_cast %47 : vector<32x32xf32> to vector<1x32x32xf32>
    tpu.vector_store %arg5[%c5_54, %c0_55, %c0_56], %50 {strides = array<i32>} : memref<16x32x32xf32, #tpu.memory_space<vmem>>, vector<1x32x32xf32>,
    %c0_57 = arith.constant 0 : index
    %c0_58 = arith.constant 0 : index
    %51 = vector.load %arg6[%c0_57, %c0_58] : memref<32x32xf32, #tpu.memory_space<vmem>>, vector<32x32xf32>
    %52 = arith.maximumf %51, %47 : vector<32x32xf32>
    %c0_59 = arith.constant 0 : index
    %c0_60 = arith.constant 0 : index
    %53 = vector.load %arg6[%c0_59, %c0_60] : memref<32x32xf32, #tpu.memory_space<vmem>>, vector<32x32xf32>
    tpu.vector_store %arg6[%c0_59, %c0_60], %52 {strides = array<i32>} : memref<32x32xf32, #tpu.memory_space<vmem>>, vector<32x32xf32>,
    %c6 = arith.constant 6 : index
    %c0_61 = arith.constant 0 : index
    %c0_62 = arith.constant 0 : index
    %54 = vector.load %arg3[%c6, %c0_61, %c0_62] : memref<16x4x32xf32, #tpu.memory_space<vmem>>, vector<1x4x32xf32>
    %55 = vector.shape_cast %54 : vector<1x4x32xf32> to vector<4x32xf32>
    %cst_63 = arith.constant dense<0.000000e+00> : vector<32x32xf32>
    %56 = tpu.matmul %0, %55, %cst_63 {dimension_numbers = #tpu.dot_dimension_numbers<[1], [0], [0], [1], [0, 0, 1, 1], [], []>} : vector<32x4xf32>, vector<4x32xf32>, vector<32x32xf32> -> vector<32x32xf32>
    %c6_64 = arith.constant 6 : index
    %c0_65 = arith.constant 0 : index
    %c0_66 = arith.constant 0 : index
    %57 = vector.load %arg5[%c6_64, %c0_65, %c0_66] : memref<16x32x32xf32, #tpu.memory_space<vmem>>, vector<1x32x32xf32>
    %58 = vector.shape_cast %57 : vector<1x32x32xf32> to vector<32x32xf32>
    %59 = vector.shape_cast %56 : vector<32x32xf32> to vector<1x32x32xf32>
    tpu.vector_store %arg5[%c6_64, %c0_65, %c0_66], %59 {strides = array<i32>} : memref<16x32x32xf32, #tpu.memory_space<vmem>>, vector<1x32x32xf32>,
    %c0_67 = arith.constant 0 : index
    %c0_68 = arith.constant 0 : index
    %60 = vector.load %arg6[%c0_67, %c0_68] : memref<32x32xf32, #tpu.memory_space<vmem>>, vector<32x32xf32>
    %61 = arith.maximumf %60, %56 : vector<32x32xf32>
    %c0_69 = arith.constant 0 : index
    %c0_70 = arith.constant 0 : index
    %62 = vector.load %arg6[%c0_69, %c0_70] : memref<32x32xf32, #tpu.memory_space<vmem>>, vector<32x32xf32>
    tpu.vector_store %arg6[%c0_69, %c0_70], %61 {strides = array<i32>} : memref<32x32xf32, #tpu.memory_space<vmem>>, vector<32x32xf32>,
    %c7 = arith.constant 7 : index
    %c0_71 = arith.constant 0 : index
    %c0_72 = arith.constant 0 : index
    %63 = vector.load %arg3[%c7, %c0_71, %c0_72] : memref<16x4x32xf32, #tpu.memory_space<vmem>>, vector<1x4x32xf32>
    %64 = vector.shape_cast %63 : vector<1x4x32xf32> to vector<4x32xf32>
    %cst_73 = arith.constant dense<0.000000e+00> : vector<32x32xf32>
    %65 = tpu.matmul %0, %64, %cst_73 {dimension_numbers = #tpu.dot_dimension_numbers<[1], [0], [0], [1], [0, 0, 1, 1], [], []>} : vector<32x4xf32>, vector<4x32xf32>, vector<32x32xf32> -> vector<32x32xf32>
    %c7_74 = arith.constant 7 : index
    %c0_75 = arith.constant 0 : index
    %c0_76 = arith.constant 0 : index
    %66 = vector.load %arg5[%c7_74, %c0_75, %c0_76] : memref<16x32x32xf32, #tpu.memory_space<vmem>>, vector<1x32x32xf32>
    %67 = vector.shape_cast %66 : vector<1x32x32xf32> to vector<32x32xf32>
    %68 = vector.shape_cast %65 : vector<32x32xf32> to vector<1x32x32xf32>
    tpu.vector_store %arg5[%c7_74, %c0_75, %c0_76], %68 {strides = array<i32>} : memref<16x32x32xf32, #tpu.memory_space<vmem>>, vector<1x32x32xf32>,
    %c0_77 = arith.constant 0 : index
    %c0_78 = arith.constant 0 : index
    %69 = vector.load %arg6[%c0_77, %c0_78] : memref<32x32xf32, #tpu.memory_space<vmem>>, vector<32x32xf32>
    %70 = arith.maximumf %69, %65 : vector<32x32xf32>
    %c0_79 = arith.constant 0 : index
    %c0_80 = arith.constant 0 : index
    %71 = vector.load %arg6[%c0_79, %c0_80] : memref<32x32xf32, #tpu.memory_space<vmem>>, vector<32x32xf32>
    tpu.vector_store %arg6[%c0_79, %c0_80], %70 {strides = array<i32>} : memref<32x32xf32, #tpu.memory_space<vmem>>, vector<32x32xf32>,
    %c8 = arith.constant 8 : index
    %c0_81 = arith.constant 0 : index
    %c0_82 = arith.constant 0 : index
    %72 = vector.load %arg3[%c8, %c0_81, %c0_82] : memref<16x4x32xf32, #tpu.memory_space<vmem>>, vector<1x4x32xf32>
    %73 = vector.shape_cast %72 : vector<1x4x32xf32> to vector<4x32xf32>
    %cst_83 = arith.constant dense<0.000000e+00> : vector<32x32xf32>
    %74 = tpu.matmul %0, %73, %cst_83 {dimension_numbers = #tpu.dot_dimension_numbers<[1], [0], [0], [1], [0, 0, 1, 1], [], []>} : vector<32x4xf32>, vector<4x32xf32>, vector<32x32xf32> -> vector<32x32xf32>
    %c8_84 = arith.constant 8 : index
    %c0_85 = arith.constant 0 : index
    %c0_86 = arith.constant 0 : index
    %75 = vector.load %arg5[%c8_84, %c0_85, %c0_86] : memref<16x32x32xf32, #tpu.memory_space<vmem>>, vector<1x32x32xf32>
    %76 = vector.shape_cast %75 : vector<1x32x32xf32> to vector<32x32xf32>
    %77 = vector.shape_cast %74 : vector<32x32xf32> to vector<1x32x32xf32>
    tpu.vector_store %arg5[%c8_84, %c0_85, %c0_86], %77 {strides = array<i32>} : memref<16x32x32xf32, #tpu.memory_space<vmem>>, vector<1x32x32xf32>,
    %c0_87 = arith.constant 0 : index
    %c0_88 = arith.constant 0 : index
    %78 = vector.load %arg6[%c0_87, %c0_88] : memref<32x32xf32, #tpu.memory_space<vmem>>, vector<32x32xf32>
    %79 = arith.maximumf %78, %74 : vector<32x32xf32>
    %c0_89 = arith.constant 0 : index
    %c0_90 = arith.constant 0 : index
    %80 = vector.load %arg6[%c0_89, %c0_90] : memref<32x32xf32, #tpu.memory_space<vmem>>, vector<32x32xf32>
    tpu.vector_store %arg6[%c0_89, %c0_90], %79 {strides = array<i32>} : memref<32x32xf32, #tpu.memory_space<vmem>>, vector<32x32xf32>,
    %c9 = arith.constant 9 : index
    %c0_91 = arith.constant 0 : index
    %c0_92 = arith.constant 0 : index
    %81 = vector.load %arg3[%c9, %c0_91, %c0_92] : memref<16x4x32xf32, #tpu.memory_space<vmem>>, vector<1x4x32xf32>
    %82 = vector.shape_cast %81 : vector<1x4x32xf32> to vector<4x32xf32>
    %cst_93 = arith.constant dense<0.000000e+00> : vector<32x32xf32>
    %83 = tpu.matmul %0, %82, %cst_93 {dimension_numbers = #tpu.dot_dimension_numbers<[1], [0], [0], [1], [0, 0, 1, 1], [], []>} : vector<32x4xf32>, vector<4x32xf32>, vector<32x32xf32> -> vector<32x32xf32>
    %c9_94 = arith.constant 9 : index
    %c0_95 = arith.constant 0 : index
    %c0_96 = arith.constant 0 : index
    %84 = vector.load %arg5[%c9_94, %c0_95, %c0_96] : memref<16x32x32xf32, #tpu.memory_space<vmem>>, vector<1x32x32xf32>
    %85 = vector.shape_cast %84 : vector<1x32x32xf32> to vector<32x32xf32>
    %86 = vector.shape_cast %83 : vector<32x32xf32> to vector<1x32x32xf32>
    tpu.vector_store %arg5[%c9_94, %c0_95, %c0_96], %86 {strides = array<i32>} : memref<16x32x32xf32, #tpu.memory_space<vmem>>, vector<1x32x32xf32>,
    %c0_97 = arith.constant 0 : index
    %c0_98 = arith.constant 0 : index
    %87 = vector.load %arg6[%c0_97, %c0_98] : memref<32x32xf32, #tpu.memory_space<vmem>>, vector<32x32xf32>
    %88 = arith.maximumf %87, %83 : vector<32x32xf32>
    %c0_99 = arith.constant 0 : index
    %c0_100 = arith.constant 0 : index
    %89 = vector.load %arg6[%c0_99, %c0_100] : memref<32x32xf32, #tpu.memory_space<vmem>>, vector<32x32xf32>
    tpu.vector_store %arg6[%c0_99, %c0_100], %88 {strides = array<i32>} : memref<32x32xf32, #tpu.memory_space<vmem>>, vector<32x32xf32>,
    %c10 = arith.constant 10 : index
    %c0_101 = arith.constant 0 : index
    %c0_102 = arith.constant 0 : index
    %90 = vector.load %arg3[%c10, %c0_101, %c0_102] : memref<16x4x32xf32, #tpu.memory_space<vmem>>, vector<1x4x32xf32>
    %91 = vector.shape_cast %90 : vector<1x4x32xf32> to vector<4x32xf32>
    %cst_103 = arith.constant dense<0.000000e+00> : vector<32x32xf32>
    %92 = tpu.matmul %0, %91, %cst_103 {dimension_numbers = #tpu.dot_dimension_numbers<[1], [0], [0], [1], [0, 0, 1, 1], [], []>} : vector<32x4xf32>, vector<4x32xf32>, vector<32x32xf32> -> vector<32x32xf32>
    %c10_104 = arith.constant 10 : index
    %c0_105 = arith.constant 0 : index
    %c0_106 = arith.constant 0 : index
    %93 = vector.load %arg5[%c10_104, %c0_105, %c0_106] : memref<16x32x32xf32, #tpu.memory_space<vmem>>, vector<1x32x32xf32>
    %94 = vector.shape_cast %93 : vector<1x32x32xf32> to vector<32x32xf32>
    %95 = vector.shape_cast %92 : vector<32x32xf32> to vector<1x32x32xf32>
    tpu.vector_store %arg5[%c10_104, %c0_105, %c0_106], %95 {strides = array<i32>} : memref<16x32x32xf32, #tpu.memory_space<vmem>>, vector<1x32x32xf32>,
    %c0_107 = arith.constant 0 : index
    %c0_108 = arith.constant 0 : index
    %96 = vector.load %arg6[%c0_107, %c0_108] : memref<32x32xf32, #tpu.memory_space<vmem>>, vector<32x32xf32>
    %97 = arith.maximumf %96, %92 : vector<32x32xf32>
    %c0_109 = arith.constant 0 : index
    %c0_110 = arith.constant 0 : index
    %98 = vector.load %arg6[%c0_109, %c0_110] : memref<32x32xf32, #tpu.memory_space<vmem>>, vector<32x32xf32>
    tpu.vector_store %arg6[%c0_109, %c0_110], %97 {strides = array<i32>} : memref<32x32xf32, #tpu.memory_space<vmem>>, vector<32x32xf32>,
    %c11 = arith.constant 11 : index
    %c0_111 = arith.constant 0 : index
    %c0_112 = arith.constant 0 : index
    %99 = vector.load %arg3[%c11, %c0_111, %c0_112] : memref<16x4x32xf32, #tpu.memory_space<vmem>>, vector<1x4x32xf32>
    %100 = vector.shape_cast %99 : vector<1x4x32xf32> to vector<4x32xf32>
    %cst_113 = arith.constant dense<0.000000e+00> : vector<32x32xf32>
    %101 = tpu.matmul %0, %100, %cst_113 {dimension_numbers = #tpu.dot_dimension_numbers<[1], [0], [0], [1], [0, 0, 1, 1], [], []>} : vector<32x4xf32>, vector<4x32xf32>, vector<32x32xf32> -> vector<32x32xf32>
    %c11_114 = arith.constant 11 : index
    %c0_115 = arith.constant 0 : index
    %c0_116 = arith.constant 0 : index
    %102 = vector.load %arg5[%c11_114, %c0_115, %c0_116] : memref<16x32x32xf32, #tpu.memory_space<vmem>>, vector<1x32x32xf32>
    %103 = vector.shape_cast %102 : vector<1x32x32xf32> to vector<32x32xf32>
    %104 = vector.shape_cast %101 : vector<32x32xf32> to vector<1x32x32xf32>
    tpu.vector_store %arg5[%c11_114, %c0_115, %c0_116], %104 {strides = array<i32>} : memref<16x32x32xf32, #tpu.memory_space<vmem>>, vector<1x32x32xf32>,
    %c0_117 = arith.constant 0 : index
    %c0_118 = arith.constant 0 : index
    %105 = vector.load %arg6[%c0_117, %c0_118] : memref<32x32xf32, #tpu.memory_space<vmem>>, vector<32x32xf32>
    %106 = arith.maximumf %105, %101 : vector<32x32xf32>
    %c0_119 = arith.constant 0 : index
    %c0_120 = arith.constant 0 : index
    %107 = vector.load %arg6[%c0_119, %c0_120] : memref<32x32xf32, #tpu.memory_space<vmem>>, vector<32x32xf32>
    tpu.vector_store %arg6[%c0_119, %c0_120], %106 {strides = array<i32>} : memref<32x32xf32, #tpu.memory_space<vmem>>, vector<32x32xf32>,
    %c12 = arith.constant 12 : index
    %c0_121 = arith.constant 0 : index
    %c0_122 = arith.constant 0 : index
    %108 = vector.load %arg3[%c12, %c0_121, %c0_122] : memref<16x4x32xf32, #tpu.memory_space<vmem>>, vector<1x4x32xf32>
    %109 = vector.shape_cast %108 : vector<1x4x32xf32> to vector<4x32xf32>
    %cst_123 = arith.constant dense<0.000000e+00> : vector<32x32xf32>
    %110 = tpu.matmul %0, %109, %cst_123 {dimension_numbers = #tpu.dot_dimension_numbers<[1], [0], [0], [1], [0, 0, 1, 1], [], []>} : vector<32x4xf32>, vector<4x32xf32>, vector<32x32xf32> -> vector<32x32xf32>
    %c12_124 = arith.constant 12 : index
    %c0_125 = arith.constant 0 : index
    %c0_126 = arith.constant 0 : index
    %111 = vector.load %arg5[%c12_124, %c0_125, %c0_126] : memref<16x32x32xf32, #tpu.memory_space<vmem>>, vector<1x32x32xf32>
    %112 = vector.shape_cast %111 : vector<1x32x32xf32> to vector<32x32xf32>
    %113 = vector.shape_cast %110 : vector<32x32xf32> to vector<1x32x32xf32>
    tpu.vector_store %arg5[%c12_124, %c0_125, %c0_126], %113 {strides = array<i32>} : memref<16x32x32xf32, #tpu.memory_space<vmem>>, vector<1x32x32xf32>,
    %c0_127 = arith.constant 0 : index
    %c0_128 = arith.constant 0 : index
    %114 = vector.load %arg6[%c0_127, %c0_128] : memref<32x32xf32, #tpu.memory_space<vmem>>, vector<32x32xf32>
    %115 = arith.maximumf %114, %110 : vector<32x32xf32>
    %c0_129 = arith.constant 0 : index
    %c0_130 = arith.constant 0 : index
    %116 = vector.load %arg6[%c0_129, %c0_130] : memref<32x32xf32, #tpu.memory_space<vmem>>, vector<32x32xf32>
    tpu.vector_store %arg6[%c0_129, %c0_130], %115 {strides = array<i32>} : memref<32x32xf32, #tpu.memory_space<vmem>>, vector<32x32xf32>,
    %c13 = arith.constant 13 : index
    %c0_131 = arith.constant 0 : index
    %c0_132 = arith.constant 0 : index
    %117 = vector.load %arg3[%c13, %c0_131, %c0_132] : memref<16x4x32xf32, #tpu.memory_space<vmem>>, vector<1x4x32xf32>
    %118 = vector.shape_cast %117 : vector<1x4x32xf32> to vector<4x32xf32>
    %cst_133 = arith.constant dense<0.000000e+00> : vector<32x32xf32>
    %119 = tpu.matmul %0, %118, %cst_133 {dimension_numbers = #tpu.dot_dimension_numbers<[1], [0], [0], [1], [0, 0, 1, 1], [], []>} : vector<32x4xf32>, vector<4x32xf32>, vector<32x32xf32> -> vector<32x32xf32>
    %c13_134 = arith.constant 13 : index
    %c0_135 = arith.constant 0 : index
    %c0_136 = arith.constant 0 : index
    %120 = vector.load %arg5[%c13_134, %c0_135, %c0_136] : memref<16x32x32xf32, #tpu.memory_space<vmem>>, vector<1x32x32xf32>
    %121 = vector.shape_cast %120 : vector<1x32x32xf32> to vector<32x32xf32>
    %122 = vector.shape_cast %119 : vector<32x32xf32> to vector<1x32x32xf32>
    tpu.vector_store %arg5[%c13_134, %c0_135, %c0_136], %122 {strides = array<i32>} : memref<16x32x32xf32, #tpu.memory_space<vmem>>, vector<1x32x32xf32>,
    %c0_137 = arith.constant 0 : index
    %c0_138 = arith.constant 0 : index
    %123 = vector.load %arg6[%c0_137, %c0_138] : memref<32x32xf32, #tpu.memory_space<vmem>>, vector<32x32xf32>
    %124 = arith.maximumf %123, %119 : vector<32x32xf32>
    %c0_139 = arith.constant 0 : index
    %c0_140 = arith.constant 0 : index
    %125 = vector.load %arg6[%c0_139, %c0_140] : memref<32x32xf32, #tpu.memory_space<vmem>>, vector<32x32xf32>
    tpu.vector_store %arg6[%c0_139, %c0_140], %124 {strides = array<i32>} : memref<32x32xf32, #tpu.memory_space<vmem>>, vector<32x32xf32>,
    %c14 = arith.constant 14 : index
    %c0_141 = arith.constant 0 : index
    %c0_142 = arith.constant 0 : index
    %126 = vector.load %arg3[%c14, %c0_141, %c0_142] : memref<16x4x32xf32, #tpu.memory_space<vmem>>, vector<1x4x32xf32>
    %127 = vector.shape_cast %126 : vector<1x4x32xf32> to vector<4x32xf32>
    %cst_143 = arith.constant dense<0.000000e+00> : vector<32x32xf32>
    %128 = tpu.matmul %0, %127, %cst_143 {dimension_numbers = #tpu.dot_dimension_numbers<[1], [0], [0], [1], [0, 0, 1, 1], [], []>} : vector<32x4xf32>, vector<4x32xf32>, vector<32x32xf32> -> vector<32x32xf32>
    %c14_144 = arith.constant 14 : index
    %c0_145 = arith.constant 0 : index
    %c0_146 = arith.constant 0 : index
    %129 = vector.load %arg5[%c14_144, %c0_145, %c0_146] : memref<16x32x32xf32, #tpu.memory_space<vmem>>, vector<1x32x32xf32>
    %130 = vector.shape_cast %129 : vector<1x32x32xf32> to vector<32x32xf32>
    %131 = vector.shape_cast %128 : vector<32x32xf32> to vector<1x32x32xf32>
    tpu.vector_store %arg5[%c14_144, %c0_145, %c0_146], %131 {strides = array<i32>} : memref<16x32x32xf32, #tpu.memory_space<vmem>>, vector<1x32x32xf32>,
    %c0_147 = arith.constant 0 : index
    %c0_148 = arith.constant 0 : index
    %132 = vector.load %arg6[%c0_147, %c0_148] : memref<32x32xf32, #tpu.memory_space<vmem>>, vector<32x32xf32>
    %133 = arith.maximumf %132, %128 : vector<32x32xf32>
    %c0_149 = arith.constant 0 : index
    %c0_150 = arith.constant 0 : index
    %134 = vector.load %arg6[%c0_149, %c0_150] : memref<32x32xf32, #tpu.memory_space<vmem>>, vector<32x32xf32>
    tpu.vector_store %arg6[%c0_149, %c0_150], %133 {strides = array<i32>} : memref<32x32xf32, #tpu.memory_space<vmem>>, vector<32x32xf32>,
    %c15 = arith.constant 15 : index
    %c0_151 = arith.constant 0 : index
    %c0_152 = arith.constant 0 : index
    %135 = vector.load %arg3[%c15, %c0_151, %c0_152] : memref<16x4x32xf32, #tpu.memory_space<vmem>>, vector<1x4x32xf32>
    %136 = vector.shape_cast %135 : vector<1x4x32xf32> to vector<4x32xf32>
    %cst_153 = arith.constant dense<0.000000e+00> : vector<32x32xf32>
    %137 = tpu.matmul %0, %136, %cst_153 {dimension_numbers = #tpu.dot_dimension_numbers<[1], [0], [0], [1], [0, 0, 1, 1], [], []>} : vector<32x4xf32>, vector<4x32xf32>, vector<32x32xf32> -> vector<32x32xf32>
    %c15_154 = arith.constant 15 : index
    %c0_155 = arith.constant 0 : index
    %c0_156 = arith.constant 0 : index
    %138 = vector.load %arg5[%c15_154, %c0_155, %c0_156] : memref<16x32x32xf32, #tpu.memory_space<vmem>>, vector<1x32x32xf32>
    %139 = vector.shape_cast %138 : vector<1x32x32xf32> to vector<32x32xf32>
    %140 = vector.shape_cast %137 : vector<32x32xf32> to vector<1x32x32xf32>
    tpu.vector_store %arg5[%c15_154, %c0_155, %c0_156], %140 {strides = array<i32>} : memref<16x32x32xf32, #tpu.memory_space<vmem>>, vector<1x32x32xf32>,
    %c0_157 = arith.constant 0 : index
    %c0_158 = arith.constant 0 : index
    %141 = vector.load %arg6[%c0_157, %c0_158] : memref<32x32xf32, #tpu.memory_space<vmem>>, vector<32x32xf32>
    %142 = arith.maximumf %141, %137 : vector<32x32xf32>
    %c0_159 = arith.constant 0 : index
    %c0_160 = arith.constant 0 : index
    %143 = vector.load %arg6[%c0_159, %c0_160] : memref<32x32xf32, #tpu.memory_space<vmem>>, vector<32x32xf32>
    tpu.vector_store %arg6[%c0_159, %c0_160], %142 {strides = array<i32>} : memref<32x32xf32, #tpu.memory_space<vmem>>, vector<32x32xf32>,
    %c0_161 = arith.constant 0 : index
    %c0_162 = arith.constant 0 : index
    %c0_163 = arith.constant 0 : index
    %144 = vector.load %arg5[%c0_161, %c0_162, %c0_163] : memref<16x32x32xf32, #tpu.memory_space<vmem>>, vector<1x32x32xf32>
    %145 = vector.shape_cast %144 : vector<1x32x32xf32> to vector<32x32xf32>
    %c0_164 = arith.constant 0 : index
    %c0_165 = arith.constant 0 : index
    %146 = vector.load %arg6[%c0_164, %c0_165] : memref<32x32xf32, #tpu.memory_space<vmem>>, vector<32x32xf32>
    %147 = arith.subf %145, %146 : vector<32x32xf32>
    %148 = math.exp %147 : vector<32x32xf32>
    %c0_166 = arith.constant 0 : index
    %c0_167 = arith.constant 0 : index
    %c0_168 = arith.constant 0 : index
    %149 = vector.load %arg5[%c0_166, %c0_167, %c0_168] : memref<16x32x32xf32, #tpu.memory_space<vmem>>, vector<1x32x32xf32>
    %150 = vector.shape_cast %149 : vector<1x32x32xf32> to vector<32x32xf32>
    %151 = vector.shape_cast %148 : vector<32x32xf32> to vector<1x32x32xf32>
    tpu.vector_store %arg5[%c0_166, %c0_167, %c0_168], %151 {strides = array<i32>} : memref<16x32x32xf32, #tpu.memory_space<vmem>>, vector<1x32x32xf32>,
    %c0_169 = arith.constant 0 : index
    %c0_170 = arith.constant 0 : index
    %152 = vector.load %arg7[%c0_169, %c0_170] : memref<32x32xf32, #tpu.memory_space<vmem>>, vector<32x32xf32>
    tpu.vector_store %arg7[%c0_169, %c0_170], %148 {strides = array<i32>} : memref<32x32xf32, #tpu.memory_space<vmem>>, vector<32x32xf32>,
    %c1_171 = arith.constant 1 : index
    %c0_172 = arith.constant 0 : index
    %c0_173 = arith.constant 0 : index
    %153 = vector.load %arg5[%c1_171, %c0_172, %c0_173] : memref<16x32x32xf32, #tpu.memory_space<vmem>>, vector<1x32x32xf32>
    %154 = vector.shape_cast %153 : vector<1x32x32xf32> to vector<32x32xf32>
    %c0_174 = arith.constant 0 : index
    %c0_175 = arith.constant 0 : index
    %155 = vector.load %arg6[%c0_174, %c0_175] : memref<32x32xf32, #tpu.memory_space<vmem>>, vector<32x32xf32>
    %156 = arith.subf %154, %155 : vector<32x32xf32>
    %157 = math.exp %156 : vector<32x32xf32>
    %c1_176 = arith.constant 1 : index
    %c0_177 = arith.constant 0 : index
    %c0_178 = arith.constant 0 : index
    %158 = vector.load %arg5[%c1_176, %c0_177, %c0_178] : memref<16x32x32xf32, #tpu.memory_space<vmem>>, vector<1x32x32xf32>
    %159 = vector.shape_cast %158 : vector<1x32x32xf32> to vector<32x32xf32>
    %160 = vector.shape_cast %157 : vector<32x32xf32> to vector<1x32x32xf32>
    tpu.vector_store %arg5[%c1_176, %c0_177, %c0_178], %160 {strides = array<i32>} : memref<16x32x32xf32, #tpu.memory_space<vmem>>, vector<1x32x32xf32>,
    %c0_179 = arith.constant 0 : index
    %c0_180 = arith.constant 0 : index
    %161 = vector.load %arg7[%c0_179, %c0_180] : memref<32x32xf32, #tpu.memory_space<vmem>>, vector<32x32xf32>
    %162 = arith.addf %161, %157 : vector<32x32xf32>
    %c0_181 = arith.constant 0 : index
    %c0_182 = arith.constant 0 : index
    %163 = vector.load %arg7[%c0_181, %c0_182] : memref<32x32xf32, #tpu.memory_space<vmem>>, vector<32x32xf32>
    tpu.vector_store %arg7[%c0_181, %c0_182], %162 {strides = array<i32>} : memref<32x32xf32, #tpu.memory_space<vmem>>, vector<32x32xf32>,
    %c2_183 = arith.constant 2 : index
    %c0_184 = arith.constant 0 : index
    %c0_185 = arith.constant 0 : index
    %164 = vector.load %arg5[%c2_183, %c0_184, %c0_185] : memref<16x32x32xf32, #tpu.memory_space<vmem>>, vector<1x32x32xf32>
    %165 = vector.shape_cast %164 : vector<1x32x32xf32> to vector<32x32xf32>
    %c0_186 = arith.constant 0 : index
    %c0_187 = arith.constant 0 : index
    %166 = vector.load %arg6[%c0_186, %c0_187] : memref<32x32xf32, #tpu.memory_space<vmem>>, vector<32x32xf32>
    %167 = arith.subf %165, %166 : vector<32x32xf32>
    %168 = math.exp %167 : vector<32x32xf32>
    %c2_188 = arith.constant 2 : index
    %c0_189 = arith.constant 0 : index
    %c0_190 = arith.constant 0 : index
    %169 = vector.load %arg5[%c2_188, %c0_189, %c0_190] : memref<16x32x32xf32, #tpu.memory_space<vmem>>, vector<1x32x32xf32>
    %170 = vector.shape_cast %169 : vector<1x32x32xf32> to vector<32x32xf32>
    %171 = vector.shape_cast %168 : vector<32x32xf32> to vector<1x32x32xf32>
    tpu.vector_store %arg5[%c2_188, %c0_189, %c0_190], %171 {strides = array<i32>} : memref<16x32x32xf32, #tpu.memory_space<vmem>>, vector<1x32x32xf32>,
    %c0_191 = arith.constant 0 : index
    %c0_192 = arith.constant 0 : index
    %172 = vector.load %arg7[%c0_191, %c0_192] : memref<32x32xf32, #tpu.memory_space<vmem>>, vector<32x32xf32>
    %173 = arith.addf %172, %168 : vector<32x32xf32>
    %c0_193 = arith.constant 0 : index
    %c0_194 = arith.constant 0 : index
    %174 = vector.load %arg7[%c0_193, %c0_194] : memref<32x32xf32, #tpu.memory_space<vmem>>, vector<32x32xf32>
    tpu.vector_store %arg7[%c0_193, %c0_194], %173 {strides = array<i32>} : memref<32x32xf32, #tpu.memory_space<vmem>>, vector<32x32xf32>,
    %c3_195 = arith.constant 3 : index
    %c0_196 = arith.constant 0 : index
    %c0_197 = arith.constant 0 : index
    %175 = vector.load %arg5[%c3_195, %c0_196, %c0_197] : memref<16x32x32xf32, #tpu.memory_space<vmem>>, vector<1x32x32xf32>
    %176 = vector.shape_cast %175 : vector<1x32x32xf32> to vector<32x32xf32>
    %c0_198 = arith.constant 0 : index
    %c0_199 = arith.constant 0 : index
    %177 = vector.load %arg6[%c0_198, %c0_199] : memref<32x32xf32, #tpu.memory_space<vmem>>, vector<32x32xf32>
    %178 = arith.subf %176, %177 : vector<32x32xf32>
    %179 = math.exp %178 : vector<32x32xf32>
    %c3_200 = arith.constant 3 : index
    %c0_201 = arith.constant 0 : index
    %c0_202 = arith.constant 0 : index
    %180 = vector.load %arg5[%c3_200, %c0_201, %c0_202] : memref<16x32x32xf32, #tpu.memory_space<vmem>>, vector<1x32x32xf32>
    %181 = vector.shape_cast %180 : vector<1x32x32xf32> to vector<32x32xf32>
    %182 = vector.shape_cast %179 : vector<32x32xf32> to vector<1x32x32xf32>
    tpu.vector_store %arg5[%c3_200, %c0_201, %c0_202], %182 {strides = array<i32>} : memref<16x32x32xf32, #tpu.memory_space<vmem>>, vector<1x32x32xf32>,
    %c0_203 = arith.constant 0 : index
    %c0_204 = arith.constant 0 : index
    %183 = vector.load %arg7[%c0_203, %c0_204] : memref<32x32xf32, #tpu.memory_space<vmem>>, vector<32x32xf32>
    %184 = arith.addf %183, %179 : vector<32x32xf32>
    %c0_205 = arith.constant 0 : index
    %c0_206 = arith.constant 0 : index
    %185 = vector.load %arg7[%c0_205, %c0_206] : memref<32x32xf32, #tpu.memory_space<vmem>>, vector<32x32xf32>
    tpu.vector_store %arg7[%c0_205, %c0_206], %184 {strides = array<i32>} : memref<32x32xf32, #tpu.memory_space<vmem>>, vector<32x32xf32>,
    %c4_207 = arith.constant 4 : index
    %c0_208 = arith.constant 0 : index
    %c0_209 = arith.constant 0 : index
    %186 = vector.load %arg5[%c4_207, %c0_208, %c0_209] : memref<16x32x32xf32, #tpu.memory_space<vmem>>, vector<1x32x32xf32>
    %187 = vector.shape_cast %186 : vector<1x32x32xf32> to vector<32x32xf32>
    %c0_210 = arith.constant 0 : index
    %c0_211 = arith.constant 0 : index
    %188 = vector.load %arg6[%c0_210, %c0_211] : memref<32x32xf32, #tpu.memory_space<vmem>>, vector<32x32xf32>
    %189 = arith.subf %187, %188 : vector<32x32xf32>
    %190 = math.exp %189 : vector<32x32xf32>
    %c4_212 = arith.constant 4 : index
    %c0_213 = arith.constant 0 : index
    %c0_214 = arith.constant 0 : index
    %191 = vector.load %arg5[%c4_212, %c0_213, %c0_214] : memref<16x32x32xf32, #tpu.memory_space<vmem>>, vector<1x32x32xf32>
    %192 = vector.shape_cast %191 : vector<1x32x32xf32> to vector<32x32xf32>
    %193 = vector.shape_cast %190 : vector<32x32xf32> to vector<1x32x32xf32>
    tpu.vector_store %arg5[%c4_212, %c0_213, %c0_214], %193 {strides = array<i32>} : memref<16x32x32xf32, #tpu.memory_space<vmem>>, vector<1x32x32xf32>,
    %c0_215 = arith.constant 0 : index
    %c0_216 = arith.constant 0 : index
    %194 = vector.load %arg7[%c0_215, %c0_216] : memref<32x32xf32, #tpu.memory_space<vmem>>, vector<32x32xf32>
    %195 = arith.addf %194, %190 : vector<32x32xf32>
    %c0_217 = arith.constant 0 : index
    %c0_218 = arith.constant 0 : index
    %196 = vector.load %arg7[%c0_217, %c0_218] : memref<32x32xf32, #tpu.memory_space<vmem>>, vector<32x32xf32>
    tpu.vector_store %arg7[%c0_217, %c0_218], %195 {strides = array<i32>} : memref<32x32xf32, #tpu.memory_space<vmem>>, vector<32x32xf32>,
    %c5_219 = arith.constant 5 : index
    %c0_220 = arith.constant 0 : index
    %c0_221 = arith.constant 0 : index
    %197 = vector.load %arg5[%c5_219, %c0_220, %c0_221] : memref<16x32x32xf32, #tpu.memory_space<vmem>>, vector<1x32x32xf32>
    %198 = vector.shape_cast %197 : vector<1x32x32xf32> to vector<32x32xf32>
    %c0_222 = arith.constant 0 : index
    %c0_223 = arith.constant 0 : index
    %199 = vector.load %arg6[%c0_222, %c0_223] : memref<32x32xf32, #tpu.memory_space<vmem>>, vector<32x32xf32>
    %200 = arith.subf %198, %199 : vector<32x32xf32>
    %201 = math.exp %200 : vector<32x32xf32>
    %c5_224 = arith.constant 5 : index
    %c0_225 = arith.constant 0 : index
    %c0_226 = arith.constant 0 : index
    %202 = vector.load %arg5[%c5_224, %c0_225, %c0_226] : memref<16x32x32xf32, #tpu.memory_space<vmem>>, vector<1x32x32xf32>
    %203 = vector.shape_cast %202 : vector<1x32x32xf32> to vector<32x32xf32>
    %204 = vector.shape_cast %201 : vector<32x32xf32> to vector<1x32x32xf32>
    tpu.vector_store %arg5[%c5_224, %c0_225, %c0_226], %204 {strides = array<i32>} : memref<16x32x32xf32, #tpu.memory_space<vmem>>, vector<1x32x32xf32>,
    %c0_227 = arith.constant 0 : index
    %c0_228 = arith.constant 0 : index
    %205 = vector.load %arg7[%c0_227, %c0_228] : memref<32x32xf32, #tpu.memory_space<vmem>>, vector<32x32xf32>
    %206 = arith.addf %205, %201 : vector<32x32xf32>
    %c0_229 = arith.constant 0 : index
    %c0_230 = arith.constant 0 : index
    %207 = vector.load %arg7[%c0_229, %c0_230] : memref<32x32xf32, #tpu.memory_space<vmem>>, vector<32x32xf32>
    tpu.vector_store %arg7[%c0_229, %c0_230], %206 {strides = array<i32>} : memref<32x32xf32, #tpu.memory_space<vmem>>, vector<32x32xf32>,
    %c6_231 = arith.constant 6 : index
    %c0_232 = arith.constant 0 : index
    %c0_233 = arith.constant 0 : index
    %208 = vector.load %arg5[%c6_231, %c0_232, %c0_233] : memref<16x32x32xf32, #tpu.memory_space<vmem>>, vector<1x32x32xf32>
    %209 = vector.shape_cast %208 : vector<1x32x32xf32> to vector<32x32xf32>
    %c0_234 = arith.constant 0 : index
    %c0_235 = arith.constant 0 : index
    %210 = vector.load %arg6[%c0_234, %c0_235] : memref<32x32xf32, #tpu.memory_space<vmem>>, vector<32x32xf32>
    %211 = arith.subf %209, %210 : vector<32x32xf32>
    %212 = math.exp %211 : vector<32x32xf32>
    %c6_236 = arith.constant 6 : index
    %c0_237 = arith.constant 0 : index
    %c0_238 = arith.constant 0 : index
    %213 = vector.load %arg5[%c6_236, %c0_237, %c0_238] : memref<16x32x32xf32, #tpu.memory_space<vmem>>, vector<1x32x32xf32>
    %214 = vector.shape_cast %213 : vector<1x32x32xf32> to vector<32x32xf32>
    %215 = vector.shape_cast %212 : vector<32x32xf32> to vector<1x32x32xf32>
    tpu.vector_store %arg5[%c6_236, %c0_237, %c0_238], %215 {strides = array<i32>} : memref<16x32x32xf32, #tpu.memory_space<vmem>>, vector<1x32x32xf32>,
    %c0_239 = arith.constant 0 : index
    %c0_240 = arith.constant 0 : index
    %216 = vector.load %arg7[%c0_239, %c0_240] : memref<32x32xf32, #tpu.memory_space<vmem>>, vector<32x32xf32>
    %217 = arith.addf %216, %212 : vector<32x32xf32>
    %c0_241 = arith.constant 0 : index
    %c0_242 = arith.constant 0 : index
    %218 = vector.load %arg7[%c0_241, %c0_242] : memref<32x32xf32, #tpu.memory_space<vmem>>, vector<32x32xf32>
    tpu.vector_store %arg7[%c0_241, %c0_242], %217 {strides = array<i32>} : memref<32x32xf32, #tpu.memory_space<vmem>>, vector<32x32xf32>,
    %c7_243 = arith.constant 7 : index
    %c0_244 = arith.constant 0 : index
    %c0_245 = arith.constant 0 : index
    %219 = vector.load %arg5[%c7_243, %c0_244, %c0_245] : memref<16x32x32xf32, #tpu.memory_space<vmem>>, vector<1x32x32xf32>
    %220 = vector.shape_cast %219 : vector<1x32x32xf32> to vector<32x32xf32>
    %c0_246 = arith.constant 0 : index
    %c0_247 = arith.constant 0 : index
    %221 = vector.load %arg6[%c0_246, %c0_247] : memref<32x32xf32, #tpu.memory_space<vmem>>, vector<32x32xf32>
    %222 = arith.subf %220, %221 : vector<32x32xf32>
    %223 = math.exp %222 : vector<32x32xf32>
    %c7_248 = arith.constant 7 : index
    %c0_249 = arith.constant 0 : index
    %c0_250 = arith.constant 0 : index
    %224 = vector.load %arg5[%c7_248, %c0_249, %c0_250] : memref<16x32x32xf32, #tpu.memory_space<vmem>>, vector<1x32x32xf32>
    %225 = vector.shape_cast %224 : vector<1x32x32xf32> to vector<32x32xf32>
    %226 = vector.shape_cast %223 : vector<32x32xf32> to vector<1x32x32xf32>
    tpu.vector_store %arg5[%c7_248, %c0_249, %c0_250], %226 {strides = array<i32>} : memref<16x32x32xf32, #tpu.memory_space<vmem>>, vector<1x32x32xf32>,
    %c0_251 = arith.constant 0 : index
    %c0_252 = arith.constant 0 : index
    %227 = vector.load %arg7[%c0_251, %c0_252] : memref<32x32xf32, #tpu.memory_space<vmem>>, vector<32x32xf32>
    %228 = arith.addf %227, %223 : vector<32x32xf32>
    %c0_253 = arith.constant 0 : index
    %c0_254 = arith.constant 0 : index
    %229 = vector.load %arg7[%c0_253, %c0_254] : memref<32x32xf32, #tpu.memory_space<vmem>>, vector<32x32xf32>
    tpu.vector_store %arg7[%c0_253, %c0_254], %228 {strides = array<i32>} : memref<32x32xf32, #tpu.memory_space<vmem>>, vector<32x32xf32>,
    %c8_255 = arith.constant 8 : index
    %c0_256 = arith.constant 0 : index
    %c0_257 = arith.constant 0 : index
    %230 = vector.load %arg5[%c8_255, %c0_256, %c0_257] : memref<16x32x32xf32, #tpu.memory_space<vmem>>, vector<1x32x32xf32>
    %231 = vector.shape_cast %230 : vector<1x32x32xf32> to vector<32x32xf32>
    %c0_258 = arith.constant 0 : index
    %c0_259 = arith.constant 0 : index
    %232 = vector.load %arg6[%c0_258, %c0_259] : memref<32x32xf32, #tpu.memory_space<vmem>>, vector<32x32xf32>
    %233 = arith.subf %231, %232 : vector<32x32xf32>
    %234 = math.exp %233 : vector<32x32xf32>
    %c8_260 = arith.constant 8 : index
    %c0_261 = arith.constant 0 : index
    %c0_262 = arith.constant 0 : index
    %235 = vector.load %arg5[%c8_260, %c0_261, %c0_262] : memref<16x32x32xf32, #tpu.memory_space<vmem>>, vector<1x32x32xf32>
    %236 = vector.shape_cast %235 : vector<1x32x32xf32> to vector<32x32xf32>
    %237 = vector.shape_cast %234 : vector<32x32xf32> to vector<1x32x32xf32>
    tpu.vector_store %arg5[%c8_260, %c0_261, %c0_262], %237 {strides = array<i32>} : memref<16x32x32xf32, #tpu.memory_space<vmem>>, vector<1x32x32xf32>,
    %c0_263 = arith.constant 0 : index
    %c0_264 = arith.constant 0 : index
    %238 = vector.load %arg7[%c0_263, %c0_264] : memref<32x32xf32, #tpu.memory_space<vmem>>, vector<32x32xf32>
    %239 = arith.addf %238, %234 : vector<32x32xf32>
    %c0_265 = arith.constant 0 : index
    %c0_266 = arith.constant 0 : index
    %240 = vector.load %arg7[%c0_265, %c0_266] : memref<32x32xf32, #tpu.memory_space<vmem>>, vector<32x32xf32>
    tpu.vector_store %arg7[%c0_265, %c0_266], %239 {strides = array<i32>} : memref<32x32xf32, #tpu.memory_space<vmem>>, vector<32x32xf32>,
    %c9_267 = arith.constant 9 : index
    %c0_268 = arith.constant 0 : index
    %c0_269 = arith.constant 0 : index
    %241 = vector.load %arg5[%c9_267, %c0_268, %c0_269] : memref<16x32x32xf32, #tpu.memory_space<vmem>>, vector<1x32x32xf32>
    %242 = vector.shape_cast %241 : vector<1x32x32xf32> to vector<32x32xf32>
    %c0_270 = arith.constant 0 : index
    %c0_271 = arith.constant 0 : index
    %243 = vector.load %arg6[%c0_270, %c0_271] : memref<32x32xf32, #tpu.memory_space<vmem>>, vector<32x32xf32>
    %244 = arith.subf %242, %243 : vector<32x32xf32>
    %245 = math.exp %244 : vector<32x32xf32>
    %c9_272 = arith.constant 9 : index
    %c0_273 = arith.constant 0 : index
    %c0_274 = arith.constant 0 : index
    %246 = vector.load %arg5[%c9_272, %c0_273, %c0_274] : memref<16x32x32xf32, #tpu.memory_space<vmem>>, vector<1x32x32xf32>
    %247 = vector.shape_cast %246 : vector<1x32x32xf32> to vector<32x32xf32>
    %248 = vector.shape_cast %245 : vector<32x32xf32> to vector<1x32x32xf32>
    tpu.vector_store %arg5[%c9_272, %c0_273, %c0_274], %248 {strides = array<i32>} : memref<16x32x32xf32, #tpu.memory_space<vmem>>, vector<1x32x32xf32>,
    %c0_275 = arith.constant 0 : index
    %c0_276 = arith.constant 0 : index
    %249 = vector.load %arg7[%c0_275, %c0_276] : memref<32x32xf32, #tpu.memory_space<vmem>>, vector<32x32xf32>
    %250 = arith.addf %249, %245 : vector<32x32xf32>
    %c0_277 = arith.constant 0 : index
    %c0_278 = arith.constant 0 : index
    %251 = vector.load %arg7[%c0_277, %c0_278] : memref<32x32xf32, #tpu.memory_space<vmem>>, vector<32x32xf32>
    tpu.vector_store %arg7[%c0_277, %c0_278], %250 {strides = array<i32>} : memref<32x32xf32, #tpu.memory_space<vmem>>, vector<32x32xf32>,
    %c10_279 = arith.constant 10 : index
    %c0_280 = arith.constant 0 : index
    %c0_281 = arith.constant 0 : index
    %252 = vector.load %arg5[%c10_279, %c0_280, %c0_281] : memref<16x32x32xf32, #tpu.memory_space<vmem>>, vector<1x32x32xf32>
    %253 = vector.shape_cast %252 : vector<1x32x32xf32> to vector<32x32xf32>
    %c0_282 = arith.constant 0 : index
    %c0_283 = arith.constant 0 : index
    %254 = vector.load %arg6[%c0_282, %c0_283] : memref<32x32xf32, #tpu.memory_space<vmem>>, vector<32x32xf32>
    %255 = arith.subf %253, %254 : vector<32x32xf32>
    %256 = math.exp %255 : vector<32x32xf32>
    %c10_284 = arith.constant 10 : index
    %c0_285 = arith.constant 0 : index
    %c0_286 = arith.constant 0 : index
    %257 = vector.load %arg5[%c10_284, %c0_285, %c0_286] : memref<16x32x32xf32, #tpu.memory_space<vmem>>, vector<1x32x32xf32>
    %258 = vector.shape_cast %257 : vector<1x32x32xf32> to vector<32x32xf32>
    %259 = vector.shape_cast %256 : vector<32x32xf32> to vector<1x32x32xf32>
    tpu.vector_store %arg5[%c10_284, %c0_285, %c0_286], %259 {strides = array<i32>} : memref<16x32x32xf32, #tpu.memory_space<vmem>>, vector<1x32x32xf32>,
    %c0_287 = arith.constant 0 : index
    %c0_288 = arith.constant 0 : index
    %260 = vector.load %arg7[%c0_287, %c0_288] : memref<32x32xf32, #tpu.memory_space<vmem>>, vector<32x32xf32>
    %261 = arith.addf %260, %256 : vector<32x32xf32>
    %c0_289 = arith.constant 0 : index
    %c0_290 = arith.constant 0 : index
    %262 = vector.load %arg7[%c0_289, %c0_290] : memref<32x32xf32, #tpu.memory_space<vmem>>, vector<32x32xf32>
    tpu.vector_store %arg7[%c0_289, %c0_290], %261 {strides = array<i32>} : memref<32x32xf32, #tpu.memory_space<vmem>>, vector<32x32xf32>,
    %c11_291 = arith.constant 11 : index
    %c0_292 = arith.constant 0 : index
    %c0_293 = arith.constant 0 : index
    %263 = vector.load %arg5[%c11_291, %c0_292, %c0_293] : memref<16x32x32xf32, #tpu.memory_space<vmem>>, vector<1x32x32xf32>
    %264 = vector.shape_cast %263 : vector<1x32x32xf32> to vector<32x32xf32>
    %c0_294 = arith.constant 0 : index
    %c0_295 = arith.constant 0 : index
    %265 = vector.load %arg6[%c0_294, %c0_295] : memref<32x32xf32, #tpu.memory_space<vmem>>, vector<32x32xf32>
    %266 = arith.subf %264, %265 : vector<32x32xf32>
    %267 = math.exp %266 : vector<32x32xf32>
    %c11_296 = arith.constant 11 : index
    %c0_297 = arith.constant 0 : index
    %c0_298 = arith.constant 0 : index
    %268 = vector.load %arg5[%c11_296, %c0_297, %c0_298] : memref<16x32x32xf32, #tpu.memory_space<vmem>>, vector<1x32x32xf32>
    %269 = vector.shape_cast %268 : vector<1x32x32xf32> to vector<32x32xf32>
    %270 = vector.shape_cast %267 : vector<32x32xf32> to vector<1x32x32xf32>
    tpu.vector_store %arg5[%c11_296, %c0_297, %c0_298], %270 {strides = array<i32>} : memref<16x32x32xf32, #tpu.memory_space<vmem>>, vector<1x32x32xf32>,
    %c0_299 = arith.constant 0 : index
    %c0_300 = arith.constant 0 : index
    %271 = vector.load %arg7[%c0_299, %c0_300] : memref<32x32xf32, #tpu.memory_space<vmem>>, vector<32x32xf32>
    %272 = arith.addf %271, %267 : vector<32x32xf32>
    %c0_301 = arith.constant 0 : index
    %c0_302 = arith.constant 0 : index
    %273 = vector.load %arg7[%c0_301, %c0_302] : memref<32x32xf32, #tpu.memory_space<vmem>>, vector<32x32xf32>
    tpu.vector_store %arg7[%c0_301, %c0_302], %272 {strides = array<i32>} : memref<32x32xf32, #tpu.memory_space<vmem>>, vector<32x32xf32>,
    %c12_303 = arith.constant 12 : index
    %c0_304 = arith.constant 0 : index
    %c0_305 = arith.constant 0 : index
    %274 = vector.load %arg5[%c12_303, %c0_304, %c0_305] : memref<16x32x32xf32, #tpu.memory_space<vmem>>, vector<1x32x32xf32>
    %275 = vector.shape_cast %274 : vector<1x32x32xf32> to vector<32x32xf32>
    %c0_306 = arith.constant 0 : index
    %c0_307 = arith.constant 0 : index
    %276 = vector.load %arg6[%c0_306, %c0_307] : memref<32x32xf32, #tpu.memory_space<vmem>>, vector<32x32xf32>
    %277 = arith.subf %275, %276 : vector<32x32xf32>
    %278 = math.exp %277 : vector<32x32xf32>
    %c12_308 = arith.constant 12 : index
    %c0_309 = arith.constant 0 : index
    %c0_310 = arith.constant 0 : index
    %279 = vector.load %arg5[%c12_308, %c0_309, %c0_310] : memref<16x32x32xf32, #tpu.memory_space<vmem>>, vector<1x32x32xf32>
    %280 = vector.shape_cast %279 : vector<1x32x32xf32> to vector<32x32xf32>
    %281 = vector.shape_cast %278 : vector<32x32xf32> to vector<1x32x32xf32>
    tpu.vector_store %arg5[%c12_308, %c0_309, %c0_310], %281 {strides = array<i32>} : memref<16x32x32xf32, #tpu.memory_space<vmem>>, vector<1x32x32xf32>,
    %c0_311 = arith.constant 0 : index
    %c0_312 = arith.constant 0 : index
    %282 = vector.load %arg7[%c0_311, %c0_312] : memref<32x32xf32, #tpu.memory_space<vmem>>, vector<32x32xf32>
    %283 = arith.addf %282, %278 : vector<32x32xf32>
    %c0_313 = arith.constant 0 : index
    %c0_314 = arith.constant 0 : index
    %284 = vector.load %arg7[%c0_313, %c0_314] : memref<32x32xf32, #tpu.memory_space<vmem>>, vector<32x32xf32>
    tpu.vector_store %arg7[%c0_313, %c0_314], %283 {strides = array<i32>} : memref<32x32xf32, #tpu.memory_space<vmem>>, vector<32x32xf32>,
    %c13_315 = arith.constant 13 : index
    %c0_316 = arith.constant 0 : index
    %c0_317 = arith.constant 0 : index
    %285 = vector.load %arg5[%c13_315, %c0_316, %c0_317] : memref<16x32x32xf32, #tpu.memory_space<vmem>>, vector<1x32x32xf32>
    %286 = vector.shape_cast %285 : vector<1x32x32xf32> to vector<32x32xf32>
    %c0_318 = arith.constant 0 : index
    %c0_319 = arith.constant 0 : index
    %287 = vector.load %arg6[%c0_318, %c0_319] : memref<32x32xf32, #tpu.memory_space<vmem>>, vector<32x32xf32>
    %288 = arith.subf %286, %287 : vector<32x32xf32>
    %289 = math.exp %288 : vector<32x32xf32>
    %c13_320 = arith.constant 13 : index
    %c0_321 = arith.constant 0 : index
    %c0_322 = arith.constant 0 : index
    %290 = vector.load %arg5[%c13_320, %c0_321, %c0_322] : memref<16x32x32xf32, #tpu.memory_space<vmem>>, vector<1x32x32xf32>
    %291 = vector.shape_cast %290 : vector<1x32x32xf32> to vector<32x32xf32>
    %292 = vector.shape_cast %289 : vector<32x32xf32> to vector<1x32x32xf32>
    tpu.vector_store %arg5[%c13_320, %c0_321, %c0_322], %292 {strides = array<i32>} : memref<16x32x32xf32, #tpu.memory_space<vmem>>, vector<1x32x32xf32>,
    %c0_323 = arith.constant 0 : index
    %c0_324 = arith.constant 0 : index
    %293 = vector.load %arg7[%c0_323, %c0_324] : memref<32x32xf32, #tpu.memory_space<vmem>>, vector<32x32xf32>
    %294 = arith.addf %293, %289 : vector<32x32xf32>
    %c0_325 = arith.constant 0 : index
    %c0_326 = arith.constant 0 : index
    %295 = vector.load %arg7[%c0_325, %c0_326] : memref<32x32xf32, #tpu.memory_space<vmem>>, vector<32x32xf32>
    tpu.vector_store %arg7[%c0_325, %c0_326], %294 {strides = array<i32>} : memref<32x32xf32, #tpu.memory_space<vmem>>, vector<32x32xf32>,
    %c14_327 = arith.constant 14 : index
    %c0_328 = arith.constant 0 : index
    %c0_329 = arith.constant 0 : index
    %296 = vector.load %arg5[%c14_327, %c0_328, %c0_329] : memref<16x32x32xf32, #tpu.memory_space<vmem>>, vector<1x32x32xf32>
    %297 = vector.shape_cast %296 : vector<1x32x32xf32> to vector<32x32xf32>
    %c0_330 = arith.constant 0 : index
    %c0_331 = arith.constant 0 : index
    %298 = vector.load %arg6[%c0_330, %c0_331] : memref<32x32xf32, #tpu.memory_space<vmem>>, vector<32x32xf32>
    %299 = arith.subf %297, %298 : vector<32x32xf32>
    %300 = math.exp %299 : vector<32x32xf32>
    %c14_332 = arith.constant 14 : index
    %c0_333 = arith.constant 0 : index
    %c0_334 = arith.constant 0 : index
    %301 = vector.load %arg5[%c14_332, %c0_333, %c0_334] : memref<16x32x32xf32, #tpu.memory_space<vmem>>, vector<1x32x32xf32>
    %302 = vector.shape_cast %301 : vector<1x32x32xf32> to vector<32x32xf32>
    %303 = vector.shape_cast %300 : vector<32x32xf32> to vector<1x32x32xf32>
    tpu.vector_store %arg5[%c14_332, %c0_333, %c0_334], %303 {strides = array<i32>} : memref<16x32x32xf32, #tpu.memory_space<vmem>>, vector<1x32x32xf32>,
    %c0_335 = arith.constant 0 : index
    %c0_336 = arith.constant 0 : index
    %304 = vector.load %arg7[%c0_335, %c0_336] : memref<32x32xf32, #tpu.memory_space<vmem>>, vector<32x32xf32>
    %305 = arith.addf %304, %300 : vector<32x32xf32>
    %c0_337 = arith.constant 0 : index
    %c0_338 = arith.constant 0 : index
    %306 = vector.load %arg7[%c0_337, %c0_338] : memref<32x32xf32, #tpu.memory_space<vmem>>, vector<32x32xf32>
    tpu.vector_store %arg7[%c0_337, %c0_338], %305 {strides = array<i32>} : memref<32x32xf32, #tpu.memory_space<vmem>>, vector<32x32xf32>,
    %c15_339 = arith.constant 15 : index
    %c0_340 = arith.constant 0 : index
    %c0_341 = arith.constant 0 : index
    %307 = vector.load %arg5[%c15_339, %c0_340, %c0_341] : memref<16x32x32xf32, #tpu.memory_space<vmem>>, vector<1x32x32xf32>
    %308 = vector.shape_cast %307 : vector<1x32x32xf32> to vector<32x32xf32>
    %c0_342 = arith.constant 0 : index
    %c0_343 = arith.constant 0 : index
    %309 = vector.load %arg6[%c0_342, %c0_343] : memref<32x32xf32, #tpu.memory_space<vmem>>, vector<32x32xf32>
    %310 = arith.subf %308, %309 : vector<32x32xf32>
    %311 = math.exp %310 : vector<32x32xf32>
    %c15_344 = arith.constant 15 : index
    %c0_345 = arith.constant 0 : index
    %c0_346 = arith.constant 0 : index
    %312 = vector.load %arg5[%c15_344, %c0_345, %c0_346] : memref<16x32x32xf32, #tpu.memory_space<vmem>>, vector<1x32x32xf32>
    %313 = vector.shape_cast %312 : vector<1x32x32xf32> to vector<32x32xf32>
    %314 = vector.shape_cast %311 : vector<32x32xf32> to vector<1x32x32xf32>
    tpu.vector_store %arg5[%c15_344, %c0_345, %c0_346], %314 {strides = array<i32>} : memref<16x32x32xf32, #tpu.memory_space<vmem>>, vector<1x32x32xf32>,
    %c0_347 = arith.constant 0 : index
    %c0_348 = arith.constant 0 : index
    %315 = vector.load %arg7[%c0_347, %c0_348] : memref<32x32xf32, #tpu.memory_space<vmem>>, vector<32x32xf32>
    %316 = arith.addf %315, %311 : vector<32x32xf32>
    %c0_349 = arith.constant 0 : index
    %c0_350 = arith.constant 0 : index
    %317 = vector.load %arg7[%c0_349, %c0_350] : memref<32x32xf32, #tpu.memory_space<vmem>>, vector<32x32xf32>
    tpu.vector_store %arg7[%c0_349, %c0_350], %316 {strides = array<i32>} : memref<32x32xf32, #tpu.memory_space<vmem>>, vector<32x32xf32>,
    %c0_351 = arith.constant 0 : index
    %c0_352 = arith.constant 0 : index
    %318 = vector.load %arg7[%c0_351, %c0_352] : memref<32x32xf32, #tpu.memory_space<vmem>>, vector<32x32xf32>
    %319 = tpu.reciprocal %318 {approx = true} : vector<32x32xf32> -> vector<32x32xf32>
    %320 = arith.mulf %318, %319 : vector<32x32xf32>
    %cst_353 = arith.constant 2.000000e+00 : f32
    %321 = vector.broadcast %cst_353 : f32 to vector<32x32xf32>
    %322 = arith.subf %321, %320 : vector<32x32xf32>
    %323 = arith.mulf %319, %322 : vector<32x32xf32>
    %324 = arith.mulf %318, %323 : vector<32x32xf32>
    %cst_354 = arith.constant 2.000000e+00 : f32
    %325 = vector.broadcast %cst_354 : f32 to vector<32x32xf32>
    %326 = arith.subf %325, %324 : vector<32x32xf32>
    %327 = arith.mulf %323, %326 : vector<32x32xf32>
    %c0_355 = arith.constant 0 : index
    %c0_356 = arith.constant 0 : index
    %328 = vector.load %arg7[%c0_355, %c0_356] : memref<32x32xf32, #tpu.memory_space<vmem>>, vector<32x32xf32>
    tpu.vector_store %arg7[%c0_355, %c0_356], %327 {strides = array<i32>} : memref<32x32xf32, #tpu.memory_space<vmem>>, vector<32x32xf32>,
    %c0_357 = arith.constant 0 : index
    %c0_358 = arith.constant 0 : index
    %c0_359 = arith.constant 0 : index
    %329 = vector.load %arg5[%c0_357, %c0_358, %c0_359] : memref<16x32x32xf32, #tpu.memory_space<vmem>>, vector<1x32x32xf32>
    %330 = vector.shape_cast %329 : vector<1x32x32xf32> to vector<32x32xf32>
    %c0_360 = arith.constant 0 : index
    %c0_361 = arith.constant 0 : index
    %331 = vector.load %arg7[%c0_360, %c0_361] : memref<32x32xf32, #tpu.memory_space<vmem>>, vector<32x32xf32>
    %332 = arith.mulf %330, %331 : vector<32x32xf32>
    %cst_362 = arith.constant dense<0.000000e+00> : vector<8x32xf32>
    %333 = tpu.matmul %1, %332, %cst_362 {dimension_numbers = #tpu.dot_dimension_numbers<[1], [0], [0], [1], [0, 0, 1, 1], [], []>} : vector<8x32xf32>, vector<32x32xf32>, vector<8x32xf32> -> vector<8x32xf32>
    %c0_363 = arith.constant 0 : index
    %c0_364 = arith.constant 0 : index
    %c0_365 = arith.constant 0 : index
    %334 = vector.load %arg4[%c0_363, %c0_364, %c0_365] : memref<16x8x32xf32, #tpu.memory_space<vmem>>, vector<1x8x32xf32>
    %335 = vector.shape_cast %334 : vector<1x8x32xf32> to vector<8x32xf32>
    %336 = vector.shape_cast %333 : vector<8x32xf32> to vector<1x8x32xf32>
    tpu.vector_store %arg4[%c0_363, %c0_364, %c0_365], %336 {strides = array<i32>} : memref<16x8x32xf32, #tpu.memory_space<vmem>>, vector<1x8x32xf32>,
    %c1_366 = arith.constant 1 : index
    %c0_367 = arith.constant 0 : index
    %c0_368 = arith.constant 0 : index
    %337 = vector.load %arg5[%c1_366, %c0_367, %c0_368] : memref<16x32x32xf32, #tpu.memory_space<vmem>>, vector<1x32x32xf32>
    %338 = vector.shape_cast %337 : vector<1x32x32xf32> to vector<32x32xf32>
    %c0_369 = arith.constant 0 : index
    %c0_370 = arith.constant 0 : index
    %339 = vector.load %arg7[%c0_369, %c0_370] : memref<32x32xf32, #tpu.memory_space<vmem>>, vector<32x32xf32>
    %340 = arith.mulf %338, %339 : vector<32x32xf32>
    %cst_371 = arith.constant dense<0.000000e+00> : vector<8x32xf32>
    %341 = tpu.matmul %1, %340, %cst_371 {dimension_numbers = #tpu.dot_dimension_numbers<[1], [0], [0], [1], [0, 0, 1, 1], [], []>} : vector<8x32xf32>, vector<32x32xf32>, vector<8x32xf32> -> vector<8x32xf32>
    %c1_372 = arith.constant 1 : index
    %c0_373 = arith.constant 0 : index
    %c0_374 = arith.constant 0 : index
    %342 = vector.load %arg4[%c1_372, %c0_373, %c0_374] : memref<16x8x32xf32, #tpu.memory_space<vmem>>, vector<1x8x32xf32>
    %343 = vector.shape_cast %342 : vector<1x8x32xf32> to vector<8x32xf32>
    %344 = vector.shape_cast %341 : vector<8x32xf32> to vector<1x8x32xf32>
    tpu.vector_store %arg4[%c1_372, %c0_373, %c0_374], %344 {strides = array<i32>} : memref<16x8x32xf32, #tpu.memory_space<vmem>>, vector<1x8x32xf32>,
    %c2_375 = arith.constant 2 : index
    %c0_376 = arith.constant 0 : index
    %c0_377 = arith.constant 0 : index
    %345 = vector.load %arg5[%c2_375, %c0_376, %c0_377] : memref<16x32x32xf32, #tpu.memory_space<vmem>>, vector<1x32x32xf32>
    %346 = vector.shape_cast %345 : vector<1x32x32xf32> to vector<32x32xf32>
    %c0_378 = arith.constant 0 : index
    %c0_379 = arith.constant 0 : index
    %347 = vector.load %arg7[%c0_378, %c0_379] : memref<32x32xf32, #tpu.memory_space<vmem>>, vector<32x32xf32>
    %348 = arith.mulf %346, %347 : vector<32x32xf32>
    %cst_380 = arith.constant dense<0.000000e+00> : vector<8x32xf32>
    %349 = tpu.matmul %1, %348, %cst_380 {dimension_numbers = #tpu.dot_dimension_numbers<[1], [0], [0], [1], [0, 0, 1, 1], [], []>} : vector<8x32xf32>, vector<32x32xf32>, vector<8x32xf32> -> vector<8x32xf32>
    %c2_381 = arith.constant 2 : index
    %c0_382 = arith.constant 0 : index
    %c0_383 = arith.constant 0 : index
    %350 = vector.load %arg4[%c2_381, %c0_382, %c0_383] : memref<16x8x32xf32, #tpu.memory_space<vmem>>, vector<1x8x32xf32>
    %351 = vector.shape_cast %350 : vector<1x8x32xf32> to vector<8x32xf32>
    %352 = vector.shape_cast %349 : vector<8x32xf32> to vector<1x8x32xf32>
    tpu.vector_store %arg4[%c2_381, %c0_382, %c0_383], %352 {strides = array<i32>} : memref<16x8x32xf32, #tpu.memory_space<vmem>>, vector<1x8x32xf32>,
    %c3_384 = arith.constant 3 : index
    %c0_385 = arith.constant 0 : index
    %c0_386 = arith.constant 0 : index
    %353 = vector.load %arg5[%c3_384, %c0_385, %c0_386] : memref<16x32x32xf32, #tpu.memory_space<vmem>>, vector<1x32x32xf32>
    %354 = vector.shape_cast %353 : vector<1x32x32xf32> to vector<32x32xf32>
    %c0_387 = arith.constant 0 : index
    %c0_388 = arith.constant 0 : index
    %355 = vector.load %arg7[%c0_387, %c0_388] : memref<32x32xf32, #tpu.memory_space<vmem>>, vector<32x32xf32>
    %356 = arith.mulf %354, %355 : vector<32x32xf32>
    %cst_389 = arith.constant dense<0.000000e+00> : vector<8x32xf32>
    %357 = tpu.matmul %1, %356, %cst_389 {dimension_numbers = #tpu.dot_dimension_numbers<[1], [0], [0], [1], [0, 0, 1, 1], [], []>} : vector<8x32xf32>, vector<32x32xf32>, vector<8x32xf32> -> vector<8x32xf32>
    %c3_390 = arith.constant 3 : index
    %c0_391 = arith.constant 0 : index
    %c0_392 = arith.constant 0 : index
    %358 = vector.load %arg4[%c3_390, %c0_391, %c0_392] : memref<16x8x32xf32, #tpu.memory_space<vmem>>, vector<1x8x32xf32>
    %359 = vector.shape_cast %358 : vector<1x8x32xf32> to vector<8x32xf32>
    %360 = vector.shape_cast %357 : vector<8x32xf32> to vector<1x8x32xf32>
    tpu.vector_store %arg4[%c3_390, %c0_391, %c0_392], %360 {strides = array<i32>} : memref<16x8x32xf32, #tpu.memory_space<vmem>>, vector<1x8x32xf32>,
    %c4_393 = arith.constant 4 : index
    %c0_394 = arith.constant 0 : index
    %c0_395 = arith.constant 0 : index
    %361 = vector.load %arg5[%c4_393, %c0_394, %c0_395] : memref<16x32x32xf32, #tpu.memory_space<vmem>>, vector<1x32x32xf32>
    %362 = vector.shape_cast %361 : vector<1x32x32xf32> to vector<32x32xf32>
    %c0_396 = arith.constant 0 : index
    %c0_397 = arith.constant 0 : index
    %363 = vector.load %arg7[%c0_396, %c0_397] : memref<32x32xf32, #tpu.memory_space<vmem>>, vector<32x32xf32>
    %364 = arith.mulf %362, %363 : vector<32x32xf32>
    %cst_398 = arith.constant dense<0.000000e+00> : vector<8x32xf32>
    %365 = tpu.matmul %1, %364, %cst_398 {dimension_numbers = #tpu.dot_dimension_numbers<[1], [0], [0], [1], [0, 0, 1, 1], [], []>} : vector<8x32xf32>, vector<32x32xf32>, vector<8x32xf32> -> vector<8x32xf32>
    %c4_399 = arith.constant 4 : index
    %c0_400 = arith.constant 0 : index
    %c0_401 = arith.constant 0 : index
    %366 = vector.load %arg4[%c4_399, %c0_400, %c0_401] : memref<16x8x32xf32, #tpu.memory_space<vmem>>, vector<1x8x32xf32>
    %367 = vector.shape_cast %366 : vector<1x8x32xf32> to vector<8x32xf32>
    %368 = vector.shape_cast %365 : vector<8x32xf32> to vector<1x8x32xf32>
    tpu.vector_store %arg4[%c4_399, %c0_400, %c0_401], %368 {strides = array<i32>} : memref<16x8x32xf32, #tpu.memory_space<vmem>>, vector<1x8x32xf32>,
    %c5_402 = arith.constant 5 : index
    %c0_403 = arith.constant 0 : index
    %c0_404 = arith.constant 0 : index
    %369 = vector.load %arg5[%c5_402, %c0_403, %c0_404] : memref<16x32x32xf32, #tpu.memory_space<vmem>>, vector<1x32x32xf32>
    %370 = vector.shape_cast %369 : vector<1x32x32xf32> to vector<32x32xf32>
    %c0_405 = arith.constant 0 : index
    %c0_406 = arith.constant 0 : index
    %371 = vector.load %arg7[%c0_405, %c0_406] : memref<32x32xf32, #tpu.memory_space<vmem>>, vector<32x32xf32>
    %372 = arith.mulf %370, %371 : vector<32x32xf32>
    %cst_407 = arith.constant dense<0.000000e+00> : vector<8x32xf32>
    %373 = tpu.matmul %1, %372, %cst_407 {dimension_numbers = #tpu.dot_dimension_numbers<[1], [0], [0], [1], [0, 0, 1, 1], [], []>} : vector<8x32xf32>, vector<32x32xf32>, vector<8x32xf32> -> vector<8x32xf32>
    %c5_408 = arith.constant 5 : index
    %c0_409 = arith.constant 0 : index
    %c0_410 = arith.constant 0 : index
    %374 = vector.load %arg4[%c5_408, %c0_409, %c0_410] : memref<16x8x32xf32, #tpu.memory_space<vmem>>, vector<1x8x32xf32>
    %375 = vector.shape_cast %374 : vector<1x8x32xf32> to vector<8x32xf32>
    %376 = vector.shape_cast %373 : vector<8x32xf32> to vector<1x8x32xf32>
    tpu.vector_store %arg4[%c5_408, %c0_409, %c0_410], %376 {strides = array<i32>} : memref<16x8x32xf32, #tpu.memory_space<vmem>>, vector<1x8x32xf32>,
    %c6_411 = arith.constant 6 : index
    %c0_412 = arith.constant 0 : index
    %c0_413 = arith.constant 0 : index
    %377 = vector.load %arg5[%c6_411, %c0_412, %c0_413] : memref<16x32x32xf32, #tpu.memory_space<vmem>>, vector<1x32x32xf32>
    %378 = vector.shape_cast %377 : vector<1x32x32xf32> to vector<32x32xf32>
    %c0_414 = arith.constant 0 : index
    %c0_415 = arith.constant 0 : index
    %379 = vector.load %arg7[%c0_414, %c0_415] : memref<32x32xf32, #tpu.memory_space<vmem>>, vector<32x32xf32>
    %380 = arith.mulf %378, %379 : vector<32x32xf32>
    %cst_416 = arith.constant dense<0.000000e+00> : vector<8x32xf32>
    %381 = tpu.matmul %1, %380, %cst_416 {dimension_numbers = #tpu.dot_dimension_numbers<[1], [0], [0], [1], [0, 0, 1, 1], [], []>} : vector<8x32xf32>, vector<32x32xf32>, vector<8x32xf32> -> vector<8x32xf32>
    %c6_417 = arith.constant 6 : index
    %c0_418 = arith.constant 0 : index
    %c0_419 = arith.constant 0 : index
    %382 = vector.load %arg4[%c6_417, %c0_418, %c0_419] : memref<16x8x32xf32, #tpu.memory_space<vmem>>, vector<1x8x32xf32>
    %383 = vector.shape_cast %382 : vector<1x8x32xf32> to vector<8x32xf32>
    %384 = vector.shape_cast %381 : vector<8x32xf32> to vector<1x8x32xf32>
    tpu.vector_store %arg4[%c6_417, %c0_418, %c0_419], %384 {strides = array<i32>} : memref<16x8x32xf32, #tpu.memory_space<vmem>>, vector<1x8x32xf32>,
    %c7_420 = arith.constant 7 : index
    %c0_421 = arith.constant 0 : index
    %c0_422 = arith.constant 0 : index
    %385 = vector.load %arg5[%c7_420, %c0_421, %c0_422] : memref<16x32x32xf32, #tpu.memory_space<vmem>>, vector<1x32x32xf32>
    %386 = vector.shape_cast %385 : vector<1x32x32xf32> to vector<32x32xf32>
    %c0_423 = arith.constant 0 : index
    %c0_424 = arith.constant 0 : index
    %387 = vector.load %arg7[%c0_423, %c0_424] : memref<32x32xf32, #tpu.memory_space<vmem>>, vector<32x32xf32>
    %388 = arith.mulf %386, %387 : vector<32x32xf32>
    %cst_425 = arith.constant dense<0.000000e+00> : vector<8x32xf32>
    %389 = tpu.matmul %1, %388, %cst_425 {dimension_numbers = #tpu.dot_dimension_numbers<[1], [0], [0], [1], [0, 0, 1, 1], [], []>} : vector<8x32xf32>, vector<32x32xf32>, vector<8x32xf32> -> vector<8x32xf32>
    %c7_426 = arith.constant 7 : index
    %c0_427 = arith.constant 0 : index
    %c0_428 = arith.constant 0 : index
    %390 = vector.load %arg4[%c7_426, %c0_427, %c0_428] : memref<16x8x32xf32, #tpu.memory_space<vmem>>, vector<1x8x32xf32>
    %391 = vector.shape_cast %390 : vector<1x8x32xf32> to vector<8x32xf32>
    %392 = vector.shape_cast %389 : vector<8x32xf32> to vector<1x8x32xf32>
    tpu.vector_store %arg4[%c7_426, %c0_427, %c0_428], %392 {strides = array<i32>} : memref<16x8x32xf32, #tpu.memory_space<vmem>>, vector<1x8x32xf32>,
    %c8_429 = arith.constant 8 : index
    %c0_430 = arith.constant 0 : index
    %c0_431 = arith.constant 0 : index
    %393 = vector.load %arg5[%c8_429, %c0_430, %c0_431] : memref<16x32x32xf32, #tpu.memory_space<vmem>>, vector<1x32x32xf32>
    %394 = vector.shape_cast %393 : vector<1x32x32xf32> to vector<32x32xf32>
    %c0_432 = arith.constant 0 : index
    %c0_433 = arith.constant 0 : index
    %395 = vector.load %arg7[%c0_432, %c0_433] : memref<32x32xf32, #tpu.memory_space<vmem>>, vector<32x32xf32>
    %396 = arith.mulf %394, %395 : vector<32x32xf32>
    %cst_434 = arith.constant dense<0.000000e+00> : vector<8x32xf32>
    %397 = tpu.matmul %1, %396, %cst_434 {dimension_numbers = #tpu.dot_dimension_numbers<[1], [0], [0], [1], [0, 0, 1, 1], [], []>} : vector<8x32xf32>, vector<32x32xf32>, vector<8x32xf32> -> vector<8x32xf32>
    %c8_435 = arith.constant 8 : index
    %c0_436 = arith.constant 0 : index
    %c0_437 = arith.constant 0 : index
    %398 = vector.load %arg4[%c8_435, %c0_436, %c0_437] : memref<16x8x32xf32, #tpu.memory_space<vmem>>, vector<1x8x32xf32>
    %399 = vector.shape_cast %398 : vector<1x8x32xf32> to vector<8x32xf32>
    %400 = vector.shape_cast %397 : vector<8x32xf32> to vector<1x8x32xf32>
    tpu.vector_store %arg4[%c8_435, %c0_436, %c0_437], %400 {strides = array<i32>} : memref<16x8x32xf32, #tpu.memory_space<vmem>>, vector<1x8x32xf32>,
    %c9_438 = arith.constant 9 : index
    %c0_439 = arith.constant 0 : index
    %c0_440 = arith.constant 0 : index
    %401 = vector.load %arg5[%c9_438, %c0_439, %c0_440] : memref<16x32x32xf32, #tpu.memory_space<vmem>>, vector<1x32x32xf32>
    %402 = vector.shape_cast %401 : vector<1x32x32xf32> to vector<32x32xf32>
    %c0_441 = arith.constant 0 : index
    %c0_442 = arith.constant 0 : index
    %403 = vector.load %arg7[%c0_441, %c0_442] : memref<32x32xf32, #tpu.memory_space<vmem>>, vector<32x32xf32>
    %404 = arith.mulf %402, %403 : vector<32x32xf32>
    %cst_443 = arith.constant dense<0.000000e+00> : vector<8x32xf32>
    %405 = tpu.matmul %1, %404, %cst_443 {dimension_numbers = #tpu.dot_dimension_numbers<[1], [0], [0], [1], [0, 0, 1, 1], [], []>} : vector<8x32xf32>, vector<32x32xf32>, vector<8x32xf32> -> vector<8x32xf32>
    %c9_444 = arith.constant 9 : index
    %c0_445 = arith.constant 0 : index
    %c0_446 = arith.constant 0 : index
    %406 = vector.load %arg4[%c9_444, %c0_445, %c0_446] : memref<16x8x32xf32, #tpu.memory_space<vmem>>, vector<1x8x32xf32>
    %407 = vector.shape_cast %406 : vector<1x8x32xf32> to vector<8x32xf32>
    %408 = vector.shape_cast %405 : vector<8x32xf32> to vector<1x8x32xf32>
    tpu.vector_store %arg4[%c9_444, %c0_445, %c0_446], %408 {strides = array<i32>} : memref<16x8x32xf32, #tpu.memory_space<vmem>>, vector<1x8x32xf32>,
    %c10_447 = arith.constant 10 : index
    %c0_448 = arith.constant 0 : index
    %c0_449 = arith.constant 0 : index
    %409 = vector.load %arg5[%c10_447, %c0_448, %c0_449] : memref<16x32x32xf32, #tpu.memory_space<vmem>>, vector<1x32x32xf32>
    %410 = vector.shape_cast %409 : vector<1x32x32xf32> to vector<32x32xf32>
    %c0_450 = arith.constant 0 : index
    %c0_451 = arith.constant 0 : index
    %411 = vector.load %arg7[%c0_450, %c0_451] : memref<32x32xf32, #tpu.memory_space<vmem>>, vector<32x32xf32>
    %412 = arith.mulf %410, %411 : vector<32x32xf32>
    %cst_452 = arith.constant dense<0.000000e+00> : vector<8x32xf32>
    %413 = tpu.matmul %1, %412, %cst_452 {dimension_numbers = #tpu.dot_dimension_numbers<[1], [0], [0], [1], [0, 0, 1, 1], [], []>} : vector<8x32xf32>, vector<32x32xf32>, vector<8x32xf32> -> vector<8x32xf32>
    %c10_453 = arith.constant 10 : index
    %c0_454 = arith.constant 0 : index
    %c0_455 = arith.constant 0 : index
    %414 = vector.load %arg4[%c10_453, %c0_454, %c0_455] : memref<16x8x32xf32, #tpu.memory_space<vmem>>, vector<1x8x32xf32>
    %415 = vector.shape_cast %414 : vector<1x8x32xf32> to vector<8x32xf32>
    %416 = vector.shape_cast %413 : vector<8x32xf32> to vector<1x8x32xf32>
    tpu.vector_store %arg4[%c10_453, %c0_454, %c0_455], %416 {strides = array<i32>} : memref<16x8x32xf32, #tpu.memory_space<vmem>>, vector<1x8x32xf32>,
    %c11_456 = arith.constant 11 : index
    %c0_457 = arith.constant 0 : index
    %c0_458 = arith.constant 0 : index
    %417 = vector.load %arg5[%c11_456, %c0_457, %c0_458] : memref<16x32x32xf32, #tpu.memory_space<vmem>>, vector<1x32x32xf32>
    %418 = vector.shape_cast %417 : vector<1x32x32xf32> to vector<32x32xf32>
    %c0_459 = arith.constant 0 : index
    %c0_460 = arith.constant 0 : index
    %419 = vector.load %arg7[%c0_459, %c0_460] : memref<32x32xf32, #tpu.memory_space<vmem>>, vector<32x32xf32>
    %420 = arith.mulf %418, %419 : vector<32x32xf32>
    %cst_461 = arith.constant dense<0.000000e+00> : vector<8x32xf32>
    %421 = tpu.matmul %1, %420, %cst_461 {dimension_numbers = #tpu.dot_dimension_numbers<[1], [0], [0], [1], [0, 0, 1, 1], [], []>} : vector<8x32xf32>, vector<32x32xf32>, vector<8x32xf32> -> vector<8x32xf32>
    %c11_462 = arith.constant 11 : index
    %c0_463 = arith.constant 0 : index
    %c0_464 = arith.constant 0 : index
    %422 = vector.load %arg4[%c11_462, %c0_463, %c0_464] : memref<16x8x32xf32, #tpu.memory_space<vmem>>, vector<1x8x32xf32>
    %423 = vector.shape_cast %422 : vector<1x8x32xf32> to vector<8x32xf32>
    %424 = vector.shape_cast %421 : vector<8x32xf32> to vector<1x8x32xf32>
    tpu.vector_store %arg4[%c11_462, %c0_463, %c0_464], %424 {strides = array<i32>} : memref<16x8x32xf32, #tpu.memory_space<vmem>>, vector<1x8x32xf32>,
    %c12_465 = arith.constant 12 : index
    %c0_466 = arith.constant 0 : index
    %c0_467 = arith.constant 0 : index
    %425 = vector.load %arg5[%c12_465, %c0_466, %c0_467] : memref<16x32x32xf32, #tpu.memory_space<vmem>>, vector<1x32x32xf32>
    %426 = vector.shape_cast %425 : vector<1x32x32xf32> to vector<32x32xf32>
    %c0_468 = arith.constant 0 : index
    %c0_469 = arith.constant 0 : index
    %427 = vector.load %arg7[%c0_468, %c0_469] : memref<32x32xf32, #tpu.memory_space<vmem>>, vector<32x32xf32>
    %428 = arith.mulf %426, %427 : vector<32x32xf32>
    %cst_470 = arith.constant dense<0.000000e+00> : vector<8x32xf32>
    %429 = tpu.matmul %1, %428, %cst_470 {dimension_numbers = #tpu.dot_dimension_numbers<[1], [0], [0], [1], [0, 0, 1, 1], [], []>} : vector<8x32xf32>, vector<32x32xf32>, vector<8x32xf32> -> vector<8x32xf32>
    %c12_471 = arith.constant 12 : index
    %c0_472 = arith.constant 0 : index
    %c0_473 = arith.constant 0 : index
    %430 = vector.load %arg4[%c12_471, %c0_472, %c0_473] : memref<16x8x32xf32, #tpu.memory_space<vmem>>, vector<1x8x32xf32>
    %431 = vector.shape_cast %430 : vector<1x8x32xf32> to vector<8x32xf32>
    %432 = vector.shape_cast %429 : vector<8x32xf32> to vector<1x8x32xf32>
    tpu.vector_store %arg4[%c12_471, %c0_472, %c0_473], %432 {strides = array<i32>} : memref<16x8x32xf32, #tpu.memory_space<vmem>>, vector<1x8x32xf32>,
    %c13_474 = arith.constant 13 : index
    %c0_475 = arith.constant 0 : index
    %c0_476 = arith.constant 0 : index
    %433 = vector.load %arg5[%c13_474, %c0_475, %c0_476] : memref<16x32x32xf32, #tpu.memory_space<vmem>>, vector<1x32x32xf32>
    %434 = vector.shape_cast %433 : vector<1x32x32xf32> to vector<32x32xf32>
    %c0_477 = arith.constant 0 : index
    %c0_478 = arith.constant 0 : index
    %435 = vector.load %arg7[%c0_477, %c0_478] : memref<32x32xf32, #tpu.memory_space<vmem>>, vector<32x32xf32>
    %436 = arith.mulf %434, %435 : vector<32x32xf32>
    %cst_479 = arith.constant dense<0.000000e+00> : vector<8x32xf32>
    %437 = tpu.matmul %1, %436, %cst_479 {dimension_numbers = #tpu.dot_dimension_numbers<[1], [0], [0], [1], [0, 0, 1, 1], [], []>} : vector<8x32xf32>, vector<32x32xf32>, vector<8x32xf32> -> vector<8x32xf32>
    %c13_480 = arith.constant 13 : index
    %c0_481 = arith.constant 0 : index
    %c0_482 = arith.constant 0 : index
    %438 = vector.load %arg4[%c13_480, %c0_481, %c0_482] : memref<16x8x32xf32, #tpu.memory_space<vmem>>, vector<1x8x32xf32>
    %439 = vector.shape_cast %438 : vector<1x8x32xf32> to vector<8x32xf32>
    %440 = vector.shape_cast %437 : vector<8x32xf32> to vector<1x8x32xf32>
    tpu.vector_store %arg4[%c13_480, %c0_481, %c0_482], %440 {strides = array<i32>} : memref<16x8x32xf32, #tpu.memory_space<vmem>>, vector<1x8x32xf32>,
    %c14_483 = arith.constant 14 : index
    %c0_484 = arith.constant 0 : index
    %c0_485 = arith.constant 0 : index
    %441 = vector.load %arg5[%c14_483, %c0_484, %c0_485] : memref<16x32x32xf32, #tpu.memory_space<vmem>>, vector<1x32x32xf32>
    %442 = vector.shape_cast %441 : vector<1x32x32xf32> to vector<32x32xf32>
    %c0_486 = arith.constant 0 : index
    %c0_487 = arith.constant 0 : index
    %443 = vector.load %arg7[%c0_486, %c0_487] : memref<32x32xf32, #tpu.memory_space<vmem>>, vector<32x32xf32>
    %444 = arith.mulf %442, %443 : vector<32x32xf32>
    %cst_488 = arith.constant dense<0.000000e+00> : vector<8x32xf32>
    %445 = tpu.matmul %1, %444, %cst_488 {dimension_numbers = #tpu.dot_dimension_numbers<[1], [0], [0], [1], [0, 0, 1, 1], [], []>} : vector<8x32xf32>, vector<32x32xf32>, vector<8x32xf32> -> vector<8x32xf32>
    %c14_489 = arith.constant 14 : index
    %c0_490 = arith.constant 0 : index
    %c0_491 = arith.constant 0 : index
    %446 = vector.load %arg4[%c14_489, %c0_490, %c0_491] : memref<16x8x32xf32, #tpu.memory_space<vmem>>, vector<1x8x32xf32>
    %447 = vector.shape_cast %446 : vector<1x8x32xf32> to vector<8x32xf32>
    %448 = vector.shape_cast %445 : vector<8x32xf32> to vector<1x8x32xf32>
    tpu.vector_store %arg4[%c14_489, %c0_490, %c0_491], %448 {strides = array<i32>} : memref<16x8x32xf32, #tpu.memory_space<vmem>>, vector<1x8x32xf32>,
    %c15_492 = arith.constant 15 : index
    %c0_493 = arith.constant 0 : index
    %c0_494 = arith.constant 0 : index
    %449 = vector.load %arg5[%c15_492, %c0_493, %c0_494] : memref<16x32x32xf32, #tpu.memory_space<vmem>>, vector<1x32x32xf32>
    %450 = vector.shape_cast %449 : vector<1x32x32xf32> to vector<32x32xf32>
    %c0_495 = arith.constant 0 : index
    %c0_496 = arith.constant 0 : index
    %451 = vector.load %arg7[%c0_495, %c0_496] : memref<32x32xf32, #tpu.memory_space<vmem>>, vector<32x32xf32>
    %452 = arith.mulf %450, %451 : vector<32x32xf32>
    %cst_497 = arith.constant dense<0.000000e+00> : vector<8x32xf32>
    %453 = tpu.matmul %1, %452, %cst_497 {dimension_numbers = #tpu.dot_dimension_numbers<[1], [0], [0], [1], [0, 0, 1, 1], [], []>} : vector<8x32xf32>, vector<32x32xf32>, vector<8x32xf32> -> vector<8x32xf32>
    %c15_498 = arith.constant 15 : index
    %c0_499 = arith.constant 0 : index
    %c0_500 = arith.constant 0 : index
    %454 = vector.load %arg4[%c15_498, %c0_499, %c0_500] : memref<16x8x32xf32, #tpu.memory_space<vmem>>, vector<1x8x32xf32>
    %455 = vector.shape_cast %454 : vector<1x8x32xf32> to vector<8x32xf32>
    %456 = vector.shape_cast %453 : vector<8x32xf32> to vector<1x8x32xf32>
    tpu.vector_store %arg4[%c15_498, %c0_499, %c0_500], %456 {strides = array<i32>} : memref<16x8x32xf32, #tpu.memory_space<vmem>>, vector<1x8x32xf32>,
    return
  }
  func.func @transform_0(%arg0: i32) -> (i32, i32) {
    %c0_i32 = arith.constant 0 : i32
    %c0_i32_0 = arith.constant 0 : i32
    %c0_i32_1 = arith.constant 0 : i32
    return %c0_i32, %c0_i32_0 : i32, i32
  }
  func.func @transform_1(%arg0: i32) -> (i32, i32) {
    %c0_i32 = arith.constant 0 : i32
    %c0_i32_0 = arith.constant 0 : i32
    %c0_i32_1 = arith.constant 0 : i32
    return %c0_i32, %c0_i32_0 : i32, i32
  }
  func.func @transform_2(%arg0: i32) -> (i32, i32, i32) {
    %c0_i32 = arith.constant 0 : i32
    %c0_i32_0 = arith.constant 0 : i32
    %c0_i32_1 = arith.constant 0 : i32
    return %c0_i32, %c0_i32_0, %arg0 : i32, i32, i32
  }
  func.func @transform_3(%arg0: i32) -> (i32, i32, i32) {
    %c0_i32 = arith.constant 0 : i32
    %c0_i32_0 = arith.constant 0 : i32
    %c0_i32_1 = arith.constant 0 : i32
    return %c0_i32, %c0_i32_0, %arg0 : i32, i32, i32
  }
}

</mosaic_0001>

<llo_original>
// kernel: tpu_custom_call.1
$region0: #{tpu_custom_call.1}
  #allocation0 [shape = 'u32[]', space=smem, size = 0x4, offset = 0x4, fixed_abs, tag = 'smem constant byte address 0x4 - core index']
  #allocation1 [shape = 'u32[144,128]{1,0:T(1,128)}', space=vmem, size = 0x12000, scoped, tag = 'internal scratch']
  #allocation2 [shape = 'f32[16,32,32]{2,1,0:T(8,128)}', space=vmem, size = 0x40000, scoped, tag = 'scratch operand']
  #allocation3 [shape = 'f32[32,32]{1,0:T(8,128)}', space=vmem, size = 0x4000, scoped, tag = 'scratch operand']
  #allocation4 [shape = 'f32[32,32]{1,0:T(8,128)}', space=vmem, size = 0x4000, scoped, tag = 'scratch operand']
  %s0 = inlined_call_operand.vmem [shape: f32[32,4], index: 0, kind: input, shape index: {}]
  %s1 = inlined_call_operand.vmem [shape: f32[8,32], index: 1, kind: input, shape index: {}]
  %s2 = inlined_call_operand.hbm [shape: f32[16,4,32], index: 2, kind: input, shape index: {}]
  %s3 = inlined_call_operand.hbm [shape: f32[16,8,32], index: 3, kind: output, shape index: {}]
  %s4 = sld [smem:[#allocation0]]
  $region26: #{tpu_custom_call.1} parent=0
    _
  %s6 = ssub.s32 1, %s4
  %s7 = scalar_select 0, %s6, %s4
  $region1: #{tpu_custom_call.1} parent=0
    #allocation5 [shape = 'u8[32768]{0}', space=vmem, size = 0x8000, scoped, tag = 'input window, operand 2, single buffered']
    #allocation6 [shape = 's32[1]{0}', space=sflag, size = 0x4, scoped, tag = 'scoped memory for tpu_custom_call.1']
    #allocation7 [shape = 's32[1]{0}', space=sflag, size = 0x4, scoped, tag = 'scoped memory for tpu_custom_call.1']
    #allocation8 [shape = 'u8[65536]{0}', space=vmem, size = 0x10000, scoped, tag = 'output window, operand 0, single buffered']
    %8 = vsyncpa [#allocation6], 0
    %9 = vsyncpa [#allocation7], 0
    // Predicated region
    $region2: #{tpu_custom_call.1} parent=1 // pred_check
      _
    $region3: #{tpu_custom_call.1} parent=1 // pred_check_branch
      %11 = sbr.rel (0) target = $region5
    $region4: #{tpu_custom_call.1} parent=1 // pred_region
      _
    $region5: #{tpu_custom_call.1} parent=1 // pred_fallthru
      _
    // Predicated region
    $region6: #{tpu_custom_call.1} parent=1 // pred_check
      _
    $region7: #{tpu_custom_call.1} parent=1 // pred_check_branch
      %13 = sbr.rel (0) target = $region9
    $region8: #{tpu_custom_call.1} parent=1 // pred_region
      _
    $region9: #{tpu_custom_call.1} parent=1 // pred_fallthru
      _
    // Predicated region
    $region10: #{tpu_custom_call.1} parent=1 // pred_check
      _
    $region11: #{tpu_custom_call.1} parent=1 // pred_check_branch
      %15 = sbr.rel (0) target = $region13
    $region12: #{tpu_custom_call.1} parent=1 // pred_region
      %s17 = ssub.s32 1024, 1024
      %18 = vsyncadd [#allocation6], %s17
      %s19 = sshll.u32 [#allocation5], 4
      %s20 = int_to_ptr.vmem [resolvable:$true] %s19
      %25 = dma.hbm_to_vmem [thread:$0]  %s2, 1024, %s20, [#allocation6], 64, 64, 4
    $region13: #{tpu_custom_call.1} parent=1 // pred_fallthru
      _
    // Predicated region
    $region14: #{tpu_custom_call.1} parent=1 // pred_check
      _
    $region15: #{tpu_custom_call.1} parent=1 // pred_check_branch
      %27 = sbr.rel (0) target = $region17
    $region16: #{tpu_custom_call.1} parent=1 // pred_region
      %28 = dma.done [#allocation6], 1024
    $region17: #{tpu_custom_call.1} parent=1 // pred_fallthru
      _
    %v29 = vld [vmem:[%s0] sm:$0xff]
    %v30 = vld [vmem:[%s0 + $0x8] sm:$0xff]
    %v31 = vld [vmem:[%s0 + $0x10] sm:$0xff]
    %v32 = vld [vmem:[%s0 + $0x18] sm:$0xff]
    %v33 = vld [vmem:[%s1] sm:$0xff]
    %v34 = vld [vmem:[#allocation5] sm:$0xf]
    %vm35 = vcmask 31744
    %v37 = vsel %vm35, %v29, 0
    %v40 = vsel %vm35, %v30, 0
    %v43 = vsel %vm35, %v31, 0
    %v46 = vsel %vm35, %v32, 0
    %vm48 = vcmask 1043456
    %v50 = vsel %vm48, %v34, 0
    %52 = vmatprep.subr.mxu0 0.0
    %53 = vmatpush1.msra.mxu0 %v50
    %54 = vmatprep.subr.mxu0 0.0
    %55 = vmatpush1.msra.mxu0 0.0
    %56 = vmatprep.subr.mxu0 0.0
    %57 = vmatpush1.msra.mxu0 0.0
    %58 = vmatprep.subr.mxu0 0.0
    %59 = vmatpush1.msra.mxu0 0.0
    %60 = vmatprep.subr.mxu0 0.0
    %61 = vmatpush1.msra.mxu0 0.0
    %62 = vmatprep.subr.mxu0 0.0
    %63 = vmatpush1.msra.mxu0 0.0
    %64 = vmatprep.subr.mxu0 0.0
    %65 = vmatpush1.msra.mxu0 0.0
    %66 = vmatprep.subr.mxu0 0.0
    %67 = vmatpush1.msra.mxu0 0.0
    %68 = vmatprep.subr.mxu0 0.0
    %69 = vmatpush1.msra.mxu0 0.0
    %70 = vmatprep.subr.mxu0 0.0
    %71 = vmatpush1.msra.mxu0 0.0
    %72 = vmatprep.subr.mxu0 0.0
    %73 = vmatpush1.msra.mxu0 0.0
    %74 = vmatprep.subr.mxu0 0.0
    %75 = vmatpush1.msra.mxu0 0.0
    %76 = vmatprep.subr.mxu0 0.0
    %77 = vmatpush1.msra.mxu0 0.0
    %78 = vmatprep.subr.mxu0 0.0
    %79 = vmatpush1.msra.mxu0 0.0
    %80 = vmatprep.subr.mxu0 0.0
    %81 = vmatpush1.msra.mxu0 0.0
    %82 = vmatprep.subr.mxu0 0.0
    %83 = vmatpush1.msra.mxu0 0.0
    %84 = vmatprep.subr.mxu0 0.0
    %85 = vmatpush1.msra.mxu0 0.0
    %86 = vmatprep.subr.mxu0 0.0
    %87 = vmatpush1.msra.mxu0 0.0
    %88 = vmatprep.subr.mxu0 0.0
    %89 = vmatpush1.msra.mxu0 0.0
    %90 = vmatprep.subr.mxu0 0.0
    %91 = vmatpush1.msra.mxu0 0.0
    %92 = vmatprep.subr.mxu0 0.0
    %93 = vmatpush1.msra.mxu0 0.0
    %94 = vmatprep.subr.mxu0 0.0
    %95 = vmatpush1.msra.mxu0 0.0
    %96 = vmatprep.subr.mxu0 0.0
    %97 = vmatpush1.msra.mxu0 0.0
    %98 = vmatprep.subr.mxu0 0.0
    %99 = vmatpush1.msra.mxu0 0.0
    %100 = vmatprep.subr.mxu0 0.0
    %101 = vmatpush1.msra.mxu0 0.0
    %102 = vmatprep.subr.mxu0 0.0
    %103 = vmatpush1.msra.mxu0 0.0
    %104 = vmatprep.subr.mxu0 0.0
    %105 = vmatpush1.msra.mxu0 0.0
    %106 = vmatprep.subr.mxu0 0.0
    %107 = vmatpush1.msra.mxu0 0.0
    %108 = vmatprep.subr.mxu0 0.0
    %109 = vmatpush1.msra.mxu0 0.0
    %110 = vmatprep.subr.mxu0 0.0
    %111 = vmatpush1.msra.mxu0 0.0
    %112 = vmatprep.subr.mxu0 0.0
    %113 = vmatpush1.msra.mxu0 0.0
    %114 = vmatprep.subr.mxu0 0.0
    %115 = vmatpush1.msra.mxu0 0.0
    %116 = vmatprep.mubr.f32.mxu0 0.0
    %117 = vmatmul.mubr.f32.gmra.mrb[0].mxu0 %v37
    %v118 = vpop.f32.mrb[0].mxu0
    %v119 = vadd.f32 0.0, %v118
    %v120 = vpop.f32.mrb[0].mxu0
    %121 = vmatprep.mubr.f32.mxu0 0.0
    %122 = vmatmul.mubr.f32.gmra.mrb[0].mxu0 %v40
    %v123 = vpop.f32.mrb[0].mxu0
    %v124 = vadd.f32 0.0, %v123
    %v125 = vpop.f32.mrb[0].mxu0
    %126 = vmatprep.mubr.f32.mxu0 0.0
    %127 = vmatmul.mubr.f32.gmra.mrb[0].mxu0 %v43
    %v128 = vpop.f32.mrb[0].mxu0
    %v129 = vadd.f32 0.0, %v128
    %v130 = vpop.f32.mrb[0].mxu0
    %131 = vmatprep.mubr.f32.mxu0 0.0
    %132 = vmatmul.mubr.f32.gmra.mrb[0].mxu0 %v46
    %v133 = vpop.f32.mrb[0].mxu0
    %v134 = vadd.f32 0.0, %v133
    %v135 = vpop.f32.mrb[0].mxu0
    %136 = vdwg.mxu0
    %vm137 = vcmask 261120
    %138 = vst.msk [vmem:[#allocation2] sm:$0xff] %vm137, %v119
    %139 = vst.msk [vmem:[#allocation2 + $0x8] sm:$0xff] %vm137, %v124
    %140 = vst.msk [vmem:[#allocation2 + $0x10] sm:$0xff] %vm137, %v129
    %141 = vst.msk [vmem:[#allocation2 + $0x18] sm:$0xff] %vm137, %v134
    %142 = vst.msk [vmem:[#allocation3] sm:$0xff] %vm137, %v119
    %143 = vst.msk [vmem:[#allocation3 + $0x8] sm:$0xff] %vm137, %v124
    %144 = vst.msk [vmem:[#allocation3 + $0x10] sm:$0xff] %vm137, %v129
    %145 = vst.msk [vmem:[#allocation3 + $0x18] sm:$0xff] %vm137, %v134
    %s146 = scalar_lea.vmem [#allocation5], 4
    %v147 = vld [vmem:[%s146] sm:$0xf]
    %v149 = vsel %vm48, %v147, 0
    %151 = vmatprep.subr.mxu0 0.0
    %152 = vmatpush1.msra.mxu0 %v149
    %153 = vmatprep.subr.mxu0 0.0
    %154 = vmatpush1.msra.mxu0 0.0
    %155 = vmatprep.subr.mxu0 0.0
    %156 = vmatpush1.msra.mxu0 0.0
    %157 = vmatprep.subr.mxu0 0.0
    %158 = vmatpush1.msra.mxu0 0.0
    %159 = vmatprep.subr.mxu0 0.0
    %160 = vmatpush1.msra.mxu0 0.0
    %161 = vmatprep.subr.mxu0 0.0
    %162 = vmatpush1.msra.mxu0 0.0
    %163 = vmatprep.subr.mxu0 0.0
    %164 = vmatpush1.msra.mxu0 0.0
    %165 = vmatprep.subr.mxu0 0.0
    %166 = vmatpush1.msra.mxu0 0.0
    %167 = vmatprep.subr.mxu0 0.0
    %168 = vmatpush1.msra.mxu0 0.0
    %169 = vmatprep.subr.mxu0 0.0
    %170 = vmatpush1.msra.mxu0 0.0
    %171 = vmatprep.subr.mxu0 0.0
    %172 = vmatpush1.msra.mxu0 0.0
    %173 = vmatprep.subr.mxu0 0.0
    %174 = vmatpush1.msra.mxu0 0.0
    %175 = vmatprep.subr.mxu0 0.0
    %176 = vmatpush1.msra.mxu0 0.0
    %177 = vmatprep.subr.mxu0 0.0
    %178 = vmatpush1.msra.mxu0 0.0
    %179 = vmatprep.subr.mxu0 0.0
    %180 = vmatpush1.msra.mxu0 0.0
    %181 = vmatprep.subr.mxu0 0.0
    %182 = vmatpush1.msra.mxu0 0.0
    %183 = vmatprep.subr.mxu0 0.0
    %184 = vmatpush1.msra.mxu0 0.0
    %185 = vmatprep.subr.mxu0 0.0
    %186 = vmatpush1.msra.mxu0 0.0
    %187 = vmatprep.subr.mxu0 0.0
    %188 = vmatpush1.msra.mxu0 0.0
    %189 = vmatprep.subr.mxu0 0.0
    %190 = vmatpush1.msra.mxu0 0.0
    %191 = vmatprep.subr.mxu0 0.0
    %192 = vmatpush1.msra.mxu0 0.0
    %193 = vmatprep.subr.mxu0 0.0
    %194 = vmatpush1.msra.mxu0 0.0
    %195 = vmatprep.subr.mxu0 0.0
    %196 = vmatpush1.msra.mxu0 0.0
    %197 = vmatprep.subr.mxu0 0.0
    %198 = vmatpush1.msra.mxu0 0.0
    %199 = vmatprep.subr.mxu0 0.0
    %200 = vmatpush1.msra.mxu0 0.0
    %201 = vmatprep.subr.mxu0 0.0
    %202 = vmatpush1.msra.mxu0 0.0
    %203 = vmatprep.subr.mxu0 0.0
    %204 = vmatpush1.msra.mxu0 0.0
    %205 = vmatprep.subr.mxu0 0.0
    %206 = vmatpush1.msra.mxu0 0.0
    %207 = vmatprep.subr.mxu0 0.0
    %208 = vmatpush1.msra.mxu0 0.0
    %209 = vmatprep.subr.mxu0 0.0
    %210 = vmatpush1.msra.mxu0 0.0
    %211 = vmatprep.subr.mxu0 0.0
    %212 = vmatpush1.msra.mxu0 0.0
    %213 = vmatprep.subr.mxu0 0.0
    %214 = vmatpush1.msra.mxu0 0.0
    %215 = vmatprep.mubr.f32.mxu0 0.0
    %216 = vmatmul.mubr.f32.gmra.mrb[0].mxu0 %v37
    %v217 = vpop.f32.mrb[0].mxu0
    %v218 = vadd.f32 0.0, %v217
    %v219 = vpop.f32.mrb[0].mxu0
    %220 = vmatprep.mubr.f32.mxu0 0.0
    %221 = vmatmul.mubr.f32.gmra.mrb[0].mxu0 %v40
    %v222 = vpop.f32.mrb[0].mxu0
    %v223 = vadd.f32 0.0, %v222
    %v224 = vpop.f32.mrb[0].mxu0
    %225 = vmatprep.mubr.f32.mxu0 0.0
    %226 = vmatmul.mubr.f32.gmra.mrb[0].mxu0 %v43
    %v227 = vpop.f32.mrb[0].mxu0
    %v228 = vadd.f32 0.0, %v227
    %v229 = vpop.f32.mrb[0].mxu0
    %230 = vmatprep.mubr.f32.mxu0 0.0
    %231 = vmatmul.mubr.f32.gmra.mrb[0].mxu0 %v46
    %v232 = vpop.f32.mrb[0].mxu0
    %v233 = vadd.f32 0.0, %v232
    %v234 = vpop.f32.mrb[0].mxu0
    %235 = vdwg.mxu0
    %s236 = scalar_lea.vmem [#allocation2], 32
    %237 = vst.msk [vmem:[%s236] sm:$0xff] %vm137, %v218
    %238 = vst.msk [vmem:[%s236 + $0x8] sm:$0xff] %vm137, %v223
    %239 = vst.msk [vmem:[%s236 + $0x10] sm:$0xff] %vm137, %v228
    %240 = vst.msk [vmem:[%s236 + $0x18] sm:$0xff] %vm137, %v233
    %v241 = vld [vmem:[#allocation3] sm:$0xff]
    %v242 = vld [vmem:[#allocation3 + $0x8] sm:$0xff]
    %v243 = vld [vmem:[#allocation3 + $0x10] sm:$0xff]
    %v244 = vld [vmem:[#allocation3 + $0x18] sm:$0xff]
    %v245 = vmax.f32 %v241, %v218
    %v246 = vmax.f32 %v242, %v223
    %v247 = vmax.f32 %v243, %v228
    %v248 = vmax.f32 %v244, %v233
    %249 = vst.msk [vmem:[#allocation3] sm:$0xff] %vm137, %v245
    %250 = vst.msk [vmem:[#allocation3 + $0x8] sm:$0xff] %vm137, %v246
    %251 = vst.msk [vmem:[#allocation3 + $0x10] sm:$0xff] %vm137, %v247
    %252 = vst.msk [vmem:[#allocation3 + $0x18] sm:$0xff] %vm137, %v248
    %s253 = scalar_lea.vmem [#allocation5], 8
    %v254 = vld [vmem:[%s253] sm:$0xf]
    %v256 = vsel %vm48, %v254, 0
    %258 = vmatprep.subr.mxu0 0.0
    %259 = vmatpush1.msra.mxu0 %v256
    %260 = vmatprep.subr.mxu0 0.0
    %261 = vmatpush1.msra.mxu0 0.0
    %262 = vmatprep.subr.mxu0 0.0
    %263 = vmatpush1.msra.mxu0 0.0
    %264 = vmatprep.subr.mxu0 0.0
    %265 = vmatpush1.msra.mxu0 0.0
    %266 = vmatprep.subr.mxu0 0.0
    %267 = vmatpush1.msra.mxu0 0.0
    %268 = vmatprep.subr.mxu0 0.0
    %269 = vmatpush1.msra.mxu0 0.0
    %270 = vmatprep.subr.mxu0 0.0
    %271 = vmatpush1.msra.mxu0 0.0
    %272 = vmatprep.subr.mxu0 0.0
    %273 = vmatpush1.msra.mxu0 0.0
    %274 = vmatprep.subr.mxu0 0.0
    %275 = vmatpush1.msra.mxu0 0.0
    %276 = vmatprep.subr.mxu0 0.0
    %277 = vmatpush1.msra.mxu0 0.0
    %278 = vmatprep.subr.mxu0 0.0
    %279 = vmatpush1.msra.mxu0 0.0
    %280 = vmatprep.subr.mxu0 0.0
    %281 = vmatpush1.msra.mxu0 0.0
    %282 = vmatprep.subr.mxu0 0.0
    %283 = vmatpush1.msra.mxu0 0.0
    %284 = vmatprep.subr.mxu0 0.0
    %285 = vmatpush1.msra.mxu0 0.0
    %286 = vmatprep.subr.mxu0 0.0
    %287 = vmatpush1.msra.mxu0 0.0
    %288 = vmatprep.subr.mxu0 0.0
    %289 = vmatpush1.msra.mxu0 0.0
    %290 = vmatprep.subr.mxu0 0.0
    %291 = vmatpush1.msra.mxu0 0.0
    %292 = vmatprep.subr.mxu0 0.0
    %293 = vmatpush1.msra.mxu0 0.0
    %294 = vmatprep.subr.mxu0 0.0
    %295 = vmatpush1.msra.mxu0 0.0
    %296 = vmatprep.subr.mxu0 0.0
    %297 = vmatpush1.msra.mxu0 0.0
    %298 = vmatprep.subr.mxu0 0.0
    %299 = vmatpush1.msra.mxu0 0.0
    %300 = vmatprep.subr.mxu0 0.0
    %301 = vmatpush1.msra.mxu0 0.0
    %302 = vmatprep.subr.mxu0 0.0
    %303 = vmatpush1.msra.mxu0 0.0
    %304 = vmatprep.subr.mxu0 0.0
    %305 = vmatpush1.msra.mxu0 0.0
    %306 = vmatprep.subr.mxu0 0.0
    %307 = vmatpush1.msra.mxu0 0.0
    %308 = vmatprep.subr.mxu0 0.0
    %309 = vmatpush1.msra.mxu0 0.0
    %310 = vmatprep.subr.mxu0 0.0
    %311 = vmatpush1.msra.mxu0 0.0
    %312 = vmatprep.subr.mxu0 0.0
    %313 = vmatpush1.msra.mxu0 0.0
    %314 = vmatprep.subr.mxu0 0.0
    %315 = vmatpush1.msra.mxu0 0.0
    %316 = vmatprep.subr.mxu0 0.0
    %317 = vmatpush1.msra.mxu0 0.0
    %318 = vmatprep.subr.mxu0 0.0
    %319 = vmatpush1.msra.mxu0 0.0
    %320 = vmatprep.subr.mxu0 0.0
    %321 = vmatpush1.msra.mxu0 0.0
    %322 = vmatprep.mubr.f32.mxu0 0.0
    %323 = vmatmul.mubr.f32.gmra.mrb[0].mxu0 %v37
    %v324 = vpop.f32.mrb[0].mxu0
    %v325 = vadd.f32 0.0, %v324
    %v326 = vpop.f32.mrb[0].mxu0
    %327 = vmatprep.mubr.f32.mxu0 0.0
    %328 = vmatmul.mubr.f32.gmra.mrb[0].mxu0 %v40
    %v329 = vpop.f32.mrb[0].mxu0
    %v330 = vadd.f32 0.0, %v329
    %v331 = vpop.f32.mrb[0].mxu0
    %332 = vmatprep.mubr.f32.mxu0 0.0
    %333 = vmatmul.mubr.f32.gmra.mrb[0].mxu0 %v43
    %v334 = vpop.f32.mrb[0].mxu0
    %v335 = vadd.f32 0.0, %v334
    %v336 = vpop.f32.mrb[0].mxu0
    %337 = vmatprep.mubr.f32.mxu0 0.0
    %338 = vmatmul.mubr.f32.gmra.mrb[0].mxu0 %v46
    %v339 = vpop.f32.mrb[0].mxu0
    %v340 = vadd.f32 0.0, %v339
    %v341 = vpop.f32.mrb[0].mxu0
    %342 = vdwg.mxu0
    %s343 = scalar_lea.vmem [#allocation2], 64
    %344 = vst.msk [vmem:[%s343] sm:$0xff] %vm137, %v325
    %345 = vst.msk [vmem:[%s343 + $0x8] sm:$0xff] %vm137, %v330
    %346 = vst.msk [vmem:[%s343 + $0x10] sm:$0xff] %vm137, %v335
    %347 = vst.msk [vmem:[%s343 + $0x18] sm:$0xff] %vm137, %v340
    %v348 = vld [vmem:[#allocation3] sm:$0xff]
    %v349 = vld [vmem:[#allocation3 + $0x8] sm:$0xff]
    %v350 = vld [vmem:[#allocation3 + $0x10] sm:$0xff]
    %v351 = vld [vmem:[#allocation3 + $0x18] sm:$0xff]
    %v352 = vmax.f32 %v348, %v325
    %v353 = vmax.f32 %v349, %v330
    %v354 = vmax.f32 %v350, %v335
    %v355 = vmax.f32 %v351, %v340
    %356 = vst.msk [vmem:[#allocation3] sm:$0xff] %vm137, %v352
    %357 = vst.msk [vmem:[#allocation3 + $0x8] sm:$0xff] %vm137, %v353
    %358 = vst.msk [vmem:[#allocation3 + $0x10] sm:$0xff] %vm137, %v354
    %359 = vst.msk [vmem:[#allocation3 + $0x18] sm:$0xff] %vm137, %v355
    %s360 = scalar_lea.vmem [#allocation5], 12
    %v361 = vld [vmem:[%s360] sm:$0xf]
    %v363 = vsel %vm48, %v361, 0
    %365 = vmatprep.subr.mxu0 0.0
    %366 = vmatpush1.msra.mxu0 %v363
    %367 = vmatprep.subr.mxu0 0.0
    %368 = vmatpush1.msra.mxu0 0.0
    %369 = vmatprep.subr.mxu0 0.0
    %370 = vmatpush1.msra.mxu0 0.0
    %371 = vmatprep.subr.mxu0 0.0
    %372 = vmatpush1.msra.mxu0 0.0
    %373 = vmatprep.subr.mxu0 0.0
    %374 = vmatpush1.msra.mxu0 0.0
    %375 = vmatprep.subr.mxu0 0.0
    %376 = vmatpush1.msra.mxu0 0.0
    %377 = vmatprep.subr.mxu0 0.0
    %378 = vmatpush1.msra.mxu0 0.0
    %379 = vmatprep.subr.mxu0 0.0
    %380 = vmatpush1.msra.mxu0 0.0
    %381 = vmatprep.subr.mxu0 0.0
    %382 = vmatpush1.msra.mxu0 0.0
    %383 = vmatprep.subr.mxu0 0.0
    %384 = vmatpush1.msra.mxu0 0.0
    %385 = vmatprep.subr.mxu0 0.0
    %386 = vmatpush1.msra.mxu0 0.0
    %387 = vmatprep.subr.mxu0 0.0
    %388 = vmatpush1.msra.mxu0 0.0
    %389 = vmatprep.subr.mxu0 0.0
    %390 = vmatpush1.msra.mxu0 0.0
    %391 = vmatprep.subr.mxu0 0.0
    %392 = vmatpush1.msra.mxu0 0.0
    %393 = vmatprep.subr.mxu0 0.0
    %394 = vmatpush1.msra.mxu0 0.0
    %395 = vmatprep.subr.mxu0 0.0
    %396 = vmatpush1.msra.mxu0 0.0
    %397 = vmatprep.subr.mxu0 0.0
    %398 = vmatpush1.msra.mxu0 0.0
    %399 = vmatprep.subr.mxu0 0.0
    %400 = vmatpush1.msra.mxu0 0.0
    %401 = vmatprep.subr.mxu0 0.0
    %402 = vmatpush1.msra.mxu0 0.0
    %403 = vmatprep.subr.mxu0 0.0
    %404 = vmatpush1.msra.mxu0 0.0
    %405 = vmatprep.subr.mxu0 0.0
    %406 = vmatpush1.msra.mxu0 0.0
    %407 = vmatprep.subr.mxu0 0.0
    %408 = vmatpush1.msra.mxu0 0.0
    %409 = vmatprep.subr.mxu0 0.0
    %410 = vmatpush1.msra.mxu0 0.0
    %411 = vmatprep.subr.mxu0 0.0
    %412 = vmatpush1.msra.mxu0 0.0
    %413 = vmatprep.subr.mxu0 0.0
    %414 = vmatpush1.msra.mxu0 0.0
    %415 = vmatprep.subr.mxu0 0.0
    %416 = vmatpush1.msra.mxu0 0.0
    %417 = vmatprep.subr.mxu0 0.0
    %418 = vmatpush1.msra.mxu0 0.0
    %419 = vmatprep.subr.mxu0 0.0
    %420 = vmatpush1.msra.mxu0 0.0
    %421 = vmatprep.subr.mxu0 0.0
    %422 = vmatpush1.msra.mxu0 0.0
    %423 = vmatprep.subr.mxu0 0.0
    %424 = vmatpush1.msra.mxu0 0.0
    %425 = vmatprep.subr.mxu0 0.0
    %426 = vmatpush1.msra.mxu0 0.0
    %427 = vmatprep.subr.mxu0 0.0
    %428 = vmatpush1.msra.mxu0 0.0
    %429 = vmatprep.mubr.f32.mxu0 0.0
    %430 = vmatmul.mubr.f32.gmra.mrb[0].mxu0 %v37
    %v431 = vpop.f32.mrb[0].mxu0
    %v432 = vadd.f32 0.0, %v431
    %v433 = vpop.f32.mrb[0].mxu0
    %434 = vmatprep.mubr.f32.mxu0 0.0
    %435 = vmatmul.mubr.f32.gmra.mrb[0].mxu0 %v40
    %v436 = vpop.f32.mrb[0].mxu0
    %v437 = vadd.f32 0.0, %v436
    %v438 = vpop.f32.mrb[0].mxu0
    %439 = vmatprep.mubr.f32.mxu0 0.0
    %440 = vmatmul.mubr.f32.gmra.mrb[0].mxu0 %v43
    %v441 = vpop.f32.mrb[0].mxu0
    %v442 = vadd.f32 0.0, %v441
    %v443 = vpop.f32.mrb[0].mxu0
    %444 = vmatprep.mubr.f32.mxu0 0.0
    %445 = vmatmul.mubr.f32.gmra.mrb[0].mxu0 %v46
    %v446 = vpop.f32.mrb[0].mxu0
    %v447 = vadd.f32 0.0, %v446
    %v448 = vpop.f32.mrb[0].mxu0
    %449 = vdwg.mxu0
    %s450 = scalar_lea.vmem [#allocation2], 96
    %451 = vst.msk [vmem:[%s450] sm:$0xff] %vm137, %v432
    %452 = vst.msk [vmem:[%s450 + $0x8] sm:$0xff] %vm137, %v437
    %453 = vst.msk [vmem:[%s450 + $0x10] sm:$0xff] %vm137, %v442
    %454 = vst.msk [vmem:[%s450 + $0x18] sm:$0xff] %vm137, %v447
    %v455 = vld [vmem:[#allocation3] sm:$0xff]
    %v456 = vld [vmem:[#allocation3 + $0x8] sm:$0xff]
    %v457 = vld [vmem:[#allocation3 + $0x10] sm:$0xff]
    %v458 = vld [vmem:[#allocation3 + $0x18] sm:$0xff]
    %v459 = vmax.f32 %v455, %v432
    %v460 = vmax.f32 %v456, %v437
    %v461 = vmax.f32 %v457, %v442
    %v462 = vmax.f32 %v458, %v447
    %463 = vst.msk [vmem:[#allocation3] sm:$0xff] %vm137, %v459
    %464 = vst.msk [vmem:[#allocation3 + $0x8] sm:$0xff] %vm137, %v460
    %465 = vst.msk [vmem:[#allocation3 + $0x10] sm:$0xff] %vm137, %v461
    %466 = vst.msk [vmem:[#allocation3 + $0x18] sm:$0xff] %vm137, %v462
    %s467 = scalar_lea.vmem [#allocation5], 16
    %v468 = vld [vmem:[%s467] sm:$0xf]
    %v470 = vsel %vm48, %v468, 0
    %472 = vmatprep.subr.mxu0 0.0
    %473 = vmatpush1.msra.mxu0 %v470
    %474 = vmatprep.subr.mxu0 0.0
    %475 = vmatpush1.msra.mxu0 0.0
    %476 = vmatprep.subr.mxu0 0.0
    %477 = vmatpush1.msra.mxu0 0.0
    %478 = vmatprep.subr.mxu0 0.0
    %479 = vmatpush1.msra.mxu0 0.0
    %480 = vmatprep.subr.mxu0 0.0
    %481 = vmatpush1.msra.mxu0 0.0
    %482 = vmatprep.subr.mxu0 0.0
    %483 = vmatpush1.msra.mxu0 0.0
    %484 = vmatprep.subr.mxu0 0.0
    %485 = vmatpush1.msra.mxu0 0.0
    %486 = vmatprep.subr.mxu0 0.0
    %487 = vmatpush1.msra.mxu0 0.0
    %488 = vmatprep.subr.mxu0 0.0
    %489 = vmatpush1.msra.mxu0 0.0
    %490 = vmatprep.subr.mxu0 0.0
    %491 = vmatpush1.msra.mxu0 0.0
    %492 = vmatprep.subr.mxu0 0.0
    %493 = vmatpush1.msra.mxu0 0.0
    %494 = vmatprep.subr.mxu0 0.0
    %495 = vmatpush1.msra.mxu0 0.0
    %496 = vmatprep.subr.mxu0 0.0
    %497 = vmatpush1.msra.mxu0 0.0
    %498 = vmatprep.subr.mxu0 0.0
    %499 = vmatpush1.msra.mxu0 0.0
    %500 = vmatprep.subr.mxu0 0.0
    %501 = vmatpush1.msra.mxu0 0.0
    %502 = vmatprep.subr.mxu0 0.0
    %503 = vmatpush1.msra.mxu0 0.0
    %504 = vmatprep.subr.mxu0 0.0
    %505 = vmatpush1.msra.mxu0 0.0
    %506 = vmatprep.subr.mxu0 0.0
    %507 = vmatpush1.msra.mxu0 0.0
    %508 = vmatprep.subr.mxu0 0.0
    %509 = vmatpush1.msra.mxu0 0.0
    %510 = vmatprep.subr.mxu0 0.0
    %511 = vmatpush1.msra.mxu0 0.0
    %512 = vmatprep.subr.mxu0 0.0
    %513 = vmatpush1.msra.mxu0 0.0
    %514 = vmatprep.subr.mxu0 0.0
    %515 = vmatpush1.msra.mxu0 0.0
    %516 = vmatprep.subr.mxu0 0.0
    %517 = vmatpush1.msra.mxu0 0.0
    %518 = vmatprep.subr.mxu0 0.0
    %519 = vmatpush1.msra.mxu0 0.0
    %520 = vmatprep.subr.mxu0 0.0
    %521 = vmatpush1.msra.mxu0 0.0
    %522 = vmatprep.subr.mxu0 0.0
    %523 = vmatpush1.msra.mxu0 0.0
    %524 = vmatprep.subr.mxu0 0.0
    %525 = vmatpush1.msra.mxu0 0.0
    %526 = vmatprep.subr.mxu0 0.0
    %527 = vmatpush1.msra.mxu0 0.0
    %528 = vmatprep.subr.mxu0 0.0
    %529 = vmatpush1.msra.mxu0 0.0
    %530 = vmatprep.subr.mxu0 0.0
    %531 = vmatpush1.msra.mxu0 0.0
    %532 = vmatprep.subr.mxu0 0.0
    %533 = vmatpush1.msra.mxu0 0.0
    %534 = vmatprep.subr.mxu0 0.0
    %535 = vmatpush1.msra.mxu0 0.0
    %536 = vmatprep.mubr.f32.mxu0 0.0
    %537 = vmatmul.mubr.f32.gmra.mrb[0].mxu0 %v37
    %v538 = vpop.f32.mrb[0].mxu0
    %v539 = vadd.f32 0.0, %v538
    %v540 = vpop.f32.mrb[0].mxu0
    %541 = vmatprep.mubr.f32.mxu0 0.0
    %542 = vmatmul.mubr.f32.gmra.mrb[0].mxu0 %v40
    %v543 = vpop.f32.mrb[0].mxu0
    %v544 = vadd.f32 0.0, %v543
    %v545 = vpop.f32.mrb[0].mxu0
    %546 = vmatprep.mubr.f32.mxu0 0.0
    %547 = vmatmul.mubr.f32.gmra.mrb[0].mxu0 %v43
    %v548 = vpop.f32.mrb[0].mxu0
    %v549 = vadd.f32 0.0, %v548
    %v550 = vpop.f32.mrb[0].mxu0
    %551 = vmatprep.mubr.f32.mxu0 0.0
    %552 = vmatmul.mubr.f32.gmra.mrb[0].mxu0 %v46
    %v553 = vpop.f32.mrb[0].mxu0
    %v554 = vadd.f32 0.0, %v553
    %v555 = vpop.f32.mrb[0].mxu0
    %556 = vdwg.mxu0
    %s557 = scalar_lea.vmem [#allocation2], 128
    %558 = vst.msk [vmem:[%s557] sm:$0xff] %vm137, %v539
    %559 = vst.msk [vmem:[%s557 + $0x8] sm:$0xff] %vm137, %v544
    %560 = vst.msk [vmem:[%s557 + $0x10] sm:$0xff] %vm137, %v549
    %561 = vst.msk [vmem:[%s557 + $0x18] sm:$0xff] %vm137, %v554
    %v562 = vld [vmem:[#allocation3] sm:$0xff]
    %v563 = vld [vmem:[#allocation3 + $0x8] sm:$0xff]
    %v564 = vld [vmem:[#allocation3 + $0x10] sm:$0xff]
    %v565 = vld [vmem:[#allocation3 + $0x18] sm:$0xff]
    %v566 = vmax.f32 %v562, %v539
    %v567 = vmax.f32 %v563, %v544
    %v568 = vmax.f32 %v564, %v549
    %v569 = vmax.f32 %v565, %v554
    %570 = vst.msk [vmem:[#allocation3] sm:$0xff] %vm137, %v566
    %571 = vst.msk [vmem:[#allocation3 + $0x8] sm:$0xff] %vm137, %v567
    %572 = vst.msk [vmem:[#allocation3 + $0x10] sm:$0xff] %vm137, %v568
    %573 = vst.msk [vmem:[#allocation3 + $0x18] sm:$0xff] %vm137, %v569
    %s574 = scalar_lea.vmem [#allocation5], 20
    %v575 = vld [vmem:[%s574] sm:$0xf]
    %v577 = vsel %vm48, %v575, 0
    %579 = vmatprep.subr.mxu0 0.0
    %580 = vmatpush1.msra.mxu0 %v577
    %581 = vmatprep.subr.mxu0 0.0
    %582 = vmatpush1.msra.mxu0 0.0
    %583 = vmatprep.subr.mxu0 0.0
    %584 = vmatpush1.msra.mxu0 0.0
    %585 = vmatprep.subr.mxu0 0.0
    %586 = vmatpush1.msra.mxu0 0.0
    %587 = vmatprep.subr.mxu0 0.0
    %588 = vmatpush1.msra.mxu0 0.0
    %589 = vmatprep.subr.mxu0 0.0
    %590 = vmatpush1.msra.mxu0 0.0
    %591 = vmatprep.subr.mxu0 0.0
    %592 = vmatpush1.msra.mxu0 0.0
    %593 = vmatprep.subr.mxu0 0.0
    %594 = vmatpush1.msra.mxu0 0.0
    %595 = vmatprep.subr.mxu0 0.0
    %596 = vmatpush1.msra.mxu0 0.0
    %597 = vmatprep.subr.mxu0 0.0
    %598 = vmatpush1.msra.mxu0 0.0
    %599 = vmatprep.subr.mxu0 0.0
    %600 = vmatpush1.msra.mxu0 0.0
    %601 = vmatprep.subr.mxu0 0.0
    %602 = vmatpush1.msra.mxu0 0.0
    %603 = vmatprep.subr.mxu0 0.0
    %604 = vmatpush1.msra.mxu0 0.0
    %605 = vmatprep.subr.mxu0 0.0
    %606 = vmatpush1.msra.mxu0 0.0
    %607 = vmatprep.subr.mxu0 0.0
    %608 = vmatpush1.msra.mxu0 0.0
    %609 = vmatprep.subr.mxu0 0.0
    %610 = vmatpush1.msra.mxu0 0.0
    %611 = vmatprep.subr.mxu0 0.0
    %612 = vmatpush1.msra.mxu0 0.0
    %613 = vmatprep.subr.mxu0 0.0
    %614 = vmatpush1.msra.mxu0 0.0
    %615 = vmatprep.subr.mxu0 0.0
    %616 = vmatpush1.msra.mxu0 0.0
    %617 = vmatprep.subr.mxu0 0.0
    %618 = vmatpush1.msra.mxu0 0.0
    %619 = vmatprep.subr.mxu0 0.0
    %620 = vmatpush1.msra.mxu0 0.0
    %621 = vmatprep.subr.mxu0 0.0
    %622 = vmatpush1.msra.mxu0 0.0
    %623 = vmatprep.subr.mxu0 0.0
    %624 = vmatpush1.msra.mxu0 0.0
    %625 = vmatprep.subr.mxu0 0.0
    %626 = vmatpush1.msra.mxu0 0.0
    %627 = vmatprep.subr.mxu0 0.0
    %628 = vmatpush1.msra.mxu0 0.0
    %629 = vmatprep.subr.mxu0 0.0
    %630 = vmatpush1.msra.mxu0 0.0
    %631 = vmatprep.subr.mxu0 0.0
    %632 = vmatpush1.msra.mxu0 0.0
    %633 = vmatprep.subr.mxu0 0.0
    %634 = vmatpush1.msra.mxu0 0.0
    %635 = vmatprep.subr.mxu0 0.0
    %636 = vmatpush1.msra.mxu0 0.0
    %637 = vmatprep.subr.mxu0 0.0
    %638 = vmatpush1.msra.mxu0 0.0
    %639 = vmatprep.subr.mxu0 0.0
    %640 = vmatpush1.msra.mxu0 0.0
    %641 = vmatprep.subr.mxu0 0.0
    %642 = vmatpush1.msra.mxu0 0.0
    %643 = vmatprep.mubr.f32.mxu0 0.0
    %644 = vmatmul.mubr.f32.gmra.mrb[0].mxu0 %v37
    %v645 = vpop.f32.mrb[0].mxu0
    %v646 = vadd.f32 0.0, %v645
    %v647 = vpop.f32.mrb[0].mxu0
    %648 = vmatprep.mubr.f32.mxu0 0.0
    %649 = vmatmul.mubr.f32.gmra.mrb[0].mxu0 %v40
    %v650 = vpop.f32.mrb[0].mxu0
    %v651 = vadd.f32 0.0, %v650
    %v652 = vpop.f32.mrb[0].mxu0
    %653 = vmatprep.mubr.f32.mxu0 0.0
    %654 = vmatmul.mubr.f32.gmra.mrb[0].mxu0 %v43
    %v655 = vpop.f32.mrb[0].mxu0
    %v656 = vadd.f32 0.0, %v655
    %v657 = vpop.f32.mrb[0].mxu0
    %658 = vmatprep.mubr.f32.mxu0 0.0
    %659 = vmatmul.mubr.f32.gmra.mrb[0].mxu0 %v46
    %v660 = vpop.f32.mrb[0].mxu0
    %v661 = vadd.f32 0.0, %v660
    %v662 = vpop.f32.mrb[0].mxu0
    %663 = vdwg.mxu0
    %s664 = scalar_lea.vmem [#allocation2], 160
    %665 = vst.msk [vmem:[%s664] sm:$0xff] %vm137, %v646
    %666 = vst.msk [vmem:[%s664 + $0x8] sm:$0xff] %vm137, %v651
    %667 = vst.msk [vmem:[%s664 + $0x10] sm:$0xff] %vm137, %v656
    %668 = vst.msk [vmem:[%s664 + $0x18] sm:$0xff] %vm137, %v661
    %v669 = vld [vmem:[#allocation3] sm:$0xff]
    %v670 = vld [vmem:[#allocation3 + $0x8] sm:$0xff]
    %v671 = vld [vmem:[#allocation3 + $0x10] sm:$0xff]
    %v672 = vld [vmem:[#allocation3 + $0x18] sm:$0xff]
    %v673 = vmax.f32 %v669, %v646
    %v674 = vmax.f32 %v670, %v651
    %v675 = vmax.f32 %v671, %v656
    %v676 = vmax.f32 %v672, %v661
    %677 = vst.msk [vmem:[#allocation3] sm:$0xff] %vm137, %v673
    %678 = vst.msk [vmem:[#allocation3 + $0x8] sm:$0xff] %vm137, %v674
    %679 = vst.msk [vmem:[#allocation3 + $0x10] sm:$0xff] %vm137, %v675
    %680 = vst.msk [vmem:[#allocation3 + $0x18] sm:$0xff] %vm137, %v676
    %s681 = scalar_lea.vmem [#allocation5], 24
    %v682 = vld [vmem:[%s681] sm:$0xf]
    %v684 = vsel %vm48, %v682, 0
    %686 = vmatprep.subr.mxu0 0.0
    %687 = vmatpush1.msra.mxu0 %v684
    %688 = vmatprep.subr.mxu0 0.0
    %689 = vmatpush1.msra.mxu0 0.0
    %690 = vmatprep.subr.mxu0 0.0
    %691 = vmatpush1.msra.mxu0 0.0
    %692 = vmatprep.subr.mxu0 0.0
    %693 = vmatpush1.msra.mxu0 0.0
    %694 = vmatprep.subr.mxu0 0.0
    %695 = vmatpush1.msra.mxu0 0.0
    %696 = vmatprep.subr.mxu0 0.0
    %697 = vmatpush1.msra.mxu0 0.0
    %698 = vmatprep.subr.mxu0 0.0
    %699 = vmatpush1.msra.mxu0 0.0
    %700 = vmatprep.subr.mxu0 0.0
    %701 = vmatpush1.msra.mxu0 0.0
    %702 = vmatprep.subr.mxu0 0.0
    %703 = vmatpush1.msra.mxu0 0.0
    %704 = vmatprep.subr.mxu0 0.0
    %705 = vmatpush1.msra.mxu0 0.0
    %706 = vmatprep.subr.mxu0 0.0
    %707 = vmatpush1.msra.mxu0 0.0
    %708 = vmatprep.subr.mxu0 0.0
    %709 = vmatpush1.msra.mxu0 0.0
    %710 = vmatprep.subr.mxu0 0.0
    %711 = vmatpush1.msra.mxu0 0.0
    %712 = vmatprep.subr.mxu0 0.0
    %713 = vmatpush1.msra.mxu0 0.0
    %714 = vmatprep.subr.mxu0 0.0
    %715 = vmatpush1.msra.mxu0 0.0
    %716 = vmatprep.subr.mxu0 0.0
    %717 = vmatpush1.msra.mxu0 0.0
    %718 = vmatprep.subr.mxu0 0.0
    %719 = vmatpush1.msra.mxu0 0.0
    %720 = vmatprep.subr.mxu0 0.0
    %721 = vmatpush1.msra.mxu0 0.0
    %722 = vmatprep.subr.mxu0 0.0
    %723 = vmatpush1.msra.mxu0 0.0
    %724 = vmatprep.subr.mxu0 0.0
    %725 = vmatpush1.msra.mxu0 0.0
    %726 = vmatprep.subr.mxu0 0.0
    %727 = vmatpush1.msra.mxu0 0.0
    %728 = vmatprep.subr.mxu0 0.0
    %729 = vmatpush1.msra.mxu0 0.0
    %730 = vmatprep.subr.mxu0 0.0
    %731 = vmatpush1.msra.mxu0 0.0
    %732 = vmatprep.subr.mxu0 0.0
    %733 = vmatpush1.msra.mxu0 0.0
    %734 = vmatprep.subr.mxu0 0.0
    %735 = vmatpush1.msra.mxu0 0.0
    %736 = vmatprep.subr.mxu0 0.0
    %737 = vmatpush1.msra.mxu0 0.0
    %738 = vmatprep.subr.mxu0 0.0
    %739 = vmatpush1.msra.mxu0 0.0
    %740 = vmatprep.subr.mxu0 0.0
    %741 = vmatpush1.msra.mxu0 0.0
    %742 = vmatprep.subr.mxu0 0.0
    %743 = vmatpush1.msra.mxu0 0.0
    %744 = vmatprep.subr.mxu0 0.0
    %745 = vmatpush1.msra.mxu0 0.0
    %746 = vmatprep.subr.mxu0 0.0
    %747 = vmatpush1.msra.mxu0 0.0
    %748 = vmatprep.subr.mxu0 0.0
    %749 = vmatpush1.msra.mxu0 0.0
    %750 = vmatprep.mubr.f32.mxu0 0.0
    %751 = vmatmul.mubr.f32.gmra.mrb[0].mxu0 %v37
    %v752 = vpop.f32.mrb[0].mxu0
    %v753 = vadd.f32 0.0, %v752
    %v754 = vpop.f32.mrb[0].mxu0
    %755 = vmatprep.mubr.f32.mxu0 0.0
    %756 = vmatmul.mubr.f32.gmra.mrb[0].mxu0 %v40
    %v757 = vpop.f32.mrb[0].mxu0
    %v758 = vadd.f32 0.0, %v757
    %v759 = vpop.f32.mrb[0].mxu0
    %760 = vmatprep.mubr.f32.mxu0 0.0
    %761 = vmatmul.mubr.f32.gmra.mrb[0].mxu0 %v43
    %v762 = vpop.f32.mrb[0].mxu0
    %v763 = vadd.f32 0.0, %v762
    %v764 = vpop.f32.mrb[0].mxu0
    %765 = vmatprep.mubr.f32.mxu0 0.0
    %766 = vmatmul.mubr.f32.gmra.mrb[0].mxu0 %v46
    %v767 = vpop.f32.mrb[0].mxu0
    %v768 = vadd.f32 0.0, %v767
    %v769 = vpop.f32.mrb[0].mxu0
    %770 = vdwg.mxu0
    %s771 = scalar_lea.vmem [#allocation2], 192
    %772 = vst.msk [vmem:[%s771] sm:$0xff] %vm137, %v753
    %773 = vst.msk [vmem:[%s771 + $0x8] sm:$0xff] %vm137, %v758
    %774 = vst.msk [vmem:[%s771 + $0x10] sm:$0xff] %vm137, %v763
    %775 = vst.msk [vmem:[%s771 + $0x18] sm:$0xff] %vm137, %v768
    %v776 = vld [vmem:[#allocation3] sm:$0xff]
    %v777 = vld [vmem:[#allocation3 + $0x8] sm:$0xff]
    %v778 = vld [vmem:[#allocation3 + $0x10] sm:$0xff]
    %v779 = vld [vmem:[#allocation3 + $0x18] sm:$0xff]
    %v780 = vmax.f32 %v776, %v753
    %v781 = vmax.f32 %v777, %v758
    %v782 = vmax.f32 %v778, %v763
    %v783 = vmax.f32 %v779, %v768
    %784 = vst.msk [vmem:[#allocation3] sm:$0xff] %vm137, %v780
    %785 = vst.msk [vmem:[#allocation3 + $0x8] sm:$0xff] %vm137, %v781
    %786 = vst.msk [vmem:[#allocation3 + $0x10] sm:$0xff] %vm137, %v782
    %787 = vst.msk [vmem:[#allocation3 + $0x18] sm:$0xff] %vm137, %v783
    %s788 = scalar_lea.vmem [#allocation5], 28
    %v789 = vld [vmem:[%s788] sm:$0xf]
    %v791 = vsel %vm48, %v789, 0
    %793 = vmatprep.subr.mxu0 0.0
    %794 = vmatpush1.msra.mxu0 %v791
    %795 = vmatprep.subr.mxu0 0.0
    %796 = vmatpush1.msra.mxu0 0.0
    %797 = vmatprep.subr.mxu0 0.0
    %798 = vmatpush1.msra.mxu0 0.0
    %799 = vmatprep.subr.mxu0 0.0
    %800 = vmatpush1.msra.mxu0 0.0
    %801 = vmatprep.subr.mxu0 0.0
    %802 = vmatpush1.msra.mxu0 0.0
    %803 = vmatprep.subr.mxu0 0.0
    %804 = vmatpush1.msra.mxu0 0.0
    %805 = vmatprep.subr.mxu0 0.0
    %806 = vmatpush1.msra.mxu0 0.0
    %807 = vmatprep.subr.mxu0 0.0
    %808 = vmatpush1.msra.mxu0 0.0
    %809 = vmatprep.subr.mxu0 0.0
    %810 = vmatpush1.msra.mxu0 0.0
    %811 = vmatprep.subr.mxu0 0.0
    %812 = vmatpush1.msra.mxu0 0.0
    %813 = vmatprep.subr.mxu0 0.0
    %814 = vmatpush1.msra.mxu0 0.0
    %815 = vmatprep.subr.mxu0 0.0
    %816 = vmatpush1.msra.mxu0 0.0
    %817 = vmatprep.subr.mxu0 0.0
    %818 = vmatpush1.msra.mxu0 0.0
    %819 = vmatprep.subr.mxu0 0.0
    %820 = vmatpush1.msra.mxu0 0.0
    %821 = vmatprep.subr.mxu0 0.0
    %822 = vmatpush1.msra.mxu0 0.0
    %823 = vmatprep.subr.mxu0 0.0
    %824 = vmatpush1.msra.mxu0 0.0
    %825 = vmatprep.subr.mxu0 0.0
    %826 = vmatpush1.msra.mxu0 0.0
    %827 = vmatprep.subr.mxu0 0.0
    %828 = vmatpush1.msra.mxu0 0.0
    %829 = vmatprep.subr.mxu0 0.0
    %830 = vmatpush1.msra.mxu0 0.0
    %831 = vmatprep.subr.mxu0 0.0
    %832 = vmatpush1.msra.mxu0 0.0
    %833 = vmatprep.subr.mxu0 0.0
    %834 = vmatpush1.msra.mxu0 0.0
    %835 = vmatprep.subr.mxu0 0.0
    %836 = vmatpush1.msra.mxu0 0.0
    %837 = vmatprep.subr.mxu0 0.0
    %838 = vmatpush1.msra.mxu0 0.0
    %839 = vmatprep.subr.mxu0 0.0
    %840 = vmatpush1.msra.mxu0 0.0
    %841 = vmatprep.subr.mxu0 0.0
    %842 = vmatpush1.msra.mxu0 0.0
    %843 = vmatprep.subr.mxu0 0.0
    %844 = vmatpush1.msra.mxu0 0.0
    %845 = vmatprep.subr.mxu0 0.0
    %846 = vmatpush1.msra.mxu0 0.0
    %847 = vmatprep.subr.mxu0 0.0
    %848 = vmatpush1.msra.mxu0 0.0
    %849 = vmatprep.subr.mxu0 0.0
    %850 = vmatpush1.msra.mxu0 0.0
    %851 = vmatprep.subr.mxu0 0.0
    %852 = vmatpush1.msra.mxu0 0.0
    %853 = vmatprep.subr.mxu0 0.0
    %854 = vmatpush1.msra.mxu0 0.0
    %855 = vmatprep.subr.mxu0 0.0
    %856 = vmatpush1.msra.mxu0 0.0
    %857 = vmatprep.mubr.f32.mxu0 0.0
    %858 = vmatmul.mubr.f32.gmra.mrb[0].mxu0 %v37
    %v859 = vpop.f32.mrb[0].mxu0
    %v860 = vadd.f32 0.0, %v859
    %v861 = vpop.f32.mrb[0].mxu0
    %862 = vmatprep.mubr.f32.mxu0 0.0
    %863 = vmatmul.mubr.f32.gmra.mrb[0].mxu0 %v40
    %v864 = vpop.f32.mrb[0].mxu0
    %v865 = vadd.f32 0.0, %v864
    %v866 = vpop.f32.mrb[0].mxu0
    %867 = vmatprep.mubr.f32.mxu0 0.0
    %868 = vmatmul.mubr.f32.gmra.mrb[0].mxu0 %v43
    %v869 = vpop.f32.mrb[0].mxu0
    %v870 = vadd.f32 0.0, %v869
    %v871 = vpop.f32.mrb[0].mxu0
    %872 = vmatprep.mubr.f32.mxu0 0.0
    %873 = vmatmul.mubr.f32.gmra.mrb[0].mxu0 %v46
    %v874 = vpop.f32.mrb[0].mxu0
    %v875 = vadd.f32 0.0, %v874
    %v876 = vpop.f32.mrb[0].mxu0
    %877 = vdwg.mxu0
    %s878 = scalar_lea.vmem [#allocation2], 224
    %879 = vst.msk [vmem:[%s878] sm:$0xff] %vm137, %v860
    %880 = vst.msk [vmem:[%s878 + $0x8] sm:$0xff] %vm137, %v865
    %881 = vst.msk [vmem:[%s878 + $0x10] sm:$0xff] %vm137, %v870
    %882 = vst.msk [vmem:[%s878 + $0x18] sm:$0xff] %vm137, %v875
    %v883 = vld [vmem:[#allocation3] sm:$0xff]
    %v884 = vld [vmem:[#allocation3 + $0x8] sm:$0xff]
    %v885 = vld [vmem:[#allocation3 + $0x10] sm:$0xff]
    %v886 = vld [vmem:[#allocation3 + $0x18] sm:$0xff]
    %v887 = vmax.f32 %v883, %v860
    %v888 = vmax.f32 %v884, %v865
    %v889 = vmax.f32 %v885, %v870
    %v890 = vmax.f32 %v886, %v875
    %891 = vst.msk [vmem:[#allocation3] sm:$0xff] %vm137, %v887
    %892 = vst.msk [vmem:[#allocation3 + $0x8] sm:$0xff] %vm137, %v888
    %893 = vst.msk [vmem:[#allocation3 + $0x10] sm:$0xff] %vm137, %v889
    %894 = vst.msk [vmem:[#allocation3 + $0x18] sm:$0xff] %vm137, %v890
    %s895 = scalar_lea.vmem [#allocation5], 32
    %v896 = vld [vmem:[%s895] sm:$0xf]
    %v898 = vsel %vm48, %v896, 0
    %900 = vmatprep.subr.mxu0 0.0
    %901 = vmatpush1.msra.mxu0 %v898
    %902 = vmatprep.subr.mxu0 0.0
    %903 = vmatpush1.msra.mxu0 0.0
    %904 = vmatprep.subr.mxu0 0.0
    %905 = vmatpush1.msra.mxu0 0.0
    %906 = vmatprep.subr.mxu0 0.0
    %907 = vmatpush1.msra.mxu0 0.0
    %908 = vmatprep.subr.mxu0 0.0
    %909 = vmatpush1.msra.mxu0 0.0
    %910 = vmatprep.subr.mxu0 0.0
    %911 = vmatpush1.msra.mxu0 0.0
    %912 = vmatprep.subr.mxu0 0.0
    %913 = vmatpush1.msra.mxu0 0.0
    %914 = vmatprep.subr.mxu0 0.0
    %915 = vmatpush1.msra.mxu0 0.0
    %916 = vmatprep.subr.mxu0 0.0
    %917 = vmatpush1.msra.mxu0 0.0
    %918 = vmatprep.subr.mxu0 0.0
    %919 = vmatpush1.msra.mxu0 0.0
    %920 = vmatprep.subr.mxu0 0.0
    %921 = vmatpush1.msra.mxu0 0.0
    %922 = vmatprep.subr.mxu0 0.0
    %923 = vmatpush1.msra.mxu0 0.0
    %924 = vmatprep.subr.mxu0 0.0
    %925 = vmatpush1.msra.mxu0 0.0
    %926 = vmatprep.subr.mxu0 0.0
    %927 = vmatpush1.msra.mxu0 0.0
    %928 = vmatprep.subr.mxu0 0.0
    %929 = vmatpush1.msra.mxu0 0.0
    %930 = vmatprep.subr.mxu0 0.0
    %931 = vmatpush1.msra.mxu0 0.0
    %932 = vmatprep.subr.mxu0 0.0
    %933 = vmatpush1.msra.mxu0 0.0
    %934 = vmatprep.subr.mxu0 0.0
    %935 = vmatpush1.msra.mxu0 0.0
    %936 = vmatprep.subr.mxu0 0.0
    %937 = vmatpush1.msra.mxu0 0.0
    %938 = vmatprep.subr.mxu0 0.0
    %939 = vmatpush1.msra.mxu0 0.0
    %940 = vmatprep.subr.mxu0 0.0
    %941 = vmatpush1.msra.mxu0 0.0
    %942 = vmatprep.subr.mxu0 0.0
    %943 = vmatpush1.msra.mxu0 0.0
    %944 = vmatprep.subr.mxu0 0.0
    %945 = vmatpush1.msra.mxu0 0.0
    %946 = vmatprep.subr.mxu0 0.0
    %947 = vmatpush1.msra.mxu0 0.0
    %948 = vmatprep.subr.mxu0 0.0
    %949 = vmatpush1.msra.mxu0 0.0
    %950 = vmatprep.subr.mxu0 0.0
    %951 = vmatpush1.msra.mxu0 0.0
    %952 = vmatprep.subr.mxu0 0.0
    %953 = vmatpush1.msra.mxu0 0.0
    %954 = vmatprep.subr.mxu0 0.0
    %955 = vmatpush1.msra.mxu0 0.0
    %956 = vmatprep.subr.mxu0 0.0
    %957 = vmatpush1.msra.mxu0 0.0
    %958 = vmatprep.subr.mxu0 0.0
    %959 = vmatpush1.msra.mxu0 0.0
    %960 = vmatprep.subr.mxu0 0.0
    %961 = vmatpush1.msra.mxu0 0.0
    %962 = vmatprep.subr.mxu0 0.0
    %963 = vmatpush1.msra.mxu0 0.0
    %964 = vmatprep.mubr.f32.mxu0 0.0
    %965 = vmatmul.mubr.f32.gmra.mrb[0].mxu0 %v37
    %v966 = vpop.f32.mrb[0].mxu0
    %v967 = vadd.f32 0.0, %v966
    %v968 = vpop.f32.mrb[0].mxu0
    %969 = vmatprep.mubr.f32.mxu0 0.0
    %970 = vmatmul.mubr.f32.gmra.mrb[0].mxu0 %v40
    %v971 = vpop.f32.mrb[0].mxu0
    %v972 = vadd.f32 0.0, %v971
    %v973 = vpop.f32.mrb[0].mxu0
    %974 = vmatprep.mubr.f32.mxu0 0.0
    %975 = vmatmul.mubr.f32.gmra.mrb[0].mxu0 %v43
    %v976 = vpop.f32.mrb[0].mxu0
    %v977 = vadd.f32 0.0, %v976
    %v978 = vpop.f32.mrb[0].mxu0
    %979 = vmatprep.mubr.f32.mxu0 0.0
    %980 = vmatmul.mubr.f32.gmra.mrb[0].mxu0 %v46
    %v981 = vpop.f32.mrb[0].mxu0
    %v982 = vadd.f32 0.0, %v981
    %v983 = vpop.f32.mrb[0].mxu0
    %984 = vdwg.mxu0
    %s985 = scalar_lea.vmem [#allocation2], 256
    %986 = vst.msk [vmem:[%s985] sm:$0xff] %vm137, %v967
    %987 = vst.msk [vmem:[%s985 + $0x8] sm:$0xff] %vm137, %v972
    %988 = vst.msk [vmem:[%s985 + $0x10] sm:$0xff] %vm137, %v977
    %989 = vst.msk [vmem:[%s985 + $0x18] sm:$0xff] %vm137, %v982
    %v990 = vld [vmem:[#allocation3] sm:$0xff]
    %v991 = vld [vmem:[#allocation3 + $0x8] sm:$0xff]
    %v992 = vld [vmem:[#allocation3 + $0x10] sm:$0xff]
    %v993 = vld [vmem:[#allocation3 + $0x18] sm:$0xff]
    %v994 = vmax.f32 %v990, %v967
    %v995 = vmax.f32 %v991, %v972
    %v996 = vmax.f32 %v992, %v977
    %v997 = vmax.f32 %v993, %v982
    %998 = vst.msk [vmem:[#allocation3] sm:$0xff] %vm137, %v994
    %999 = vst.msk [vmem:[#allocation3 + $0x8] sm:$0xff] %vm137, %v995
    %1000 = vst.msk [vmem:[#allocation3 + $0x10] sm:$0xff] %vm137, %v996
    %1001 = vst.msk [vmem:[#allocation3 + $0x18] sm:$0xff] %vm137, %v997
    %s1002 = scalar_lea.vmem [#allocation5], 36
    %v1003 = vld [vmem:[%s1002] sm:$0xf]
    %v1005 = vsel %vm48, %v1003, 0
    %1007 = vmatprep.subr.mxu0 0.0
    %1008 = vmatpush1.msra.mxu0 %v1005
    %1009 = vmatprep.subr.mxu0 0.0
    %1010 = vmatpush1.msra.mxu0 0.0
    %1011 = vmatprep.subr.mxu0 0.0
    %1012 = vmatpush1.msra.mxu0 0.0
    %1013 = vmatprep.subr.mxu0 0.0
    %1014 = vmatpush1.msra.mxu0 0.0
    %1015 = vmatprep.subr.mxu0 0.0
    %1016 = vmatpush1.msra.mxu0 0.0
    %1017 = vmatprep.subr.mxu0 0.0
    %1018 = vmatpush1.msra.mxu0 0.0
    %1019 = vmatprep.subr.mxu0 0.0
    %1020 = vmatpush1.msra.mxu0 0.0
    %1021 = vmatprep.subr.mxu0 0.0
    %1022 = vmatpush1.msra.mxu0 0.0
    %1023 = vmatprep.subr.mxu0 0.0
    %1024 = vmatpush1.msra.mxu0 0.0
    %1025 = vmatprep.subr.mxu0 0.0
    %1026 = vmatpush1.msra.mxu0 0.0
    %1027 = vmatprep.subr.mxu0 0.0
    %1028 = vmatpush1.msra.mxu0 0.0
    %1029 = vmatprep.subr.mxu0 0.0
    %1030 = vmatpush1.msra.mxu0 0.0
    %1031 = vmatprep.subr.mxu0 0.0
    %1032 = vmatpush1.msra.mxu0 0.0
    %1033 = vmatprep.subr.mxu0 0.0
    %1034 = vmatpush1.msra.mxu0 0.0
    %1035 = vmatprep.subr.mxu0 0.0
    %1036 = vmatpush1.msra.mxu0 0.0
    %1037 = vmatprep.subr.mxu0 0.0
    %1038 = vmatpush1.msra.mxu0 0.0
    %1039 = vmatprep.subr.mxu0 0.0
    %1040 = vmatpush1.msra.mxu0 0.0
    %1041 = vmatprep.subr.mxu0 0.0
    %1042 = vmatpush1.msra.mxu0 0.0
    %1043 = vmatprep.subr.mxu0 0.0
    %1044 = vmatpush1.msra.mxu0 0.0
    %1045 = vmatprep.subr.mxu0 0.0
    %1046 = vmatpush1.msra.mxu0 0.0
    %1047 = vmatprep.subr.mxu0 0.0
    %1048 = vmatpush1.msra.mxu0 0.0
    %1049 = vmatprep.subr.mxu0 0.0
    %1050 = vmatpush1.msra.mxu0 0.0
    %1051 = vmatprep.subr.mxu0 0.0
    %1052 = vmatpush1.msra.mxu0 0.0
    %1053 = vmatprep.subr.mxu0 0.0
    %1054 = vmatpush1.msra.mxu0 0.0
    %1055 = vmatprep.subr.mxu0 0.0
    %1056 = vmatpush1.msra.mxu0 0.0
    %1057 = vmatprep.subr.mxu0 0.0
    %1058 = vmatpush1.msra.mxu0 0.0
    %1059 = vmatprep.subr.mxu0 0.0
    %1060 = vmatpush1.msra.mxu0 0.0
    %1061 = vmatprep.subr.mxu0 0.0
    %1062 = vmatpush1.msra.mxu0 0.0
    %1063 = vmatprep.subr.mxu0 0.0
    %1064 = vmatpush1.msra.mxu0 0.0
    %1065 = vmatprep.subr.mxu0 0.0
    %1066 = vmatpush1.msra.mxu0 0.0
    %1067 = vmatprep.subr.mxu0 0.0
    %1068 = vmatpush1.msra.mxu0 0.0
    %1069 = vmatprep.subr.mxu0 0.0
    %1070 = vmatpush1.msra.mxu0 0.0
    %1071 = vmatprep.mubr.f32.mxu0 0.0
    %1072 = vmatmul.mubr.f32.gmra.mrb[0].mxu0 %v37
    %v1073 = vpop.f32.mrb[0].mxu0
    %v1074 = vadd.f32 0.0, %v1073
    %v1075 = vpop.f32.mrb[0].mxu0
    %1076 = vmatprep.mubr.f32.mxu0 0.0
    %1077 = vmatmul.mubr.f32.gmra.mrb[0].mxu0 %v40
    %v1078 = vpop.f32.mrb[0].mxu0
    %v1079 = vadd.f32 0.0, %v1078
    %v1080 = vpop.f32.mrb[0].mxu0
    %1081 = vmatprep.mubr.f32.mxu0 0.0
    %1082 = vmatmul.mubr.f32.gmra.mrb[0].mxu0 %v43
    %v1083 = vpop.f32.mrb[0].mxu0
    %v1084 = vadd.f32 0.0, %v1083
    %v1085 = vpop.f32.mrb[0].mxu0
    %1086 = vmatprep.mubr.f32.mxu0 0.0
    %1087 = vmatmul.mubr.f32.gmra.mrb[0].mxu0 %v46
    %v1088 = vpop.f32.mrb[0].mxu0
    %v1089 = vadd.f32 0.0, %v1088
    %v1090 = vpop.f32.mrb[0].mxu0
    %1091 = vdwg.mxu0
    %s1092 = scalar_lea.vmem [#allocation2], 288
    %1093 = vst.msk [vmem:[%s1092] sm:$0xff] %vm137, %v1074
    %1094 = vst.msk [vmem:[%s1092 + $0x8] sm:$0xff] %vm137, %v1079
    %1095 = vst.msk [vmem:[%s1092 + $0x10] sm:$0xff] %vm137, %v1084
    %1096 = vst.msk [vmem:[%s1092 + $0x18] sm:$0xff] %vm137, %v1089
    %v1097 = vld [vmem:[#allocation3] sm:$0xff]
    %v1098 = vld [vmem:[#allocation3 + $0x8] sm:$0xff]
    %v1099 = vld [vmem:[#allocation3 + $0x10] sm:$0xff]
    %v1100 = vld [vmem:[#allocation3 + $0x18] sm:$0xff]
    %v1101 = vmax.f32 %v1097, %v1074
    %v1102 = vmax.f32 %v1098, %v1079
    %v1103 = vmax.f32 %v1099, %v1084
    %v1104 = vmax.f32 %v1100, %v1089
    %1105 = vst.msk [vmem:[#allocation3] sm:$0xff] %vm137, %v1101
    %1106 = vst.msk [vmem:[#allocation3 + $0x8] sm:$0xff] %vm137, %v1102
    %1107 = vst.msk [vmem:[#allocation3 + $0x10] sm:$0xff] %vm137, %v1103
    %1108 = vst.msk [vmem:[#allocation3 + $0x18] sm:$0xff] %vm137, %v1104
    %s1109 = scalar_lea.vmem [#allocation5], 40
    %v1110 = vld [vmem:[%s1109] sm:$0xf]
    %v1112 = vsel %vm48, %v1110, 0
    %1114 = vmatprep.subr.mxu0 0.0
    %1115 = vmatpush1.msra.mxu0 %v1112
    %1116 = vmatprep.subr.mxu0 0.0
    %1117 = vmatpush1.msra.mxu0 0.0
    %1118 = vmatprep.subr.mxu0 0.0
    %1119 = vmatpush1.msra.mxu0 0.0
    %1120 = vmatprep.subr.mxu0 0.0
    %1121 = vmatpush1.msra.mxu0 0.0
    %1122 = vmatprep.subr.mxu0 0.0
    %1123 = vmatpush1.msra.mxu0 0.0
    %1124 = vmatprep.subr.mxu0 0.0
    %1125 = vmatpush1.msra.mxu0 0.0
    %1126 = vmatprep.subr.mxu0 0.0
    %1127 = vmatpush1.msra.mxu0 0.0
    %1128 = vmatprep.subr.mxu0 0.0
    %1129 = vmatpush1.msra.mxu0 0.0
    %1130 = vmatprep.subr.mxu0 0.0
    %1131 = vmatpush1.msra.mxu0 0.0
    %1132 = vmatprep.subr.mxu0 0.0
    %1133 = vmatpush1.msra.mxu0 0.0
    %1134 = vmatprep.subr.mxu0 0.0
    %1135 = vmatpush1.msra.mxu0 0.0
    %1136 = vmatprep.subr.mxu0 0.0
    %1137 = vmatpush1.msra.mxu0 0.0
    %1138 = vmatprep.subr.mxu0 0.0
    %1139 = vmatpush1.msra.mxu0 0.0
    %1140 = vmatprep.subr.mxu0 0.0
    %1141 = vmatpush1.msra.mxu0 0.0
    %1142 = vmatprep.subr.mxu0 0.0
    %1143 = vmatpush1.msra.mxu0 0.0
    %1144 = vmatprep.subr.mxu0 0.0
    %1145 = vmatpush1.msra.mxu0 0.0
    %1146 = vmatprep.subr.mxu0 0.0
    %1147 = vmatpush1.msra.mxu0 0.0
    %1148 = vmatprep.subr.mxu0 0.0
    %1149 = vmatpush1.msra.mxu0 0.0
    %1150 = vmatprep.subr.mxu0 0.0
    %1151 = vmatpush1.msra.mxu0 0.0
    %1152 = vmatprep.subr.mxu0 0.0
    %1153 = vmatpush1.msra.mxu0 0.0
    %1154 = vmatprep.subr.mxu0 0.0
    %1155 = vmatpush1.msra.mxu0 0.0
    %1156 = vmatprep.subr.mxu0 0.0
    %1157 = vmatpush1.msra.mxu0 0.0
    %1158 = vmatprep.subr.mxu0 0.0
    %1159 = vmatpush1.msra.mxu0 0.0
    %1160 = vmatprep.subr.mxu0 0.0
    %1161 = vmatpush1.msra.mxu0 0.0
    %1162 = vmatprep.subr.mxu0 0.0
    %1163 = vmatpush1.msra.mxu0 0.0
    %1164 = vmatprep.subr.mxu0 0.0
    %1165 = vmatpush1.msra.mxu0 0.0
    %1166 = vmatprep.subr.mxu0 0.0
    %1167 = vmatpush1.msra.mxu0 0.0
    %1168 = vmatprep.subr.mxu0 0.0
    %1169 = vmatpush1.msra.mxu0 0.0
    %1170 = vmatprep.subr.mxu0 0.0
    %1171 = vmatpush1.msra.mxu0 0.0
    %1172 = vmatprep.subr.mxu0 0.0
    %1173 = vmatpush1.msra.mxu0 0.0
    %1174 = vmatprep.subr.mxu0 0.0
    %1175 = vmatpush1.msra.mxu0 0.0
    %1176 = vmatprep.subr.mxu0 0.0
    %1177 = vmatpush1.msra.mxu0 0.0
    %1178 = vmatprep.mubr.f32.mxu0 0.0
    %1179 = vmatmul.mubr.f32.gmra.mrb[0].mxu0 %v37
    %v1180 = vpop.f32.mrb[0].mxu0
    %v1181 = vadd.f32 0.0, %v1180
    %v1182 = vpop.f32.mrb[0].mxu0
    %1183 = vmatprep.mubr.f32.mxu0 0.0
    %1184 = vmatmul.mubr.f32.gmra.mrb[0].mxu0 %v40
    %v1185 = vpop.f32.mrb[0].mxu0
    %v1186 = vadd.f32 0.0, %v1185
    %v1187 = vpop.f32.mrb[0].mxu0
    %1188 = vmatprep.mubr.f32.mxu0 0.0
    %1189 = vmatmul.mubr.f32.gmra.mrb[0].mxu0 %v43
    %v1190 = vpop.f32.mrb[0].mxu0
    %v1191 = vadd.f32 0.0, %v1190
    %v1192 = vpop.f32.mrb[0].mxu0
    %1193 = vmatprep.mubr.f32.mxu0 0.0
    %1194 = vmatmul.mubr.f32.gmra.mrb[0].mxu0 %v46
    %v1195 = vpop.f32.mrb[0].mxu0
    %v1196 = vadd.f32 0.0, %v1195
    %v1197 = vpop.f32.mrb[0].mxu0
    %1198 = vdwg.mxu0
    %s1199 = scalar_lea.vmem [#allocation2], 320
    %1200 = vst.msk [vmem:[%s1199] sm:$0xff] %vm137, %v1181
    %1201 = vst.msk [vmem:[%s1199 + $0x8] sm:$0xff] %vm137, %v1186
    %1202 = vst.msk [vmem:[%s1199 + $0x10] sm:$0xff] %vm137, %v1191
    %1203 = vst.msk [vmem:[%s1199 + $0x18] sm:$0xff] %vm137, %v1196
    %v1204 = vld [vmem:[#allocation3] sm:$0xff]
    %v1205 = vld [vmem:[#allocation3 + $0x8] sm:$0xff]
    %v1206 = vld [vmem:[#allocation3 + $0x10] sm:$0xff]
    %v1207 = vld [vmem:[#allocation3 + $0x18] sm:$0xff]
    %v1208 = vmax.f32 %v1204, %v1181
    %v1209 = vmax.f32 %v1205, %v1186
    %v1210 = vmax.f32 %v1206, %v1191
    %v1211 = vmax.f32 %v1207, %v1196
    %1212 = vst.msk [vmem:[#allocation3] sm:$0xff] %vm137, %v1208
    %1213 = vst.msk [vmem:[#allocation3 + $0x8] sm:$0xff] %vm137, %v1209
    %1214 = vst.msk [vmem:[#allocation3 + $0x10] sm:$0xff] %vm137, %v1210
    %1215 = vst.msk [vmem:[#allocation3 + $0x18] sm:$0xff] %vm137, %v1211
    %s1216 = scalar_lea.vmem [#allocation5], 44
    %v1217 = vld [vmem:[%s1216] sm:$0xf]
    %v1219 = vsel %vm48, %v1217, 0
    %1221 = vmatprep.subr.mxu0 0.0
    %1222 = vmatpush1.msra.mxu0 %v1219
    %1223 = vmatprep.subr.mxu0 0.0
    %1224 = vmatpush1.msra.mxu0 0.0
    %1225 = vmatprep.subr.mxu0 0.0
    %1226 = vmatpush1.msra.mxu0 0.0
    %1227 = vmatprep.subr.mxu0 0.0
    %1228 = vmatpush1.msra.mxu0 0.0
    %1229 = vmatprep.subr.mxu0 0.0
    %1230 = vmatpush1.msra.mxu0 0.0
    %1231 = vmatprep.subr.mxu0 0.0
    %1232 = vmatpush1.msra.mxu0 0.0
    %1233 = vmatprep.subr.mxu0 0.0
    %1234 = vmatpush1.msra.mxu0 0.0
    %1235 = vmatprep.subr.mxu0 0.0
    %1236 = vmatpush1.msra.mxu0 0.0
    %1237 = vmatprep.subr.mxu0 0.0
    %1238 = vmatpush1.msra.mxu0 0.0
    %1239 = vmatprep.subr.mxu0 0.0
    %1240 = vmatpush1.msra.mxu0 0.0
    %1241 = vmatprep.subr.mxu0 0.0
    %1242 = vmatpush1.msra.mxu0 0.0
    %1243 = vmatprep.subr.mxu0 0.0
    %1244 = vmatpush1.msra.mxu0 0.0
    %1245 = vmatprep.subr.mxu0 0.0
    %1246 = vmatpush1.msra.mxu0 0.0
    %1247 = vmatprep.subr.mxu0 0.0
    %1248 = vmatpush1.msra.mxu0 0.0
    %1249 = vmatprep.subr.mxu0 0.0
    %1250 = vmatpush1.msra.mxu0 0.0
    %1251 = vmatprep.subr.mxu0 0.0
    %1252 = vmatpush1.msra.mxu0 0.0
    %1253 = vmatprep.subr.mxu0 0.0
    %1254 = vmatpush1.msra.mxu0 0.0
    %1255 = vmatprep.subr.mxu0 0.0
    %1256 = vmatpush1.msra.mxu0 0.0
    %1257 = vmatprep.subr.mxu0 0.0
    %1258 = vmatpush1.msra.mxu0 0.0
    %1259 = vmatprep.subr.mxu0 0.0
    %1260 = vmatpush1.msra.mxu0 0.0
    %1261 = vmatprep.subr.mxu0 0.0
    %1262 = vmatpush1.msra.mxu0 0.0
    %1263 = vmatprep.subr.mxu0 0.0
    %1264 = vmatpush1.msra.mxu0 0.0
    %1265 = vmatprep.subr.mxu0 0.0
    %1266 = vmatpush1.msra.mxu0 0.0
    %1267 = vmatprep.subr.mxu0 0.0
    %1268 = vmatpush1.msra.mxu0 0.0
    %1269 = vmatprep.subr.mxu0 0.0
    %1270 = vmatpush1.msra.mxu0 0.0
    %1271 = vmatprep.subr.mxu0 0.0
    %1272 = vmatpush1.msra.mxu0 0.0
    %1273 = vmatprep.subr.mxu0 0.0
    %1274 = vmatpush1.msra.mxu0 0.0
    %1275 = vmatprep.subr.mxu0 0.0
    %1276 = vmatpush1.msra.mxu0 0.0
    %1277 = vmatprep.subr.mxu0 0.0
    %1278 = vmatpush1.msra.mxu0 0.0
    %1279 = vmatprep.subr.mxu0 0.0
    %1280 = vmatpush1.msra.mxu0 0.0
    %1281 = vmatprep.subr.mxu0 0.0
    %1282 = vmatpush1.msra.mxu0 0.0
    %1283 = vmatprep.subr.mxu0 0.0
    %1284 = vmatpush1.msra.mxu0 0.0
    %1285 = vmatprep.mubr.f32.mxu0 0.0
    %1286 = vmatmul.mubr.f32.gmra.mrb[0].mxu0 %v37
    %v1287 = vpop.f32.mrb[0].mxu0
    %v1288 = vadd.f32 0.0, %v1287
    %v1289 = vpop.f32.mrb[0].mxu0
    %1290 = vmatprep.mubr.f32.mxu0 0.0
    %1291 = vmatmul.mubr.f32.gmra.mrb[0].mxu0 %v40
    %v1292 = vpop.f32.mrb[0].mxu0
    %v1293 = vadd.f32 0.0, %v1292
    %v1294 = vpop.f32.mrb[0].mxu0
    %1295 = vmatprep.mubr.f32.mxu0 0.0
    %1296 = vmatmul.mubr.f32.gmra.mrb[0].mxu0 %v43
    %v1297 = vpop.f32.mrb[0].mxu0
    %v1298 = vadd.f32 0.0, %v1297
    %v1299 = vpop.f32.mrb[0].mxu0
    %1300 = vmatprep.mubr.f32.mxu0 0.0
    %1301 = vmatmul.mubr.f32.gmra.mrb[0].mxu0 %v46
    %v1302 = vpop.f32.mrb[0].mxu0
    %v1303 = vadd.f32 0.0, %v1302
    %v1304 = vpop.f32.mrb[0].mxu0
    %1305 = vdwg.mxu0
    %s1306 = scalar_lea.vmem [#allocation2], 352
    %1307 = vst.msk [vmem:[%s1306] sm:$0xff] %vm137, %v1288
    %1308 = vst.msk [vmem:[%s1306 + $0x8] sm:$0xff] %vm137, %v1293
    %1309 = vst.msk [vmem:[%s1306 + $0x10] sm:$0xff] %vm137, %v1298
    %1310 = vst.msk [vmem:[%s1306 + $0x18] sm:$0xff] %vm137, %v1303
    %v1311 = vld [vmem:[#allocation3] sm:$0xff]
    %v1312 = vld [vmem:[#allocation3 + $0x8] sm:$0xff]
    %v1313 = vld [vmem:[#allocation3 + $0x10] sm:$0xff]
    %v1314 = vld [vmem:[#allocation3 + $0x18] sm:$0xff]
    %v1315 = vmax.f32 %v1311, %v1288
    %v1316 = vmax.f32 %v1312, %v1293
    %v1317 = vmax.f32 %v1313, %v1298
    %v1318 = vmax.f32 %v1314, %v1303
    %1319 = vst.msk [vmem:[#allocation3] sm:$0xff] %vm137, %v1315
    %1320 = vst.msk [vmem:[#allocation3 + $0x8] sm:$0xff] %vm137, %v1316
    %1321 = vst.msk [vmem:[#allocation3 + $0x10] sm:$0xff] %vm137, %v1317
    %1322 = vst.msk [vmem:[#allocation3 + $0x18] sm:$0xff] %vm137, %v1318
    %s1323 = scalar_lea.vmem [#allocation5], 48
    %v1324 = vld [vmem:[%s1323] sm:$0xf]
    %v1326 = vsel %vm48, %v1324, 0
    %1328 = vmatprep.subr.mxu0 0.0
    %1329 = vmatpush1.msra.mxu0 %v1326
    %1330 = vmatprep.subr.mxu0 0.0
    %1331 = vmatpush1.msra.mxu0 0.0
    %1332 = vmatprep.subr.mxu0 0.0
    %1333 = vmatpush1.msra.mxu0 0.0
    %1334 = vmatprep.subr.mxu0 0.0
    %1335 = vmatpush1.msra.mxu0 0.0
    %1336 = vmatprep.subr.mxu0 0.0
    %1337 = vmatpush1.msra.mxu0 0.0
    %1338 = vmatprep.subr.mxu0 0.0
    %1339 = vmatpush1.msra.mxu0 0.0
    %1340 = vmatprep.subr.mxu0 0.0
    %1341 = vmatpush1.msra.mxu0 0.0
    %1342 = vmatprep.subr.mxu0 0.0
    %1343 = vmatpush1.msra.mxu0 0.0
    %1344 = vmatprep.subr.mxu0 0.0
    %1345 = vmatpush1.msra.mxu0 0.0
    %1346 = vmatprep.subr.mxu0 0.0
    %1347 = vmatpush1.msra.mxu0 0.0
    %1348 = vmatprep.subr.mxu0 0.0
    %1349 = vmatpush1.msra.mxu0 0.0
    %1350 = vmatprep.subr.mxu0 0.0
    %1351 = vmatpush1.msra.mxu0 0.0
    %1352 = vmatprep.subr.mxu0 0.0
    %1353 = vmatpush1.msra.mxu0 0.0
    %1354 = vmatprep.subr.mxu0 0.0
    %1355 = vmatpush1.msra.mxu0 0.0
    %1356 = vmatprep.subr.mxu0 0.0
    %1357 = vmatpush1.msra.mxu0 0.0
    %1358 = vmatprep.subr.mxu0 0.0
    %1359 = vmatpush1.msra.mxu0 0.0
    %1360 = vmatprep.subr.mxu0 0.0
    %1361 = vmatpush1.msra.mxu0 0.0
    %1362 = vmatprep.subr.mxu0 0.0
    %1363 = vmatpush1.msra.mxu0 0.0
    %1364 = vmatprep.subr.mxu0 0.0
    %1365 = vmatpush1.msra.mxu0 0.0
    %1366 = vmatprep.subr.mxu0 0.0
    %1367 = vmatpush1.msra.mxu0 0.0
    %1368 = vmatprep.subr.mxu0 0.0
    %1369 = vmatpush1.msra.mxu0 0.0
    %1370 = vmatprep.subr.mxu0 0.0
    %1371 = vmatpush1.msra.mxu0 0.0
    %1372 = vmatprep.subr.mxu0 0.0
    %1373 = vmatpush1.msra.mxu0 0.0
    %1374 = vmatprep.subr.mxu0 0.0
    %1375 = vmatpush1.msra.mxu0 0.0
    %1376 = vmatprep.subr.mxu0 0.0
    %1377 = vmatpush1.msra.mxu0 0.0
    %1378 = vmatprep.subr.mxu0 0.0
    %1379 = vmatpush1.msra.mxu0 0.0
    %1380 = vmatprep.subr.mxu0 0.0
    %1381 = vmatpush1.msra.mxu0 0.0
    %1382 = vmatprep.subr.mxu0 0.0
    %1383 = vmatpush1.msra.mxu0 0.0
    %1384 = vmatprep.subr.mxu0 0.0
    %1385 = vmatpush1.msra.mxu0 0.0
    %1386 = vmatprep.subr.mxu0 0.0
    %1387 = vmatpush1.msra.mxu0 0.0
    %1388 = vmatprep.subr.mxu0 0.0
    %1389 = vmatpush1.msra.mxu0 0.0
    %1390 = vmatprep.subr.mxu0 0.0
    %1391 = vmatpush1.msra.mxu0 0.0
    %1392 = vmatprep.mubr.f32.mxu0 0.0
    %1393 = vmatmul.mubr.f32.gmra.mrb[0].mxu0 %v37
    %v1394 = vpop.f32.mrb[0].mxu0
    %v1395 = vadd.f32 0.0, %v1394
    %v1396 = vpop.f32.mrb[0].mxu0
    %1397 = vmatprep.mubr.f32.mxu0 0.0
    %1398 = vmatmul.mubr.f32.gmra.mrb[0].mxu0 %v40
    %v1399 = vpop.f32.mrb[0].mxu0
    %v1400 = vadd.f32 0.0, %v1399
    %v1401 = vpop.f32.mrb[0].mxu0
    %1402 = vmatprep.mubr.f32.mxu0 0.0
    %1403 = vmatmul.mubr.f32.gmra.mrb[0].mxu0 %v43
    %v1404 = vpop.f32.mrb[0].mxu0
    %v1405 = vadd.f32 0.0, %v1404
    %v1406 = vpop.f32.mrb[0].mxu0
    %1407 = vmatprep.mubr.f32.mxu0 0.0
    %1408 = vmatmul.mubr.f32.gmra.mrb[0].mxu0 %v46
    %v1409 = vpop.f32.mrb[0].mxu0
    %v1410 = vadd.f32 0.0, %v1409
    %v1411 = vpop.f32.mrb[0].mxu0
    %1412 = vdwg.mxu0
    %s1413 = scalar_lea.vmem [#allocation2], 384
    %1414 = vst.msk [vmem:[%s1413] sm:$0xff] %vm137, %v1395
    %1415 = vst.msk [vmem:[%s1413 + $0x8] sm:$0xff] %vm137, %v1400
    %1416 = vst.msk [vmem:[%s1413 + $0x10] sm:$0xff] %vm137, %v1405
    %1417 = vst.msk [vmem:[%s1413 + $0x18] sm:$0xff] %vm137, %v1410
    %v1418 = vld [vmem:[#allocation3] sm:$0xff]
    %v1419 = vld [vmem:[#allocation3 + $0x8] sm:$0xff]
    %v1420 = vld [vmem:[#allocation3 + $0x10] sm:$0xff]
    %v1421 = vld [vmem:[#allocation3 + $0x18] sm:$0xff]
    %v1422 = vmax.f32 %v1418, %v1395
    %v1423 = vmax.f32 %v1419, %v1400
    %v1424 = vmax.f32 %v1420, %v1405
    %v1425 = vmax.f32 %v1421, %v1410
    %1426 = vst.msk [vmem:[#allocation3] sm:$0xff] %vm137, %v1422
    %1427 = vst.msk [vmem:[#allocation3 + $0x8] sm:$0xff] %vm137, %v1423
    %1428 = vst.msk [vmem:[#allocation3 + $0x10] sm:$0xff] %vm137, %v1424
    %1429 = vst.msk [vmem:[#allocation3 + $0x18] sm:$0xff] %vm137, %v1425
    %s1430 = scalar_lea.vmem [#allocation5], 52
    %v1431 = vld [vmem:[%s1430] sm:$0xf]
    %v1433 = vsel %vm48, %v1431, 0
    %1435 = vmatprep.subr.mxu0 0.0
    %1436 = vmatpush1.msra.mxu0 %v1433
    %1437 = vmatprep.subr.mxu0 0.0
    %1438 = vmatpush1.msra.mxu0 0.0
    %1439 = vmatprep.subr.mxu0 0.0
    %1440 = vmatpush1.msra.mxu0 0.0
    %1441 = vmatprep.subr.mxu0 0.0
    %1442 = vmatpush1.msra.mxu0 0.0
    %1443 = vmatprep.subr.mxu0 0.0
    %1444 = vmatpush1.msra.mxu0 0.0
    %1445 = vmatprep.subr.mxu0 0.0
    %1446 = vmatpush1.msra.mxu0 0.0
    %1447 = vmatprep.subr.mxu0 0.0
    %1448 = vmatpush1.msra.mxu0 0.0
    %1449 = vmatprep.subr.mxu0 0.0
    %1450 = vmatpush1.msra.mxu0 0.0
    %1451 = vmatprep.subr.mxu0 0.0
    %1452 = vmatpush1.msra.mxu0 0.0
    %1453 = vmatprep.subr.mxu0 0.0
    %1454 = vmatpush1.msra.mxu0 0.0
    %1455 = vmatprep.subr.mxu0 0.0
    %1456 = vmatpush1.msra.mxu0 0.0
    %1457 = vmatprep.subr.mxu0 0.0
    %1458 = vmatpush1.msra.mxu0 0.0
    %1459 = vmatprep.subr.mxu0 0.0
    %1460 = vmatpush1.msra.mxu0 0.0
    %1461 = vmatprep.subr.mxu0 0.0
    %1462 = vmatpush1.msra.mxu0 0.0
    %1463 = vmatprep.subr.mxu0 0.0
    %1464 = vmatpush1.msra.mxu0 0.0
    %1465 = vmatprep.subr.mxu0 0.0
    %1466 = vmatpush1.msra.mxu0 0.0
    %1467 = vmatprep.subr.mxu0 0.0
    %1468 = vmatpush1.msra.mxu0 0.0
    %1469 = vmatprep.subr.mxu0 0.0
    %1470 = vmatpush1.msra.mxu0 0.0
    %1471 = vmatprep.subr.mxu0 0.0
    %1472 = vmatpush1.msra.mxu0 0.0
    %1473 = vmatprep.subr.mxu0 0.0
    %1474 = vmatpush1.msra.mxu0 0.0
    %1475 = vmatprep.subr.mxu0 0.0
    %1476 = vmatpush1.msra.mxu0 0.0
    %1477 = vmatprep.subr.mxu0 0.0
    %1478 = vmatpush1.msra.mxu0 0.0
    %1479 = vmatprep.subr.mxu0 0.0
    %1480 = vmatpush1.msra.mxu0 0.0
    %1481 = vmatprep.subr.mxu0 0.0
    %1482 = vmatpush1.msra.mxu0 0.0
    %1483 = vmatprep.subr.mxu0 0.0
    %1484 = vmatpush1.msra.mxu0 0.0
    %1485 = vmatprep.subr.mxu0 0.0
    %1486 = vmatpush1.msra.mxu0 0.0
    %1487 = vmatprep.subr.mxu0 0.0
    %1488 = vmatpush1.msra.mxu0 0.0
    %1489 = vmatprep.subr.mxu0 0.0
    %1490 = vmatpush1.msra.mxu0 0.0
    %1491 = vmatprep.subr.mxu0 0.0
    %1492 = vmatpush1.msra.mxu0 0.0
    %1493 = vmatprep.subr.mxu0 0.0
    %1494 = vmatpush1.msra.mxu0 0.0
    %1495 = vmatprep.subr.mxu0 0.0
    %1496 = vmatpush1.msra.mxu0 0.0
    %1497 = vmatprep.subr.mxu0 0.0
    %1498 = vmatpush1.msra.mxu0 0.0
    %1499 = vmatprep.mubr.f32.mxu0 0.0
    %1500 = vmatmul.mubr.f32.gmra.mrb[0].mxu0 %v37
    %v1501 = vpop.f32.mrb[0].mxu0
    %v1502 = vadd.f32 0.0, %v1501
    %v1503 = vpop.f32.mrb[0].mxu0
    %1504 = vmatprep.mubr.f32.mxu0 0.0
    %1505 = vmatmul.mubr.f32.gmra.mrb[0].mxu0 %v40
    %v1506 = vpop.f32.mrb[0].mxu0
    %v1507 = vadd.f32 0.0, %v1506
    %v1508 = vpop.f32.mrb[0].mxu0
    %1509 = vmatprep.mubr.f32.mxu0 0.0
    %1510 = vmatmul.mubr.f32.gmra.mrb[0].mxu0 %v43
    %v1511 = vpop.f32.mrb[0].mxu0
    %v1512 = vadd.f32 0.0, %v1511
    %v1513 = vpop.f32.mrb[0].mxu0
    %1514 = vmatprep.mubr.f32.mxu0 0.0
    %1515 = vmatmul.mubr.f32.gmra.mrb[0].mxu0 %v46
    %v1516 = vpop.f32.mrb[0].mxu0
    %v1517 = vadd.f32 0.0, %v1516
    %v1518 = vpop.f32.mrb[0].mxu0
    %1519 = vdwg.mxu0
    %s1520 = scalar_lea.vmem [#allocation2], 416
    %1521 = vst.msk [vmem:[%s1520] sm:$0xff] %vm137, %v1502
    %1522 = vst.msk [vmem:[%s1520 + $0x8] sm:$0xff] %vm137, %v1507
    %1523 = vst.msk [vmem:[%s1520 + $0x10] sm:$0xff] %vm137, %v1512
    %1524 = vst.msk [vmem:[%s1520 + $0x18] sm:$0xff] %vm137, %v1517
    %v1525 = vld [vmem:[#allocation3] sm:$0xff]
    %v1526 = vld [vmem:[#allocation3 + $0x8] sm:$0xff]
    %v1527 = vld [vmem:[#allocation3 + $0x10] sm:$0xff]
    %v1528 = vld [vmem:[#allocation3 + $0x18] sm:$0xff]
    %v1529 = vmax.f32 %v1525, %v1502
    %v1530 = vmax.f32 %v1526, %v1507
    %v1531 = vmax.f32 %v1527, %v1512
    %v1532 = vmax.f32 %v1528, %v1517
    %1533 = vst.msk [vmem:[#allocation3] sm:$0xff] %vm137, %v1529
    %1534 = vst.msk [vmem:[#allocation3 + $0x8] sm:$0xff] %vm137, %v1530
    %1535 = vst.msk [vmem:[#allocation3 + $0x10] sm:$0xff] %vm137, %v1531
    %1536 = vst.msk [vmem:[#allocation3 + $0x18] sm:$0xff] %vm137, %v1532
    %s1537 = scalar_lea.vmem [#allocation5], 56
    %v1538 = vld [vmem:[%s1537] sm:$0xf]
    %v1540 = vsel %vm48, %v1538, 0
    %1542 = vmatprep.subr.mxu0 0.0
    %1543 = vmatpush1.msra.mxu0 %v1540
    %1544 = vmatprep.subr.mxu0 0.0
    %1545 = vmatpush1.msra.mxu0 0.0
    %1546 = vmatprep.subr.mxu0 0.0
    %1547 = vmatpush1.msra.mxu0 0.0
    %1548 = vmatprep.subr.mxu0 0.0
    %1549 = vmatpush1.msra.mxu0 0.0
    %1550 = vmatprep.subr.mxu0 0.0
    %1551 = vmatpush1.msra.mxu0 0.0
    %1552 = vmatprep.subr.mxu0 0.0
    %1553 = vmatpush1.msra.mxu0 0.0
    %1554 = vmatprep.subr.mxu0 0.0
    %1555 = vmatpush1.msra.mxu0 0.0
    %1556 = vmatprep.subr.mxu0 0.0
    %1557 = vmatpush1.msra.mxu0 0.0
    %1558 = vmatprep.subr.mxu0 0.0
    %1559 = vmatpush1.msra.mxu0 0.0
    %1560 = vmatprep.subr.mxu0 0.0
    %1561 = vmatpush1.msra.mxu0 0.0
    %1562 = vmatprep.subr.mxu0 0.0
    %1563 = vmatpush1.msra.mxu0 0.0
    %1564 = vmatprep.subr.mxu0 0.0
    %1565 = vmatpush1.msra.mxu0 0.0
    %1566 = vmatprep.subr.mxu0 0.0
    %1567 = vmatpush1.msra.mxu0 0.0
    %1568 = vmatprep.subr.mxu0 0.0
    %1569 = vmatpush1.msra.mxu0 0.0
    %1570 = vmatprep.subr.mxu0 0.0
    %1571 = vmatpush1.msra.mxu0 0.0
    %1572 = vmatprep.subr.mxu0 0.0
    %1573 = vmatpush1.msra.mxu0 0.0
    %1574 = vmatprep.subr.mxu0 0.0
    %1575 = vmatpush1.msra.mxu0 0.0
    %1576 = vmatprep.subr.mxu0 0.0
    %1577 = vmatpush1.msra.mxu0 0.0
    %1578 = vmatprep.subr.mxu0 0.0
    %1579 = vmatpush1.msra.mxu0 0.0
    %1580 = vmatprep.subr.mxu0 0.0
    %1581 = vmatpush1.msra.mxu0 0.0
    %1582 = vmatprep.subr.mxu0 0.0
    %1583 = vmatpush1.msra.mxu0 0.0
    %1584 = vmatprep.subr.mxu0 0.0
    %1585 = vmatpush1.msra.mxu0 0.0
    %1586 = vmatprep.subr.mxu0 0.0
    %1587 = vmatpush1.msra.mxu0 0.0
    %1588 = vmatprep.subr.mxu0 0.0
    %1589 = vmatpush1.msra.mxu0 0.0
    %1590 = vmatprep.subr.mxu0 0.0
    %1591 = vmatpush1.msra.mxu0 0.0
    %1592 = vmatprep.subr.mxu0 0.0
    %1593 = vmatpush1.msra.mxu0 0.0
    %1594 = vmatprep.subr.mxu0 0.0
    %1595 = vmatpush1.msra.mxu0 0.0
    %1596 = vmatprep.subr.mxu0 0.0
    %1597 = vmatpush1.msra.mxu0 0.0
    %1598 = vmatprep.subr.mxu0 0.0
    %1599 = vmatpush1.msra.mxu0 0.0
    %1600 = vmatprep.subr.mxu0 0.0
    %1601 = vmatpush1.msra.mxu0 0.0
    %1602 = vmatprep.subr.mxu0 0.0
    %1603 = vmatpush1.msra.mxu0 0.0
    %1604 = vmatprep.subr.mxu0 0.0
    %1605 = vmatpush1.msra.mxu0 0.0
    %1606 = vmatprep.mubr.f32.mxu0 0.0
    %1607 = vmatmul.mubr.f32.gmra.mrb[0].mxu0 %v37
    %v1608 = vpop.f32.mrb[0].mxu0
    %v1609 = vadd.f32 0.0, %v1608
    %v1610 = vpop.f32.mrb[0].mxu0
    %1611 = vmatprep.mubr.f32.mxu0 0.0
    %1612 = vmatmul.mubr.f32.gmra.mrb[0].mxu0 %v40
    %v1613 = vpop.f32.mrb[0].mxu0
    %v1614 = vadd.f32 0.0, %v1613
    %v1615 = vpop.f32.mrb[0].mxu0
    %1616 = vmatprep.mubr.f32.mxu0 0.0
    %1617 = vmatmul.mubr.f32.gmra.mrb[0].mxu0 %v43
    %v1618 = vpop.f32.mrb[0].mxu0
    %v1619 = vadd.f32 0.0, %v1618
    %v1620 = vpop.f32.mrb[0].mxu0
    %1621 = vmatprep.mubr.f32.mxu0 0.0
    %1622 = vmatmul.mubr.f32.gmra.mrb[0].mxu0 %v46
    %v1623 = vpop.f32.mrb[0].mxu0
    %v1624 = vadd.f32 0.0, %v1623
    %v1625 = vpop.f32.mrb[0].mxu0
    %1626 = vdwg.mxu0
    %s1627 = scalar_lea.vmem [#allocation2], 448
    %1628 = vst.msk [vmem:[%s1627] sm:$0xff] %vm137, %v1609
    %1629 = vst.msk [vmem:[%s1627 + $0x8] sm:$0xff] %vm137, %v1614
    %1630 = vst.msk [vmem:[%s1627 + $0x10] sm:$0xff] %vm137, %v1619
    %1631 = vst.msk [vmem:[%s1627 + $0x18] sm:$0xff] %vm137, %v1624
    %v1632 = vld [vmem:[#allocation3] sm:$0xff]
    %v1633 = vld [vmem:[#allocation3 + $0x8] sm:$0xff]
    %v1634 = vld [vmem:[#allocation3 + $0x10] sm:$0xff]
    %v1635 = vld [vmem:[#allocation3 + $0x18] sm:$0xff]
    %v1636 = vmax.f32 %v1632, %v1609
    %v1637 = vmax.f32 %v1633, %v1614
    %v1638 = vmax.f32 %v1634, %v1619
    %v1639 = vmax.f32 %v1635, %v1624
    %1640 = vst.msk [vmem:[#allocation3] sm:$0xff] %vm137, %v1636
    %1641 = vst.msk [vmem:[#allocation3 + $0x8] sm:$0xff] %vm137, %v1637
    %1642 = vst.msk [vmem:[#allocation3 + $0x10] sm:$0xff] %vm137, %v1638
    %1643 = vst.msk [vmem:[#allocation3 + $0x18] sm:$0xff] %vm137, %v1639
    %s1644 = scalar_lea.vmem [#allocation5], 60
    %v1645 = vld [vmem:[%s1644] sm:$0xf]
    %v1647 = vsel %vm48, %v1645, 0
    %1649 = vmatprep.subr.mxu0 0.0
    %1650 = vmatpush1.msra.mxu0 %v1647
    %1651 = vmatprep.subr.mxu0 0.0
    %1652 = vmatpush1.msra.mxu0 0.0
    %1653 = vmatprep.subr.mxu0 0.0
    %1654 = vmatpush1.msra.mxu0 0.0
    %1655 = vmatprep.subr.mxu0 0.0
    %1656 = vmatpush1.msra.mxu0 0.0
    %1657 = vmatprep.subr.mxu0 0.0
    %1658 = vmatpush1.msra.mxu0 0.0
    %1659 = vmatprep.subr.mxu0 0.0
    %1660 = vmatpush1.msra.mxu0 0.0
    %1661 = vmatprep.subr.mxu0 0.0
    %1662 = vmatpush1.msra.mxu0 0.0
    %1663 = vmatprep.subr.mxu0 0.0
    %1664 = vmatpush1.msra.mxu0 0.0
    %1665 = vmatprep.subr.mxu0 0.0
    %1666 = vmatpush1.msra.mxu0 0.0
    %1667 = vmatprep.subr.mxu0 0.0
    %1668 = vmatpush1.msra.mxu0 0.0
    %1669 = vmatprep.subr.mxu0 0.0
    %1670 = vmatpush1.msra.mxu0 0.0
    %1671 = vmatprep.subr.mxu0 0.0
    %1672 = vmatpush1.msra.mxu0 0.0
    %1673 = vmatprep.subr.mxu0 0.0
    %1674 = vmatpush1.msra.mxu0 0.0
    %1675 = vmatprep.subr.mxu0 0.0
    %1676 = vmatpush1.msra.mxu0 0.0
    %1677 = vmatprep.subr.mxu0 0.0
    %1678 = vmatpush1.msra.mxu0 0.0
    %1679 = vmatprep.subr.mxu0 0.0
    %1680 = vmatpush1.msra.mxu0 0.0
    %1681 = vmatprep.subr.mxu0 0.0
    %1682 = vmatpush1.msra.mxu0 0.0
    %1683 = vmatprep.subr.mxu0 0.0
    %1684 = vmatpush1.msra.mxu0 0.0
    %1685 = vmatprep.subr.mxu0 0.0
    %1686 = vmatpush1.msra.mxu0 0.0
    %1687 = vmatprep.subr.mxu0 0.0
    %1688 = vmatpush1.msra.mxu0 0.0
    %1689 = vmatprep.subr.mxu0 0.0
    %1690 = vmatpush1.msra.mxu0 0.0
    %1691 = vmatprep.subr.mxu0 0.0
    %1692 = vmatpush1.msra.mxu0 0.0
    %1693 = vmatprep.subr.mxu0 0.0
    %1694 = vmatpush1.msra.mxu0 0.0
    %1695 = vmatprep.subr.mxu0 0.0
    %1696 = vmatpush1.msra.mxu0 0.0
    %1697 = vmatprep.subr.mxu0 0.0
    %1698 = vmatpush1.msra.mxu0 0.0
    %1699 = vmatprep.subr.mxu0 0.0
    %1700 = vmatpush1.msra.mxu0 0.0
    %1701 = vmatprep.subr.mxu0 0.0
    %1702 = vmatpush1.msra.mxu0 0.0
    %1703 = vmatprep.subr.mxu0 0.0
    %1704 = vmatpush1.msra.mxu0 0.0
    %1705 = vmatprep.subr.mxu0 0.0
    %1706 = vmatpush1.msra.mxu0 0.0
    %1707 = vmatprep.subr.mxu0 0.0
    %1708 = vmatpush1.msra.mxu0 0.0
    %1709 = vmatprep.subr.mxu0 0.0
    %1710 = vmatpush1.msra.mxu0 0.0
    %1711 = vmatprep.subr.mxu0 0.0
    %1712 = vmatpush1.msra.mxu0 0.0
    %1713 = vmatprep.mubr.f32.mxu0 0.0
    %1714 = vmatmul.mubr.f32.gmra.mrb[0].mxu0 %v37
    %v1715 = vpop.f32.mrb[0].mxu0
    %v1716 = vadd.f32 0.0, %v1715
    %v1717 = vpop.f32.mrb[0].mxu0
    %1718 = vmatprep.mubr.f32.mxu0 0.0
    %1719 = vmatmul.mubr.f32.gmra.mrb[0].mxu0 %v40
    %v1720 = vpop.f32.mrb[0].mxu0
    %v1721 = vadd.f32 0.0, %v1720
    %v1722 = vpop.f32.mrb[0].mxu0
    %1723 = vmatprep.mubr.f32.mxu0 0.0
    %1724 = vmatmul.mubr.f32.gmra.mrb[0].mxu0 %v43
    %v1725 = vpop.f32.mrb[0].mxu0
    %v1726 = vadd.f32 0.0, %v1725
    %v1727 = vpop.f32.mrb[0].mxu0
    %1728 = vmatprep.mubr.f32.mxu0 0.0
    %1729 = vmatmul.mubr.f32.gmra.mrb[0].mxu0 %v46
    %v1730 = vpop.f32.mrb[0].mxu0
    %v1731 = vadd.f32 0.0, %v1730
    %v1732 = vpop.f32.mrb[0].mxu0
    %1733 = vdwg.mxu0
    %s1734 = scalar_lea.vmem [#allocation2], 480
    %1735 = vst.msk [vmem:[%s1734] sm:$0xff] %vm137, %v1716
    %1736 = vst.msk [vmem:[%s1734 + $0x8] sm:$0xff] %vm137, %v1721
    %1737 = vst.msk [vmem:[%s1734 + $0x10] sm:$0xff] %vm137, %v1726
    %1738 = vst.msk [vmem:[%s1734 + $0x18] sm:$0xff] %vm137, %v1731
    %v1739 = vld [vmem:[#allocation3] sm:$0xff]
    %v1740 = vld [vmem:[#allocation3 + $0x8] sm:$0xff]
    %v1741 = vld [vmem:[#allocation3 + $0x10] sm:$0xff]
    %v1742 = vld [vmem:[#allocation3 + $0x18] sm:$0xff]
    %v1743 = vmax.f32 %v1739, %v1716
    %v1744 = vmax.f32 %v1740, %v1721
    %v1745 = vmax.f32 %v1741, %v1726
    %v1746 = vmax.f32 %v1742, %v1731
    %1747 = vst.msk [vmem:[#allocation3] sm:$0xff] %vm137, %v1743
    %1748 = vst.msk [vmem:[#allocation3 + $0x8] sm:$0xff] %vm137, %v1744
    %1749 = vst.msk [vmem:[#allocation3 + $0x10] sm:$0xff] %vm137, %v1745
    %1750 = vst.msk [vmem:[#allocation3 + $0x18] sm:$0xff] %vm137, %v1746
    %v1751 = vld [vmem:[#allocation2] sm:$0xff]
    %v1752 = vld [vmem:[#allocation2 + $0x8] sm:$0xff]
    %v1753 = vld [vmem:[#allocation2 + $0x10] sm:$0xff]
    %v1754 = vld [vmem:[#allocation2 + $0x18] sm:$0xff]
    %v1755 = vld [vmem:[#allocation3] sm:$0xff]
    %v1756 = vld [vmem:[#allocation3 + $0x8] sm:$0xff]
    %v1757 = vld [vmem:[#allocation3 + $0x10] sm:$0xff]
    %v1758 = vld [vmem:[#allocation3 + $0x18] sm:$0xff]
    %v1759 = vsub.f32 %v1751, %v1755
    %v1760 = vsub.f32 %v1752, %v1756
    %v1761 = vsub.f32 %v1753, %v1757
    %v1762 = vsub.f32 %v1754, %v1758
    %v1763 = vmul.f32 %v1759, 1.442695
    %v1764 = vpow.pop %v1763
    %v1765 = vmul.f32 %v1760, 1.442695
    %v1766 = vpow.pop %v1765
    %v1767 = vmul.f32 %v1761, 1.442695
    %v1768 = vpow.pop %v1767
    %v1769 = vmul.f32 %v1762, 1.442695
    %v1770 = vpow.pop %v1769
    %1771 = vst.msk [vmem:[#allocation2] sm:$0xff] %vm137, %v1764
    %1772 = vst.msk [vmem:[#allocation2 + $0x8] sm:$0xff] %vm137, %v1766
    %1773 = vst.msk [vmem:[#allocation2 + $0x10] sm:$0xff] %vm137, %v1768
    %1774 = vst.msk [vmem:[#allocation2 + $0x18] sm:$0xff] %vm137, %v1770
    %1775 = vst.msk [vmem:[#allocation4] sm:$0xff] %vm137, %v1764
    %1776 = vst.msk [vmem:[#allocation4 + $0x8] sm:$0xff] %vm137, %v1766
    %1777 = vst.msk [vmem:[#allocation4 + $0x10] sm:$0xff] %vm137, %v1768
    %1778 = vst.msk [vmem:[#allocation4 + $0x18] sm:$0xff] %vm137, %v1770
    %v1779 = vld [vmem:[%s236] sm:$0xff]
    %v1780 = vld [vmem:[%s236 + $0x8] sm:$0xff]
    %v1781 = vld [vmem:[%s236 + $0x10] sm:$0xff]
    %v1782 = vld [vmem:[%s236 + $0x18] sm:$0xff]
    %v1783 = vld [vmem:[#allocation3] sm:$0xff]
    %v1784 = vld [vmem:[#allocation3 + $0x8] sm:$0xff]
    %v1785 = vld [vmem:[#allocation3 + $0x10] sm:$0xff]
    %v1786 = vld [vmem:[#allocation3 + $0x18] sm:$0xff]
    %v1787 = vsub.f32 %v1779, %v1783
    %v1788 = vsub.f32 %v1780, %v1784
    %v1789 = vsub.f32 %v1781, %v1785
    %v1790 = vsub.f32 %v1782, %v1786
    %v1791 = vmul.f32 %v1787, 1.442695
    %v1792 = vpow.pop %v1791
    %v1793 = vmul.f32 %v1788, 1.442695
    %v1794 = vpow.pop %v1793
    %v1795 = vmul.f32 %v1789, 1.442695
    %v1796 = vpow.pop %v1795
    %v1797 = vmul.f32 %v1790, 1.442695
    %v1798 = vpow.pop %v1797
    %1799 = vst.msk [vmem:[%s236] sm:$0xff] %vm137, %v1792
    %1800 = vst.msk [vmem:[%s236 + $0x8] sm:$0xff] %vm137, %v1794
    %1801 = vst.msk [vmem:[%s236 + $0x10] sm:$0xff] %vm137, %v1796
    %1802 = vst.msk [vmem:[%s236 + $0x18] sm:$0xff] %vm137, %v1798
    %v1803 = vld [vmem:[#allocation4] sm:$0xff]
    %v1804 = vld [vmem:[#allocation4 + $0x8] sm:$0xff]
    %v1805 = vld [vmem:[#allocation4 + $0x10] sm:$0xff]
    %v1806 = vld [vmem:[#allocation4 + $0x18] sm:$0xff]
    %v1807 = vadd.f32 %v1803, %v1792
    %v1808 = vadd.f32 %v1804, %v1794
    %v1809 = vadd.f32 %v1805, %v1796
    %v1810 = vadd.f32 %v1806, %v1798
    %1811 = vst.msk [vmem:[#allocation4] sm:$0xff] %vm137, %v1807
    %1812 = vst.msk [vmem:[#allocation4 + $0x8] sm:$0xff] %vm137, %v1808
    %1813 = vst.msk [vmem:[#allocation4 + $0x10] sm:$0xff] %vm137, %v1809
    %1814 = vst.msk [vmem:[#allocation4 + $0x18] sm:$0xff] %vm137, %v1810
    %v1815 = vld [vmem:[%s343] sm:$0xff]
    %v1816 = vld [vmem:[%s343 + $0x8] sm:$0xff]
    %v1817 = vld [vmem:[%s343 + $0x10] sm:$0xff]
    %v1818 = vld [vmem:[%s343 + $0x18] sm:$0xff]
    %v1819 = vld [vmem:[#allocation3] sm:$0xff]
    %v1820 = vld [vmem:[#allocation3 + $0x8] sm:$0xff]
    %v1821 = vld [vmem:[#allocation3 + $0x10] sm:$0xff]
    %v1822 = vld [vmem:[#allocation3 + $0x18] sm:$0xff]
    %v1823 = vsub.f32 %v1815, %v1819
    %v1824 = vsub.f32 %v1816, %v1820
    %v1825 = vsub.f32 %v1817, %v1821
    %v1826 = vsub.f32 %v1818, %v1822
    %v1827 = vmul.f32 %v1823, 1.442695
    %v1828 = vpow.pop %v1827
    %v1829 = vmul.f32 %v1824, 1.442695
    %v1830 = vpow.pop %v1829
    %v1831 = vmul.f32 %v1825, 1.442695
    %v1832 = vpow.pop %v1831
    %v1833 = vmul.f32 %v1826, 1.442695
    %v1834 = vpow.pop %v1833
    %1835 = vst.msk [vmem:[%s343] sm:$0xff] %vm137, %v1828
    %1836 = vst.msk [vmem:[%s343 + $0x8] sm:$0xff] %vm137, %v1830
    %1837 = vst.msk [vmem:[%s343 + $0x10] sm:$0xff] %vm137, %v1832
    %1838 = vst.msk [vmem:[%s343 + $0x18] sm:$0xff] %vm137, %v1834
    %v1839 = vld [vmem:[#allocation4] sm:$0xff]
    %v1840 = vld [vmem:[#allocation4 + $0x8] sm:$0xff]
    %v1841 = vld [vmem:[#allocation4 + $0x10] sm:$0xff]
    %v1842 = vld [vmem:[#allocation4 + $0x18] sm:$0xff]
    %v1843 = vadd.f32 %v1839, %v1828
    %v1844 = vadd.f32 %v1840, %v1830
    %v1845 = vadd.f32 %v1841, %v1832
    %v1846 = vadd.f32 %v1842, %v1834
    %1847 = vst.msk [vmem:[#allocation4] sm:$0xff] %vm137, %v1843
    %1848 = vst.msk [vmem:[#allocation4 + $0x8] sm:$0xff] %vm137, %v1844
    %1849 = vst.msk [vmem:[#allocation4 + $0x10] sm:$0xff] %vm137, %v1845
    %1850 = vst.msk [vmem:[#allocation4 + $0x18] sm:$0xff] %vm137, %v1846
    %v1851 = vld [vmem:[%s450] sm:$0xff]
    %v1852 = vld [vmem:[%s450 + $0x8] sm:$0xff]
    %v1853 = vld [vmem:[%s450 + $0x10] sm:$0xff]
    %v1854 = vld [vmem:[%s450 + $0x18] sm:$0xff]
    %v1855 = vld [vmem:[#allocation3] sm:$0xff]
    %v1856 = vld [vmem:[#allocation3 + $0x8] sm:$0xff]
    %v1857 = vld [vmem:[#allocation3 + $0x10] sm:$0xff]
    %v1858 = vld [vmem:[#allocation3 + $0x18] sm:$0xff]
    %v1859 = vsub.f32 %v1851, %v1855
    %v1860 = vsub.f32 %v1852, %v1856
    %v1861 = vsub.f32 %v1853, %v1857
    %v1862 = vsub.f32 %v1854, %v1858
    %v1863 = vmul.f32 %v1859, 1.442695
    %v1864 = vpow.pop %v1863
    %v1865 = vmul.f32 %v1860, 1.442695
    %v1866 = vpow.pop %v1865
    %v1867 = vmul.f32 %v1861, 1.442695
    %v1868 = vpow.pop %v1867
    %v1869 = vmul.f32 %v1862, 1.442695
    %v1870 = vpow.pop %v1869
    %1871 = vst.msk [vmem:[%s450] sm:$0xff] %vm137, %v1864
    %1872 = vst.msk [vmem:[%s450 + $0x8] sm:$0xff] %vm137, %v1866
    %1873 = vst.msk [vmem:[%s450 + $0x10] sm:$0xff] %vm137, %v1868
    %1874 = vst.msk [vmem:[%s450 + $0x18] sm:$0xff] %vm137, %v1870
    %v1875 = vld [vmem:[#allocation4] sm:$0xff]
    %v1876 = vld [vmem:[#allocation4 + $0x8] sm:$0xff]
    %v1877 = vld [vmem:[#allocation4 + $0x10] sm:$0xff]
    %v1878 = vld [vmem:[#allocation4 + $0x18] sm:$0xff]
    %v1879 = vadd.f32 %v1875, %v1864
    %v1880 = vadd.f32 %v1876, %v1866
    %v1881 = vadd.f32 %v1877, %v1868
    %v1882 = vadd.f32 %v1878, %v1870
    %1883 = vst.msk [vmem:[#allocation4] sm:$0xff] %vm137, %v1879
    %1884 = vst.msk [vmem:[#allocation4 + $0x8] sm:$0xff] %vm137, %v1880
    %1885 = vst.msk [vmem:[#allocation4 + $0x10] sm:$0xff] %vm137, %v1881
    %1886 = vst.msk [vmem:[#allocation4 + $0x18] sm:$0xff] %vm137, %v1882
    %v1887 = vld [vmem:[%s557] sm:$0xff]
    %v1888 = vld [vmem:[%s557 + $0x8] sm:$0xff]
    %v1889 = vld [vmem:[%s557 + $0x10] sm:$0xff]
    %v1890 = vld [vmem:[%s557 + $0x18] sm:$0xff]
    %v1891 = vld [vmem:[#allocation3] sm:$0xff]
    %v1892 = vld [vmem:[#allocation3 + $0x8] sm:$0xff]
    %v1893 = vld [vmem:[#allocation3 + $0x10] sm:$0xff]
    %v1894 = vld [vmem:[#allocation3 + $0x18] sm:$0xff]
    %v1895 = vsub.f32 %v1887, %v1891
    %v1896 = vsub.f32 %v1888, %v1892
    %v1897 = vsub.f32 %v1889, %v1893
    %v1898 = vsub.f32 %v1890, %v1894
    %v1899 = vmul.f32 %v1895, 1.442695
    %v1900 = vpow.pop %v1899
    %v1901 = vmul.f32 %v1896, 1.442695
    %v1902 = vpow.pop %v1901
    %v1903 = vmul.f32 %v1897, 1.442695
    %v1904 = vpow.pop %v1903
    %v1905 = vmul.f32 %v1898, 1.442695
    %v1906 = vpow.pop %v1905
    %1907 = vst.msk [vmem:[%s557] sm:$0xff] %vm137, %v1900
    %1908 = vst.msk [vmem:[%s557 + $0x8] sm:$0xff] %vm137, %v1902
    %1909 = vst.msk [vmem:[%s557 + $0x10] sm:$0xff] %vm137, %v1904
    %1910 = vst.msk [vmem:[%s557 + $0x18] sm:$0xff] %vm137, %v1906
    %v1911 = vld [vmem:[#allocation4] sm:$0xff]
    %v1912 = vld [vmem:[#allocation4 + $0x8] sm:$0xff]
    %v1913 = vld [vmem:[#allocation4 + $0x10] sm:$0xff]
    %v1914 = vld [vmem:[#allocation4 + $0x18] sm:$0xff]
    %v1915 = vadd.f32 %v1911, %v1900
    %v1916 = vadd.f32 %v1912, %v1902
    %v1917 = vadd.f32 %v1913, %v1904
    %v1918 = vadd.f32 %v1914, %v1906
    %1919 = vst.msk [vmem:[#allocation4] sm:$0xff] %vm137, %v1915
    %1920 = vst.msk [vmem:[#allocation4 + $0x8] sm:$0xff] %vm137, %v1916
    %1921 = vst.msk [vmem:[#allocation4 + $0x10] sm:$0xff] %vm137, %v1917
    %1922 = vst.msk [vmem:[#allocation4 + $0x18] sm:$0xff] %vm137, %v1918
    %v1923 = vld [vmem:[%s664] sm:$0xff]
    %v1924 = vld [vmem:[%s664 + $0x8] sm:$0xff]
    %v1925 = vld [vmem:[%s664 + $0x10] sm:$0xff]
    %v1926 = vld [vmem:[%s664 + $0x18] sm:$0xff]
    %v1927 = vld [vmem:[#allocation3] sm:$0xff]
    %v1928 = vld [vmem:[#allocation3 + $0x8] sm:$0xff]
    %v1929 = vld [vmem:[#allocation3 + $0x10] sm:$0xff]
    %v1930 = vld [vmem:[#allocation3 + $0x18] sm:$0xff]
    %v1931 = vsub.f32 %v1923, %v1927
    %v1932 = vsub.f32 %v1924, %v1928
    %v1933 = vsub.f32 %v1925, %v1929
    %v1934 = vsub.f32 %v1926, %v1930
    %v1935 = vmul.f32 %v1931, 1.442695
    %v1936 = vpow.pop %v1935
    %v1937 = vmul.f32 %v1932, 1.442695
    %v1938 = vpow.pop %v1937
    %v1939 = vmul.f32 %v1933, 1.442695
    %v1940 = vpow.pop %v1939
    %v1941 = vmul.f32 %v1934, 1.442695
    %v1942 = vpow.pop %v1941
    %1943 = vst.msk [vmem:[%s664] sm:$0xff] %vm137, %v1936
    %1944 = vst.msk [vmem:[%s664 + $0x8] sm:$0xff] %vm137, %v1938
    %1945 = vst.msk [vmem:[%s664 + $0x10] sm:$0xff] %vm137, %v1940
    %1946 = vst.msk [vmem:[%s664 + $0x18] sm:$0xff] %vm137, %v1942
    %v1947 = vld [vmem:[#allocation4] sm:$0xff]
    %v1948 = vld [vmem:[#allocation4 + $0x8] sm:$0xff]
    %v1949 = vld [vmem:[#allocation4 + $0x10] sm:$0xff]
    %v1950 = vld [vmem:[#allocation4 + $0x18] sm:$0xff]
    %v1951 = vadd.f32 %v1947, %v1936
    %v1952 = vadd.f32 %v1948, %v1938
    %v1953 = vadd.f32 %v1949, %v1940
    %v1954 = vadd.f32 %v1950, %v1942
    %1955 = vst.msk [vmem:[#allocation4] sm:$0xff] %vm137, %v1951
    %1956 = vst.msk [vmem:[#allocation4 + $0x8] sm:$0xff] %vm137, %v1952
    %1957 = vst.msk [vmem:[#allocation4 + $0x10] sm:$0xff] %vm137, %v1953
    %1958 = vst.msk [vmem:[#allocation4 + $0x18] sm:$0xff] %vm137, %v1954
    %v1959 = vld [vmem:[%s771] sm:$0xff]
    %v1960 = vld [vmem:[%s771 + $0x8] sm:$0xff]
    %v1961 = vld [vmem:[%s771 + $0x10] sm:$0xff]
    %v1962 = vld [vmem:[%s771 + $0x18] sm:$0xff]
    %v1963 = vld [vmem:[#allocation3] sm:$0xff]
    %v1964 = vld [vmem:[#allocation3 + $0x8] sm:$0xff]
    %v1965 = vld [vmem:[#allocation3 + $0x10] sm:$0xff]
    %v1966 = vld [vmem:[#allocation3 + $0x18] sm:$0xff]
    %v1967 = vsub.f32 %v1959, %v1963
    %v1968 = vsub.f32 %v1960, %v1964
    %v1969 = vsub.f32 %v1961, %v1965
    %v1970 = vsub.f32 %v1962, %v1966
    %v1971 = vmul.f32 %v1967, 1.442695
    %v1972 = vpow.pop %v1971
    %v1973 = vmul.f32 %v1968, 1.442695
    %v1974 = vpow.pop %v1973
    %v1975 = vmul.f32 %v1969, 1.442695
    %v1976 = vpow.pop %v1975
    %v1977 = vmul.f32 %v1970, 1.442695
    %v1978 = vpow.pop %v1977
    %1979 = vst.msk [vmem:[%s771] sm:$0xff] %vm137, %v1972
    %1980 = vst.msk [vmem:[%s771 + $0x8] sm:$0xff] %vm137, %v1974
    %1981 = vst.msk [vmem:[%s771 + $0x10] sm:$0xff] %vm137, %v1976
    %1982 = vst.msk [vmem:[%s771 + $0x18] sm:$0xff] %vm137, %v1978
    %v1983 = vld [vmem:[#allocation4] sm:$0xff]
    %v1984 = vld [vmem:[#allocation4 + $0x8] sm:$0xff]
    %v1985 = vld [vmem:[#allocation4 + $0x10] sm:$0xff]
    %v1986 = vld [vmem:[#allocation4 + $0x18] sm:$0xff]
    %v1987 = vadd.f32 %v1983, %v1972
    %v1988 = vadd.f32 %v1984, %v1974
    %v1989 = vadd.f32 %v1985, %v1976
    %v1990 = vadd.f32 %v1986, %v1978
    %1991 = vst.msk [vmem:[#allocation4] sm:$0xff] %vm137, %v1987
    %1992 = vst.msk [vmem:[#allocation4 + $0x8] sm:$0xff] %vm137, %v1988
    %1993 = vst.msk [vmem:[#allocation4 + $0x10] sm:$0xff] %vm137, %v1989
    %1994 = vst.msk [vmem:[#allocation4 + $0x18] sm:$0xff] %vm137, %v1990
    %v1995 = vld [vmem:[%s878] sm:$0xff]
    %v1996 = vld [vmem:[%s878 + $0x8] sm:$0xff]
    %v1997 = vld [vmem:[%s878 + $0x10] sm:$0xff]
    %v1998 = vld [vmem:[%s878 + $0x18] sm:$0xff]
    %v1999 = vld [vmem:[#allocation3] sm:$0xff]
    %v2000 = vld [vmem:[#allocation3 + $0x8] sm:$0xff]
    %v2001 = vld [vmem:[#allocation3 + $0x10] sm:$0xff]
    %v2002 = vld [vmem:[#allocation3 + $0x18] sm:$0xff]
    %v2003 = vsub.f32 %v1995, %v1999
    %v2004 = vsub.f32 %v1996, %v2000
    %v2005 = vsub.f32 %v1997, %v2001
    %v2006 = vsub.f32 %v1998, %v2002
    %v2007 = vmul.f32 %v2003, 1.442695
    %v2008 = vpow.pop %v2007
    %v2009 = vmul.f32 %v2004, 1.442695
    %v2010 = vpow.pop %v2009
    %v2011 = vmul.f32 %v2005, 1.442695
    %v2012 = vpow.pop %v2011
    %v2013 = vmul.f32 %v2006, 1.442695
    %v2014 = vpow.pop %v2013
    %2015 = vst.msk [vmem:[%s878] sm:$0xff] %vm137, %v2008
    %2016 = vst.msk [vmem:[%s878 + $0x8] sm:$0xff] %vm137, %v2010
    %2017 = vst.msk [vmem:[%s878 + $0x10] sm:$0xff] %vm137, %v2012
    %2018 = vst.msk [vmem:[%s878 + $0x18] sm:$0xff] %vm137, %v2014
    %v2019 = vld [vmem:[#allocation4] sm:$0xff]
    %v2020 = vld [vmem:[#allocation4 + $0x8] sm:$0xff]
    %v2021 = vld [vmem:[#allocation4 + $0x10] sm:$0xff]
    %v2022 = vld [vmem:[#allocation4 + $0x18] sm:$0xff]
    %v2023 = vadd.f32 %v2019, %v2008
    %v2024 = vadd.f32 %v2020, %v2010
    %v2025 = vadd.f32 %v2021, %v2012
    %v2026 = vadd.f32 %v2022, %v2014
    %2027 = vst.msk [vmem:[#allocation4] sm:$0xff] %vm137, %v2023
    %2028 = vst.msk [vmem:[#allocation4 + $0x8] sm:$0xff] %vm137, %v2024
    %2029 = vst.msk [vmem:[#allocation4 + $0x10] sm:$0xff] %vm137, %v2025
    %2030 = vst.msk [vmem:[#allocation4 + $0x18] sm:$0xff] %vm137, %v2026
    %v2031 = vld [vmem:[%s985] sm:$0xff]
    %v2032 = vld [vmem:[%s985 + $0x8] sm:$0xff]
    %v2033 = vld [vmem:[%s985 + $0x10] sm:$0xff]
    %v2034 = vld [vmem:[%s985 + $0x18] sm:$0xff]
    %v2035 = vld [vmem:[#allocation3] sm:$0xff]
    %v2036 = vld [vmem:[#allocation3 + $0x8] sm:$0xff]
    %v2037 = vld [vmem:[#allocation3 + $0x10] sm:$0xff]
    %v2038 = vld [vmem:[#allocation3 + $0x18] sm:$0xff]
    %v2039 = vsub.f32 %v2031, %v2035
    %v2040 = vsub.f32 %v2032, %v2036
    %v2041 = vsub.f32 %v2033, %v2037
    %v2042 = vsub.f32 %v2034, %v2038
    %v2043 = vmul.f32 %v2039, 1.442695
    %v2044 = vpow.pop %v2043
    %v2045 = vmul.f32 %v2040, 1.442695
    %v2046 = vpow.pop %v2045
    %v2047 = vmul.f32 %v2041, 1.442695
    %v2048 = vpow.pop %v2047
    %v2049 = vmul.f32 %v2042, 1.442695
    %v2050 = vpow.pop %v2049
    %2051 = vst.msk [vmem:[%s985] sm:$0xff] %vm137, %v2044
    %2052 = vst.msk [vmem:[%s985 + $0x8] sm:$0xff] %vm137, %v2046
    %2053 = vst.msk [vmem:[%s985 + $0x10] sm:$0xff] %vm137, %v2048
    %2054 = vst.msk [vmem:[%s985 + $0x18] sm:$0xff] %vm137, %v2050
    %v2055 = vld [vmem:[#allocation4] sm:$0xff]
    %v2056 = vld [vmem:[#allocation4 + $0x8] sm:$0xff]
    %v2057 = vld [vmem:[#allocation4 + $0x10] sm:$0xff]
    %v2058 = vld [vmem:[#allocation4 + $0x18] sm:$0xff]
    %v2059 = vadd.f32 %v2055, %v2044
    %v2060 = vadd.f32 %v2056, %v2046
    %v2061 = vadd.f32 %v2057, %v2048
    %v2062 = vadd.f32 %v2058, %v2050
    %2063 = vst.msk [vmem:[#allocation4] sm:$0xff] %vm137, %v2059
    %2064 = vst.msk [vmem:[#allocation4 + $0x8] sm:$0xff] %vm137, %v2060
    %2065 = vst.msk [vmem:[#allocation4 + $0x10] sm:$0xff] %vm137, %v2061
    %2066 = vst.msk [vmem:[#allocation4 + $0x18] sm:$0xff] %vm137, %v2062
    %v2067 = vld [vmem:[%s1092] sm:$0xff]
    %v2068 = vld [vmem:[%s1092 + $0x8] sm:$0xff]
    %v2069 = vld [vmem:[%s1092 + $0x10] sm:$0xff]
    %v2070 = vld [vmem:[%s1092 + $0x18] sm:$0xff]
    %v2071 = vld [vmem:[#allocation3] sm:$0xff]
    %v2072 = vld [vmem:[#allocation3 + $0x8] sm:$0xff]
    %v2073 = vld [vmem:[#allocation3 + $0x10] sm:$0xff]
    %v2074 = vld [vmem:[#allocation3 + $0x18] sm:$0xff]
    %v2075 = vsub.f32 %v2067, %v2071
    %v2076 = vsub.f32 %v2068, %v2072
    %v2077 = vsub.f32 %v2069, %v2073
    %v2078 = vsub.f32 %v2070, %v2074
    %v2079 = vmul.f32 %v2075, 1.442695
    %v2080 = vpow.pop %v2079
    %v2081 = vmul.f32 %v2076, 1.442695
    %v2082 = vpow.pop %v2081
    %v2083 = vmul.f32 %v2077, 1.442695
    %v2084 = vpow.pop %v2083
    %v2085 = vmul.f32 %v2078, 1.442695
    %v2086 = vpow.pop %v2085
    %2087 = vst.msk [vmem:[%s1092] sm:$0xff] %vm137, %v2080
    %2088 = vst.msk [vmem:[%s1092 + $0x8] sm:$0xff] %vm137, %v2082
    %2089 = vst.msk [vmem:[%s1092 + $0x10] sm:$0xff] %vm137, %v2084
    %2090 = vst.msk [vmem:[%s1092 + $0x18] sm:$0xff] %vm137, %v2086
    %v2091 = vld [vmem:[#allocation4] sm:$0xff]
    %v2092 = vld [vmem:[#allocation4 + $0x8] sm:$0xff]
    %v2093 = vld [vmem:[#allocation4 + $0x10] sm:$0xff]
    %v2094 = vld [vmem:[#allocation4 + $0x18] sm:$0xff]
    %v2095 = vadd.f32 %v2091, %v2080
    %v2096 = vadd.f32 %v2092, %v2082
    %v2097 = vadd.f32 %v2093, %v2084
    %v2098 = vadd.f32 %v2094, %v2086
    %2099 = vst.msk [vmem:[#allocation4] sm:$0xff] %vm137, %v2095
    %2100 = vst.msk [vmem:[#allocation4 + $0x8] sm:$0xff] %vm137, %v2096
    %2101 = vst.msk [vmem:[#allocation4 + $0x10] sm:$0xff] %vm137, %v2097
    %2102 = vst.msk [vmem:[#allocation4 + $0x18] sm:$0xff] %vm137, %v2098
    %v2103 = vld [vmem:[%s1199] sm:$0xff]
    %v2104 = vld [vmem:[%s1199 + $0x8] sm:$0xff]
    %v2105 = vld [vmem:[%s1199 + $0x10] sm:$0xff]
    %v2106 = vld [vmem:[%s1199 + $0x18] sm:$0xff]
    %v2107 = vld [vmem:[#allocation3] sm:$0xff]
    %v2108 = vld [vmem:[#allocation3 + $0x8] sm:$0xff]
    %v2109 = vld [vmem:[#allocation3 + $0x10] sm:$0xff]
    %v2110 = vld [vmem:[#allocation3 + $0x18] sm:$0xff]
    %v2111 = vsub.f32 %v2103, %v2107
    %v2112 = vsub.f32 %v2104, %v2108
    %v2113 = vsub.f32 %v2105, %v2109
    %v2114 = vsub.f32 %v2106, %v2110
    %v2115 = vmul.f32 %v2111, 1.442695
    %v2116 = vpow.pop %v2115
    %v2117 = vmul.f32 %v2112, 1.442695
    %v2118 = vpow.pop %v2117
    %v2119 = vmul.f32 %v2113, 1.442695
    %v2120 = vpow.pop %v2119
    %v2121 = vmul.f32 %v2114, 1.442695
    %v2122 = vpow.pop %v2121
    %2123 = vst.msk [vmem:[%s1199] sm:$0xff] %vm137, %v2116
    %2124 = vst.msk [vmem:[%s1199 + $0x8] sm:$0xff] %vm137, %v2118
    %2125 = vst.msk [vmem:[%s1199 + $0x10] sm:$0xff] %vm137, %v2120
    %2126 = vst.msk [vmem:[%s1199 + $0x18] sm:$0xff] %vm137, %v2122
    %v2127 = vld [vmem:[#allocation4] sm:$0xff]
    %v2128 = vld [vmem:[#allocation4 + $0x8] sm:$0xff]
    %v2129 = vld [vmem:[#allocation4 + $0x10] sm:$0xff]
    %v2130 = vld [vmem:[#allocation4 + $0x18] sm:$0xff]
    %v2131 = vadd.f32 %v2127, %v2116
    %v2132 = vadd.f32 %v2128, %v2118
    %v2133 = vadd.f32 %v2129, %v2120
    %v2134 = vadd.f32 %v2130, %v2122
    %2135 = vst.msk [vmem:[#allocation4] sm:$0xff] %vm137, %v2131
    %2136 = vst.msk [vmem:[#allocation4 + $0x8] sm:$0xff] %vm137, %v2132
    %2137 = vst.msk [vmem:[#allocation4 + $0x10] sm:$0xff] %vm137, %v2133
    %2138 = vst.msk [vmem:[#allocation4 + $0x18] sm:$0xff] %vm137, %v2134
    %v2139 = vld [vmem:[%s1306] sm:$0xff]
    %v2140 = vld [vmem:[%s1306 + $0x8] sm:$0xff]
    %v2141 = vld [vmem:[%s1306 + $0x10] sm:$0xff]
    %v2142 = vld [vmem:[%s1306 + $0x18] sm:$0xff]
    %v2143 = vld [vmem:[#allocation3] sm:$0xff]
    %v2144 = vld [vmem:[#allocation3 + $0x8] sm:$0xff]
    %v2145 = vld [vmem:[#allocation3 + $0x10] sm:$0xff]
    %v2146 = vld [vmem:[#allocation3 + $0x18] sm:$0xff]
    %v2147 = vsub.f32 %v2139, %v2143
    %v2148 = vsub.f32 %v2140, %v2144
    %v2149 = vsub.f32 %v2141, %v2145
    %v2150 = vsub.f32 %v2142, %v2146
    %v2151 = vmul.f32 %v2147, 1.442695
    %v2152 = vpow.pop %v2151
    %v2153 = vmul.f32 %v2148, 1.442695
    %v2154 = vpow.pop %v2153
    %v2155 = vmul.f32 %v2149, 1.442695
    %v2156 = vpow.pop %v2155
    %v2157 = vmul.f32 %v2150, 1.442695
    %v2158 = vpow.pop %v2157
    %2159 = vst.msk [vmem:[%s1306] sm:$0xff] %vm137, %v2152
    %2160 = vst.msk [vmem:[%s1306 + $0x8] sm:$0xff] %vm137, %v2154
    %2161 = vst.msk [vmem:[%s1306 + $0x10] sm:$0xff] %vm137, %v2156
    %2162 = vst.msk [vmem:[%s1306 + $0x18] sm:$0xff] %vm137, %v2158
    %v2163 = vld [vmem:[#allocation4] sm:$0xff]
    %v2164 = vld [vmem:[#allocation4 + $0x8] sm:$0xff]
    %v2165 = vld [vmem:[#allocation4 + $0x10] sm:$0xff]
    %v2166 = vld [vmem:[#allocation4 + $0x18] sm:$0xff]
    %v2167 = vadd.f32 %v2163, %v2152
    %v2168 = vadd.f32 %v2164, %v2154
    %v2169 = vadd.f32 %v2165, %v2156
    %v2170 = vadd.f32 %v2166, %v2158
    %2171 = vst.msk [vmem:[#allocation4] sm:$0xff] %vm137, %v2167
    %2172 = vst.msk [vmem:[#allocation4 + $0x8] sm:$0xff] %vm137, %v2168
    %2173 = vst.msk [vmem:[#allocation4 + $0x10] sm:$0xff] %vm137, %v2169
    %2174 = vst.msk [vmem:[#allocation4 + $0x18] sm:$0xff] %vm137, %v2170
    %v2175 = vld [vmem:[%s1413] sm:$0xff]
    %v2176 = vld [vmem:[%s1413 + $0x8] sm:$0xff]
    %v2177 = vld [vmem:[%s1413 + $0x10] sm:$0xff]
    %v2178 = vld [vmem:[%s1413 + $0x18] sm:$0xff]
    %v2179 = vld [vmem:[#allocation3] sm:$0xff]
    %v2180 = vld [vmem:[#allocation3 + $0x8] sm:$0xff]
    %v2181 = vld [vmem:[#allocation3 + $0x10] sm:$0xff]
    %v2182 = vld [vmem:[#allocation3 + $0x18] sm:$0xff]
    %v2183 = vsub.f32 %v2175, %v2179
    %v2184 = vsub.f32 %v2176, %v2180
    %v2185 = vsub.f32 %v2177, %v2181
    %v2186 = vsub.f32 %v2178, %v2182
    %v2187 = vmul.f32 %v2183, 1.442695
    %v2188 = vpow.pop %v2187
    %v2189 = vmul.f32 %v2184, 1.442695
    %v2190 = vpow.pop %v2189
    %v2191 = vmul.f32 %v2185, 1.442695
    %v2192 = vpow.pop %v2191
    %v2193 = vmul.f32 %v2186, 1.442695
    %v2194 = vpow.pop %v2193
    %2195 = vst.msk [vmem:[%s1413] sm:$0xff] %vm137, %v2188
    %2196 = vst.msk [vmem:[%s1413 + $0x8] sm:$0xff] %vm137, %v2190
    %2197 = vst.msk [vmem:[%s1413 + $0x10] sm:$0xff] %vm137, %v2192
    %2198 = vst.msk [vmem:[%s1413 + $0x18] sm:$0xff] %vm137, %v2194
    %v2199 = vld [vmem:[#allocation4] sm:$0xff]
    %v2200 = vld [vmem:[#allocation4 + $0x8] sm:$0xff]
    %v2201 = vld [vmem:[#allocation4 + $0x10] sm:$0xff]
    %v2202 = vld [vmem:[#allocation4 + $0x18] sm:$0xff]
    %v2203 = vadd.f32 %v2199, %v2188
    %v2204 = vadd.f32 %v2200, %v2190
    %v2205 = vadd.f32 %v2201, %v2192
    %v2206 = vadd.f32 %v2202, %v2194
    %2207 = vst.msk [vmem:[#allocation4] sm:$0xff] %vm137, %v2203
    %2208 = vst.msk [vmem:[#allocation4 + $0x8] sm:$0xff] %vm137, %v2204
    %2209 = vst.msk [vmem:[#allocation4 + $0x10] sm:$0xff] %vm137, %v2205
    %2210 = vst.msk [vmem:[#allocation4 + $0x18] sm:$0xff] %vm137, %v2206
    %v2211 = vld [vmem:[%s1520] sm:$0xff]
    %v2212 = vld [vmem:[%s1520 + $0x8] sm:$0xff]
    %v2213 = vld [vmem:[%s1520 + $0x10] sm:$0xff]
    %v2214 = vld [vmem:[%s1520 + $0x18] sm:$0xff]
    %v2215 = vld [vmem:[#allocation3] sm:$0xff]
    %v2216 = vld [vmem:[#allocation3 + $0x8] sm:$0xff]
    %v2217 = vld [vmem:[#allocation3 + $0x10] sm:$0xff]
    %v2218 = vld [vmem:[#allocation3 + $0x18] sm:$0xff]
    %v2219 = vsub.f32 %v2211, %v2215
    %v2220 = vsub.f32 %v2212, %v2216
    %v2221 = vsub.f32 %v2213, %v2217
    %v2222 = vsub.f32 %v2214, %v2218
    %v2223 = vmul.f32 %v2219, 1.442695
    %v2224 = vpow.pop %v2223
    %v2225 = vmul.f32 %v2220, 1.442695
    %v2226 = vpow.pop %v2225
    %v2227 = vmul.f32 %v2221, 1.442695
    %v2228 = vpow.pop %v2227
    %v2229 = vmul.f32 %v2222, 1.442695
    %v2230 = vpow.pop %v2229
    %2231 = vst.msk [vmem:[%s1520] sm:$0xff] %vm137, %v2224
    %2232 = vst.msk [vmem:[%s1520 + $0x8] sm:$0xff] %vm137, %v2226
    %2233 = vst.msk [vmem:[%s1520 + $0x10] sm:$0xff] %vm137, %v2228
    %2234 = vst.msk [vmem:[%s1520 + $0x18] sm:$0xff] %vm137, %v2230
    %v2235 = vld [vmem:[#allocation4] sm:$0xff]
    %v2236 = vld [vmem:[#allocation4 + $0x8] sm:$0xff]
    %v2237 = vld [vmem:[#allocation4 + $0x10] sm:$0xff]
    %v2238 = vld [vmem:[#allocation4 + $0x18] sm:$0xff]
    %v2239 = vadd.f32 %v2235, %v2224
    %v2240 = vadd.f32 %v2236, %v2226
    %v2241 = vadd.f32 %v2237, %v2228
    %v2242 = vadd.f32 %v2238, %v2230
    %2243 = vst.msk [vmem:[#allocation4] sm:$0xff] %vm137, %v2239
    %2244 = vst.msk [vmem:[#allocation4 + $0x8] sm:$0xff] %vm137, %v2240
    %2245 = vst.msk [vmem:[#allocation4 + $0x10] sm:$0xff] %vm137, %v2241
    %2246 = vst.msk [vmem:[#allocation4 + $0x18] sm:$0xff] %vm137, %v2242
    %v2247 = vld [vmem:[%s1627] sm:$0xff]
    %v2248 = vld [vmem:[%s1627 + $0x8] sm:$0xff]
    %v2249 = vld [vmem:[%s1627 + $0x10] sm:$0xff]
    %v2250 = vld [vmem:[%s1627 + $0x18] sm:$0xff]
    %v2251 = vld [vmem:[#allocation3] sm:$0xff]
    %v2252 = vld [vmem:[#allocation3 + $0x8] sm:$0xff]
    %v2253 = vld [vmem:[#allocation3 + $0x10] sm:$0xff]
    %v2254 = vld [vmem:[#allocation3 + $0x18] sm:$0xff]
    %v2255 = vsub.f32 %v2247, %v2251
    %v2256 = vsub.f32 %v2248, %v2252
    %v2257 = vsub.f32 %v2249, %v2253
    %v2258 = vsub.f32 %v2250, %v2254
    %v2259 = vmul.f32 %v2255, 1.442695
    %v2260 = vpow.pop %v2259
    %v2261 = vmul.f32 %v2256, 1.442695
    %v2262 = vpow.pop %v2261
    %v2263 = vmul.f32 %v2257, 1.442695
    %v2264 = vpow.pop %v2263
    %v2265 = vmul.f32 %v2258, 1.442695
    %v2266 = vpow.pop %v2265
    %2267 = vst.msk [vmem:[%s1627] sm:$0xff] %vm137, %v2260
    %2268 = vst.msk [vmem:[%s1627 + $0x8] sm:$0xff] %vm137, %v2262
    %2269 = vst.msk [vmem:[%s1627 + $0x10] sm:$0xff] %vm137, %v2264
    %2270 = vst.msk [vmem:[%s1627 + $0x18] sm:$0xff] %vm137, %v2266
    %v2271 = vld [vmem:[#allocation4] sm:$0xff]
    %v2272 = vld [vmem:[#allocation4 + $0x8] sm:$0xff]
    %v2273 = vld [vmem:[#allocation4 + $0x10] sm:$0xff]
    %v2274 = vld [vmem:[#allocation4 + $0x18] sm:$0xff]
    %v2275 = vadd.f32 %v2271, %v2260
    %v2276 = vadd.f32 %v2272, %v2262
    %v2277 = vadd.f32 %v2273, %v2264
    %v2278 = vadd.f32 %v2274, %v2266
    %2279 = vst.msk [vmem:[#allocation4] sm:$0xff] %vm137, %v2275
    %2280 = vst.msk [vmem:[#allocation4 + $0x8] sm:$0xff] %vm137, %v2276
    %2281 = vst.msk [vmem:[#allocation4 + $0x10] sm:$0xff] %vm137, %v2277
    %2282 = vst.msk [vmem:[#allocation4 + $0x18] sm:$0xff] %vm137, %v2278
    %v2283 = vld [vmem:[%s1734] sm:$0xff]
    %v2284 = vld [vmem:[%s1734 + $0x8] sm:$0xff]
    %v2285 = vld [vmem:[%s1734 + $0x10] sm:$0xff]
    %v2286 = vld [vmem:[%s1734 + $0x18] sm:$0xff]
    %v2287 = vld [vmem:[#allocation3] sm:$0xff]
    %v2288 = vld [vmem:[#allocation3 + $0x8] sm:$0xff]
    %v2289 = vld [vmem:[#allocation3 + $0x10] sm:$0xff]
    %v2290 = vld [vmem:[#allocation3 + $0x18] sm:$0xff]
    %v2291 = vsub.f32 %v2283, %v2287
    %v2292 = vsub.f32 %v2284, %v2288
    %v2293 = vsub.f32 %v2285, %v2289
    %v2294 = vsub.f32 %v2286, %v2290
    %v2295 = vmul.f32 %v2291, 1.442695
    %v2296 = vpow.pop %v2295
    %v2297 = vmul.f32 %v2292, 1.442695
    %v2298 = vpow.pop %v2297
    %v2299 = vmul.f32 %v2293, 1.442695
    %v2300 = vpow.pop %v2299
    %v2301 = vmul.f32 %v2294, 1.442695
    %v2302 = vpow.pop %v2301
    %2303 = vst.msk [vmem:[%s1734] sm:$0xff] %vm137, %v2296
    %2304 = vst.msk [vmem:[%s1734 + $0x8] sm:$0xff] %vm137, %v2298
    %2305 = vst.msk [vmem:[%s1734 + $0x10] sm:$0xff] %vm137, %v2300
    %2306 = vst.msk [vmem:[%s1734 + $0x18] sm:$0xff] %vm137, %v2302
    %v2307 = vld [vmem:[#allocation4] sm:$0xff]
    %v2308 = vld [vmem:[#allocation4 + $0x8] sm:$0xff]
    %v2309 = vld [vmem:[#allocation4 + $0x10] sm:$0xff]
    %v2310 = vld [vmem:[#allocation4 + $0x18] sm:$0xff]
    %v2311 = vadd.f32 %v2307, %v2296
    %v2312 = vadd.f32 %v2308, %v2298
    %v2313 = vadd.f32 %v2309, %v2300
    %v2314 = vadd.f32 %v2310, %v2302
    %2315 = vst.msk [vmem:[#allocation4] sm:$0xff] %vm137, %v2311
    %2316 = vst.msk [vmem:[#allocation4 + $0x8] sm:$0xff] %vm137, %v2312
    %2317 = vst.msk [vmem:[#allocation4 + $0x10] sm:$0xff] %vm137, %v2313
    %2318 = vst.msk [vmem:[#allocation4 + $0x18] sm:$0xff] %vm137, %v2314
    %v2319 = vld [vmem:[#allocation4] sm:$0xff]
    %v2320 = vld [vmem:[#allocation4 + $0x8] sm:$0xff]
    %v2321 = vld [vmem:[#allocation4 + $0x10] sm:$0xff]
    %v2322 = vld [vmem:[#allocation4 + $0x18] sm:$0xff]
    %v2323 = vrcp.pop %v2319
    %v2324 = vrcp.pop %v2320
    %v2325 = vrcp.pop %v2321
    %v2326 = vrcp.pop %v2322
    %v2327 = vmul.f32 %v2319, %v2323
    %v2328 = vmul.f32 %v2320, %v2324
    %v2329 = vmul.f32 %v2321, %v2325
    %v2330 = vmul.f32 %v2322, %v2326
    %v2331 = vsub.f32 2.0, %v2327
    %v2332 = vsub.f32 2.0, %v2328
    %v2333 = vsub.f32 2.0, %v2329
    %v2334 = vsub.f32 2.0, %v2330
    %v2335 = vmul.f32 %v2323, %v2331
    %v2336 = vmul.f32 %v2324, %v2332
    %v2337 = vmul.f32 %v2325, %v2333
    %v2338 = vmul.f32 %v2326, %v2334
    %v2339 = vmul.f32 %v2319, %v2335
    %v2340 = vmul.f32 %v2320, %v2336
    %v2341 = vmul.f32 %v2321, %v2337
    %v2342 = vmul.f32 %v2322, %v2338
    %v2343 = vsub.f32 2.0, %v2339
    %v2344 = vsub.f32 2.0, %v2340
    %v2345 = vsub.f32 2.0, %v2341
    %v2346 = vsub.f32 2.0, %v2342
    %v2347 = vmul.f32 %v2335, %v2343
    %v2348 = vmul.f32 %v2336, %v2344
    %v2349 = vmul.f32 %v2337, %v2345
    %v2350 = vmul.f32 %v2338, %v2346
    %2351 = vst.msk [vmem:[#allocation4] sm:$0xff] %vm137, %v2347
    %2352 = vst.msk [vmem:[#allocation4 + $0x8] sm:$0xff] %vm137, %v2348
    %2353 = vst.msk [vmem:[#allocation4 + $0x10] sm:$0xff] %vm137, %v2349
    %2354 = vst.msk [vmem:[#allocation4 + $0x18] sm:$0xff] %vm137, %v2350
    %v2355 = vld [vmem:[#allocation2] sm:$0xff]
    %v2356 = vld [vmem:[#allocation2 + $0x8] sm:$0xff]
    %v2357 = vld [vmem:[#allocation2 + $0x10] sm:$0xff]
    %v2358 = vld [vmem:[#allocation2 + $0x18] sm:$0xff]
    %v2359 = vld [vmem:[#allocation4] sm:$0xff]
    %v2360 = vld [vmem:[#allocation4 + $0x8] sm:$0xff]
    %v2361 = vld [vmem:[#allocation4 + $0x10] sm:$0xff]
    %v2362 = vld [vmem:[#allocation4 + $0x18] sm:$0xff]
    %v2363 = vmul.f32 %v2355, %v2359
    %v2364 = vmul.f32 %v2356, %v2360
    %v2365 = vmul.f32 %v2357, %v2361
    %v2366 = vmul.f32 %v2358, %v2362
    %v2368 = vsel %vm137, %v33, 0
    %2370 = vmatprep.subr.mxu0 0.0
    %2371 = vmatpush1.msra.mxu0 %v2363
    %2372 = vmatprep.subr.mxu0 0.0
    %2373 = vmatpush1.msra.mxu0 %v2364
    %2374 = vmatprep.subr.mxu0 0.0
    %2375 = vmatpush1.msra.mxu0 %v2365
    %2376 = vmatprep.subr.mxu0 0.0
    %2377 = vmatpush1.msra.mxu0 %v2366
    %2378 = vmatprep.subr.mxu0 0.0
    %2379 = vmatpush1.msra.mxu0 0.0
    %2380 = vmatprep.subr.mxu0 0.0
    %2381 = vmatpush1.msra.mxu0 0.0
    %2382 = vmatprep.subr.mxu0 0.0
    %2383 = vmatpush1.msra.mxu0 0.0
    %2384 = vmatprep.subr.mxu0 0.0
    %2385 = vmatpush1.msra.mxu0 0.0
    %2386 = vmatprep.subr.mxu0 0.0
    %2387 = vmatpush1.msra.mxu0 0.0
    %2388 = vmatprep.subr.mxu0 0.0
    %2389 = vmatpush1.msra.mxu0 0.0
    %2390 = vmatprep.subr.mxu0 0.0
    %2391 = vmatpush1.msra.mxu0 0.0
    %2392 = vmatprep.subr.mxu0 0.0
    %2393 = vmatpush1.msra.mxu0 0.0
    %2394 = vmatprep.subr.mxu0 0.0
    %2395 = vmatpush1.msra.mxu0 0.0
    %2396 = vmatprep.subr.mxu0 0.0
    %2397 = vmatpush1.msra.mxu0 0.0
    %2398 = vmatprep.subr.mxu0 0.0
    %2399 = vmatpush1.msra.mxu0 0.0
    %2400 = vmatprep.subr.mxu0 0.0
    %2401 = vmatpush1.msra.mxu0 0.0
    %2402 = vmatprep.subr.mxu0 0.0
    %2403 = vmatpush1.msra.mxu0 0.0
    %2404 = vmatprep.subr.mxu0 0.0
    %2405 = vmatpush1.msra.mxu0 0.0
    %2406 = vmatprep.subr.mxu0 0.0
    %2407 = vmatpush1.msra.mxu0 0.0
    %2408 = vmatprep.subr.mxu0 0.0
    %2409 = vmatpush1.msra.mxu0 0.0
    %2410 = vmatprep.subr.mxu0 0.0
    %2411 = vmatpush1.msra.mxu0 0.0
    %2412 = vmatprep.subr.mxu0 0.0
    %2413 = vmatpush1.msra.mxu0 0.0
    %2414 = vmatprep.subr.mxu0 0.0
    %2415 = vmatpush1.msra.mxu0 0.0
    %2416 = vmatprep.subr.mxu0 0.0
    %2417 = vmatpush1.msra.mxu0 0.0
    %2418 = vmatprep.subr.mxu0 0.0
    %2419 = vmatpush1.msra.mxu0 0.0
    %2420 = vmatprep.subr.mxu0 0.0
    %2421 = vmatpush1.msra.mxu0 0.0
    %2422 = vmatprep.subr.mxu0 0.0
    %2423 = vmatpush1.msra.mxu0 0.0
    %2424 = vmatprep.subr.mxu0 0.0
    %2425 = vmatpush1.msra.mxu0 0.0
    %2426 = vmatprep.subr.mxu0 0.0
    %2427 = vmatpush1.msra.mxu0 0.0
    %2428 = vmatprep.subr.mxu0 0.0
    %2429 = vmatpush1.msra.mxu0 0.0
    %2430 = vmatprep.subr.mxu0 0.0
    %2431 = vmatpush1.msra.mxu0 0.0
    %2432 = vmatprep.subr.mxu0 0.0
    %2433 = vmatpush1.msra.mxu0 0.0
    %2434 = vmatprep.mubr.f32.mxu0 0.0
    %2435 = vmatmul.mubr.f32.gmra.mrb[0].mxu0 %v2368
    %v2436 = vpop.f32.mrb[0].mxu0
    %v2437 = vadd.f32 0.0, %v2436
    %v2438 = vpop.f32.mrb[0].mxu0
    %2439 = vdwg.mxu0
    %2440 = vst.msk [vmem:[#allocation8] sm:$0xff] %vm137, %v2437
    %v2441 = vld [vmem:[%s236] sm:$0xff]
    %v2442 = vld [vmem:[%s236 + $0x8] sm:$0xff]
    %v2443 = vld [vmem:[%s236 + $0x10] sm:$0xff]
    %v2444 = vld [vmem:[%s236 + $0x18] sm:$0xff]
    %v2445 = vld [vmem:[#allocation4] sm:$0xff]
    %v2446 = vld [vmem:[#allocation4 + $0x8] sm:$0xff]
    %v2447 = vld [vmem:[#allocation4 + $0x10] sm:$0xff]
    %v2448 = vld [vmem:[#allocation4 + $0x18] sm:$0xff]
    %v2449 = vmul.f32 %v2441, %v2445
    %v2450 = vmul.f32 %v2442, %v2446
    %v2451 = vmul.f32 %v2443, %v2447
    %v2452 = vmul.f32 %v2444, %v2448
    %2453 = vmatprep.subr.mxu0 0.0
    %2454 = vmatpush1.msra.mxu0 %v2449
    %2455 = vmatprep.subr.mxu0 0.0
    %2456 = vmatpush1.msra.mxu0 %v2450
    %2457 = vmatprep.subr.mxu0 0.0
    %2458 = vmatpush1.msra.mxu0 %v2451
    %2459 = vmatprep.subr.mxu0 0.0
    %2460 = vmatpush1.msra.mxu0 %v2452
    %2461 = vmatprep.subr.mxu0 0.0
    %2462 = vmatpush1.msra.mxu0 0.0
    %2463 = vmatprep.subr.mxu0 0.0
    %2464 = vmatpush1.msra.mxu0 0.0
    %2465 = vmatprep.subr.mxu0 0.0
    %2466 = vmatpush1.msra.mxu0 0.0
    %2467 = vmatprep.subr.mxu0 0.0
    %2468 = vmatpush1.msra.mxu0 0.0
    %2469 = vmatprep.subr.mxu0 0.0
    %2470 = vmatpush1.msra.mxu0 0.0
    %2471 = vmatprep.subr.mxu0 0.0
    %2472 = vmatpush1.msra.mxu0 0.0
    %2473 = vmatprep.subr.mxu0 0.0
    %2474 = vmatpush1.msra.mxu0 0.0
    %2475 = vmatprep.subr.mxu0 0.0
    %2476 = vmatpush1.msra.mxu0 0.0
    %2477 = vmatprep.subr.mxu0 0.0
    %2478 = vmatpush1.msra.mxu0 0.0
    %2479 = vmatprep.subr.mxu0 0.0
    %2480 = vmatpush1.msra.mxu0 0.0
    %2481 = vmatprep.subr.mxu0 0.0
    %2482 = vmatpush1.msra.mxu0 0.0
    %2483 = vmatprep.subr.mxu0 0.0
    %2484 = vmatpush1.msra.mxu0 0.0
    %2485 = vmatprep.subr.mxu0 0.0
    %2486 = vmatpush1.msra.mxu0 0.0
    %2487 = vmatprep.subr.mxu0 0.0
    %2488 = vmatpush1.msra.mxu0 0.0
    %2489 = vmatprep.subr.mxu0 0.0
    %2490 = vmatpush1.msra.mxu0 0.0
    %2491 = vmatprep.subr.mxu0 0.0
    %2492 = vmatpush1.msra.mxu0 0.0
    %2493 = vmatprep.subr.mxu0 0.0
    %2494 = vmatpush1.msra.mxu0 0.0
    %2495 = vmatprep.subr.mxu0 0.0
    %2496 = vmatpush1.msra.mxu0 0.0
    %2497 = vmatprep.subr.mxu0 0.0
    %2498 = vmatpush1.msra.mxu0 0.0
    %2499 = vmatprep.subr.mxu0 0.0
    %2500 = vmatpush1.msra.mxu0 0.0
    %2501 = vmatprep.subr.mxu0 0.0
    %2502 = vmatpush1.msra.mxu0 0.0
    %2503 = vmatprep.subr.mxu0 0.0
    %2504 = vmatpush1.msra.mxu0 0.0
    %2505 = vmatprep.subr.mxu0 0.0
    %2506 = vmatpush1.msra.mxu0 0.0
    %2507 = vmatprep.subr.mxu0 0.0
    %2508 = vmatpush1.msra.mxu0 0.0
    %2509 = vmatprep.subr.mxu0 0.0
    %2510 = vmatpush1.msra.mxu0 0.0
    %2511 = vmatprep.subr.mxu0 0.0
    %2512 = vmatpush1.msra.mxu0 0.0
    %2513 = vmatprep.subr.mxu0 0.0
    %2514 = vmatpush1.msra.mxu0 0.0
    %2515 = vmatprep.subr.mxu0 0.0
    %2516 = vmatpush1.msra.mxu0 0.0
    %2517 = vmatprep.mubr.f32.mxu0 0.0
    %2518 = vmatmul.mubr.f32.gmra.mrb[0].mxu0 %v2368
    %v2519 = vpop.f32.mrb[0].mxu0
    %v2520 = vadd.f32 0.0, %v2519
    %v2521 = vpop.f32.mrb[0].mxu0
    %2522 = vdwg.mxu0
    %s2523 = scalar_lea.vmem [#allocation8], 8
    %2524 = vst.msk [vmem:[%s2523] sm:$0xff] %vm137, %v2520
    %v2525 = vld [vmem:[%s343] sm:$0xff]
    %v2526 = vld [vmem:[%s343 + $0x8] sm:$0xff]
    %v2527 = vld [vmem:[%s343 + $0x10] sm:$0xff]
    %v2528 = vld [vmem:[%s343 + $0x18] sm:$0xff]
    %v2529 = vld [vmem:[#allocation4] sm:$0xff]
    %v2530 = vld [vmem:[#allocation4 + $0x8] sm:$0xff]
    %v2531 = vld [vmem:[#allocation4 + $0x10] sm:$0xff]
    %v2532 = vld [vmem:[#allocation4 + $0x18] sm:$0xff]
    %v2533 = vmul.f32 %v2525, %v2529
    %v2534 = vmul.f32 %v2526, %v2530
    %v2535 = vmul.f32 %v2527, %v2531
    %v2536 = vmul.f32 %v2528, %v2532
    %2537 = vmatprep.subr.mxu0 0.0
    %2538 = vmatpush1.msra.mxu0 %v2533
    %2539 = vmatprep.subr.mxu0 0.0
    %2540 = vmatpush1.msra.mxu0 %v2534
    %2541 = vmatprep.subr.mxu0 0.0
    %2542 = vmatpush1.msra.mxu0 %v2535
    %2543 = vmatprep.subr.mxu0 0.0
    %2544 = vmatpush1.msra.mxu0 %v2536
    %2545 = vmatprep.subr.mxu0 0.0
    %2546 = vmatpush1.msra.mxu0 0.0
    %2547 = vmatprep.subr.mxu0 0.0
    %2548 = vmatpush1.msra.mxu0 0.0
    %2549 = vmatprep.subr.mxu0 0.0
    %2550 = vmatpush1.msra.mxu0 0.0
    %2551 = vmatprep.subr.mxu0 0.0
    %2552 = vmatpush1.msra.mxu0 0.0
    %2553 = vmatprep.subr.mxu0 0.0
    %2554 = vmatpush1.msra.mxu0 0.0
    %2555 = vmatprep.subr.mxu0 0.0
    %2556 = vmatpush1.msra.mxu0 0.0
    %2557 = vmatprep.subr.mxu0 0.0
    %2558 = vmatpush1.msra.mxu0 0.0
    %2559 = vmatprep.subr.mxu0 0.0
    %2560 = vmatpush1.msra.mxu0 0.0
    %2561 = vmatprep.subr.mxu0 0.0
    %2562 = vmatpush1.msra.mxu0 0.0
    %2563 = vmatprep.subr.mxu0 0.0
    %2564 = vmatpush1.msra.mxu0 0.0
    %2565 = vmatprep.subr.mxu0 0.0
    %2566 = vmatpush1.msra.mxu0 0.0
    %2567 = vmatprep.subr.mxu0 0.0
    %2568 = vmatpush1.msra.mxu0 0.0
    %2569 = vmatprep.subr.mxu0 0.0
    %2570 = vmatpush1.msra.mxu0 0.0
    %2571 = vmatprep.subr.mxu0 0.0
    %2572 = vmatpush1.msra.mxu0 0.0
    %2573 = vmatprep.subr.mxu0 0.0
    %2574 = vmatpush1.msra.mxu0 0.0
    %2575 = vmatprep.subr.mxu0 0.0
    %2576 = vmatpush1.msra.mxu0 0.0
    %2577 = vmatprep.subr.mxu0 0.0
    %2578 = vmatpush1.msra.mxu0 0.0
    %2579 = vmatprep.subr.mxu0 0.0
    %2580 = vmatpush1.msra.mxu0 0.0
    %2581 = vmatprep.subr.mxu0 0.0
    %2582 = vmatpush1.msra.mxu0 0.0
    %2583 = vmatprep.subr.mxu0 0.0
    %2584 = vmatpush1.msra.mxu0 0.0
    %2585 = vmatprep.subr.mxu0 0.0
    %2586 = vmatpush1.msra.mxu0 0.0
    %2587 = vmatprep.subr.mxu0 0.0
    %2588 = vmatpush1.msra.mxu0 0.0
    %2589 = vmatprep.subr.mxu0 0.0
    %2590 = vmatpush1.msra.mxu0 0.0
    %2591 = vmatprep.subr.mxu0 0.0
    %2592 = vmatpush1.msra.mxu0 0.0
    %2593 = vmatprep.subr.mxu0 0.0
    %2594 = vmatpush1.msra.mxu0 0.0
    %2595 = vmatprep.subr.mxu0 0.0
    %2596 = vmatpush1.msra.mxu0 0.0
    %2597 = vmatprep.subr.mxu0 0.0
    %2598 = vmatpush1.msra.mxu0 0.0
    %2599 = vmatprep.subr.mxu0 0.0
    %2600 = vmatpush1.msra.mxu0 0.0
    %2601 = vmatprep.mubr.f32.mxu0 0.0
    %2602 = vmatmul.mubr.f32.gmra.mrb[0].mxu0 %v2368
    %v2603 = vpop.f32.mrb[0].mxu0
    %v2604 = vadd.f32 0.0, %v2603
    %v2605 = vpop.f32.mrb[0].mxu0
    %2606 = vdwg.mxu0
    %s2607 = scalar_lea.vmem [#allocation8], 16
    %2608 = vst.msk [vmem:[%s2607] sm:$0xff] %vm137, %v2604
    %v2609 = vld [vmem:[%s450] sm:$0xff]
    %v2610 = vld [vmem:[%s450 + $0x8] sm:$0xff]
    %v2611 = vld [vmem:[%s450 + $0x10] sm:$0xff]
    %v2612 = vld [vmem:[%s450 + $0x18] sm:$0xff]
    %v2613 = vld [vmem:[#allocation4] sm:$0xff]
    %v2614 = vld [vmem:[#allocation4 + $0x8] sm:$0xff]
    %v2615 = vld [vmem:[#allocation4 + $0x10] sm:$0xff]
    %v2616 = vld [vmem:[#allocation4 + $0x18] sm:$0xff]
    %v2617 = vmul.f32 %v2609, %v2613
    %v2618 = vmul.f32 %v2610, %v2614
    %v2619 = vmul.f32 %v2611, %v2615
    %v2620 = vmul.f32 %v2612, %v2616
    %2621 = vmatprep.subr.mxu0 0.0
    %2622 = vmatpush1.msra.mxu0 %v2617
    %2623 = vmatprep.subr.mxu0 0.0
    %2624 = vmatpush1.msra.mxu0 %v2618
    %2625 = vmatprep.subr.mxu0 0.0
    %2626 = vmatpush1.msra.mxu0 %v2619
    %2627 = vmatprep.subr.mxu0 0.0
    %2628 = vmatpush1.msra.mxu0 %v2620
    %2629 = vmatprep.subr.mxu0 0.0
    %2630 = vmatpush1.msra.mxu0 0.0
    %2631 = vmatprep.subr.mxu0 0.0
    %2632 = vmatpush1.msra.mxu0 0.0
    %2633 = vmatprep.subr.mxu0 0.0
    %2634 = vmatpush1.msra.mxu0 0.0
    %2635 = vmatprep.subr.mxu0 0.0
    %2636 = vmatpush1.msra.mxu0 0.0
    %2637 = vmatprep.subr.mxu0 0.0
    %2638 = vmatpush1.msra.mxu0 0.0
    %2639 = vmatprep.subr.mxu0 0.0
    %2640 = vmatpush1.msra.mxu0 0.0
    %2641 = vmatprep.subr.mxu0 0.0
    %2642 = vmatpush1.msra.mxu0 0.0
    %2643 = vmatprep.subr.mxu0 0.0
    %2644 = vmatpush1.msra.mxu0 0.0
    %2645 = vmatprep.subr.mxu0 0.0
    %2646 = vmatpush1.msra.mxu0 0.0
    %2647 = vmatprep.subr.mxu0 0.0
    %2648 = vmatpush1.msra.mxu0 0.0
    %2649 = vmatprep.subr.mxu0 0.0
    %2650 = vmatpush1.msra.mxu0 0.0
    %2651 = vmatprep.subr.mxu0 0.0
    %2652 = vmatpush1.msra.mxu0 0.0
    %2653 = vmatprep.subr.mxu0 0.0
    %2654 = vmatpush1.msra.mxu0 0.0
    %2655 = vmatprep.subr.mxu0 0.0
    %2656 = vmatpush1.msra.mxu0 0.0
    %2657 = vmatprep.subr.mxu0 0.0
    %2658 = vmatpush1.msra.mxu0 0.0
    %2659 = vmatprep.subr.mxu0 0.0
    %2660 = vmatpush1.msra.mxu0 0.0
    %2661 = vmatprep.subr.mxu0 0.0
    %2662 = vmatpush1.msra.mxu0 0.0
    %2663 = vmatprep.subr.mxu0 0.0
    %2664 = vmatpush1.msra.mxu0 0.0
    %2665 = vmatprep.subr.mxu0 0.0
    %2666 = vmatpush1.msra.mxu0 0.0
    %2667 = vmatprep.subr.mxu0 0.0
    %2668 = vmatpush1.msra.mxu0 0.0
    %2669 = vmatprep.subr.mxu0 0.0
    %2670 = vmatpush1.msra.mxu0 0.0
    %2671 = vmatprep.subr.mxu0 0.0
    %2672 = vmatpush1.msra.mxu0 0.0
    %2673 = vmatprep.subr.mxu0 0.0
    %2674 = vmatpush1.msra.mxu0 0.0
    %2675 = vmatprep.subr.mxu0 0.0
    %2676 = vmatpush1.msra.mxu0 0.0
    %2677 = vmatprep.subr.mxu0 0.0
    %2678 = vmatpush1.msra.mxu0 0.0
    %2679 = vmatprep.subr.mxu0 0.0
    %2680 = vmatpush1.msra.mxu0 0.0
    %2681 = vmatprep.subr.mxu0 0.0
    %2682 = vmatpush1.msra.mxu0 0.0
    %2683 = vmatprep.subr.mxu0 0.0
    %2684 = vmatpush1.msra.mxu0 0.0
    %2685 = vmatprep.mubr.f32.mxu0 0.0
    %2686 = vmatmul.mubr.f32.gmra.mrb[0].mxu0 %v2368
    %v2687 = vpop.f32.mrb[0].mxu0
    %v2688 = vadd.f32 0.0, %v2687
    %v2689 = vpop.f32.mrb[0].mxu0
    %2690 = vdwg.mxu0
    %s2691 = scalar_lea.vmem [#allocation8], 24
    %2692 = vst.msk [vmem:[%s2691] sm:$0xff] %vm137, %v2688
    %v2693 = vld [vmem:[%s557] sm:$0xff]
    %v2694 = vld [vmem:[%s557 + $0x8] sm:$0xff]
    %v2695 = vld [vmem:[%s557 + $0x10] sm:$0xff]
    %v2696 = vld [vmem:[%s557 + $0x18] sm:$0xff]
    %v2697 = vld [vmem:[#allocation4] sm:$0xff]
    %v2698 = vld [vmem:[#allocation4 + $0x8] sm:$0xff]
    %v2699 = vld [vmem:[#allocation4 + $0x10] sm:$0xff]
    %v2700 = vld [vmem:[#allocation4 + $0x18] sm:$0xff]
    %v2701 = vmul.f32 %v2693, %v2697
    %v2702 = vmul.f32 %v2694, %v2698
    %v2703 = vmul.f32 %v2695, %v2699
    %v2704 = vmul.f32 %v2696, %v2700
    %2705 = vmatprep.subr.mxu0 0.0
    %2706 = vmatpush1.msra.mxu0 %v2701
    %2707 = vmatprep.subr.mxu0 0.0
    %2708 = vmatpush1.msra.mxu0 %v2702
    %2709 = vmatprep.subr.mxu0 0.0
    %2710 = vmatpush1.msra.mxu0 %v2703
    %2711 = vmatprep.subr.mxu0 0.0
    %2712 = vmatpush1.msra.mxu0 %v2704
    %2713 = vmatprep.subr.mxu0 0.0
    %2714 = vmatpush1.msra.mxu0 0.0
    %2715 = vmatprep.subr.mxu0 0.0
    %2716 = vmatpush1.msra.mxu0 0.0
    %2717 = vmatprep.subr.mxu0 0.0
    %2718 = vmatpush1.msra.mxu0 0.0
    %2719 = vmatprep.subr.mxu0 0.0
    %2720 = vmatpush1.msra.mxu0 0.0
    %2721 = vmatprep.subr.mxu0 0.0
    %2722 = vmatpush1.msra.mxu0 0.0
    %2723 = vmatprep.subr.mxu0 0.0
    %2724 = vmatpush1.msra.mxu0 0.0
    %2725 = vmatprep.subr.mxu0 0.0
    %2726 = vmatpush1.msra.mxu0 0.0
    %2727 = vmatprep.subr.mxu0 0.0
    %2728 = vmatpush1.msra.mxu0 0.0
    %2729 = vmatprep.subr.mxu0 0.0
    %2730 = vmatpush1.msra.mxu0 0.0
    %2731 = vmatprep.subr.mxu0 0.0
    %2732 = vmatpush1.msra.mxu0 0.0
    %2733 = vmatprep.subr.mxu0 0.0
    %2734 = vmatpush1.msra.mxu0 0.0
    %2735 = vmatprep.subr.mxu0 0.0
    %2736 = vmatpush1.msra.mxu0 0.0
    %2737 = vmatprep.subr.mxu0 0.0
    %2738 = vmatpush1.msra.mxu0 0.0
    %2739 = vmatprep.subr.mxu0 0.0
    %2740 = vmatpush1.msra.mxu0 0.0
    %2741 = vmatprep.subr.mxu0 0.0
    %2742 = vmatpush1.msra.mxu0 0.0
    %2743 = vmatprep.subr.mxu0 0.0
    %2744 = vmatpush1.msra.mxu0 0.0
    %2745 = vmatprep.subr.mxu0 0.0
    %2746 = vmatpush1.msra.mxu0 0.0
    %2747 = vmatprep.subr.mxu0 0.0
    %2748 = vmatpush1.msra.mxu0 0.0
    %2749 = vmatprep.subr.mxu0 0.0
    %2750 = vmatpush1.msra.mxu0 0.0
    %2751 = vmatprep.subr.mxu0 0.0
    %2752 = vmatpush1.msra.mxu0 0.0
    %2753 = vmatprep.subr.mxu0 0.0
    %2754 = vmatpush1.msra.mxu0 0.0
    %2755 = vmatprep.subr.mxu0 0.0
    %2756 = vmatpush1.msra.mxu0 0.0
    %2757 = vmatprep.subr.mxu0 0.0
    %2758 = vmatpush1.msra.mxu0 0.0
    %2759 = vmatprep.subr.mxu0 0.0
    %2760 = vmatpush1.msra.mxu0 0.0
    %2761 = vmatprep.subr.mxu0 0.0
    %2762 = vmatpush1.msra.mxu0 0.0
    %2763 = vmatprep.subr.mxu0 0.0
    %2764 = vmatpush1.msra.mxu0 0.0
    %2765 = vmatprep.subr.mxu0 0.0
    %2766 = vmatpush1.msra.mxu0 0.0
    %2767 = vmatprep.subr.mxu0 0.0
    %2768 = vmatpush1.msra.mxu0 0.0
    %2769 = vmatprep.mubr.f32.mxu0 0.0
    %2770 = vmatmul.mubr.f32.gmra.mrb[0].mxu0 %v2368
    %v2771 = vpop.f32.mrb[0].mxu0
    %v2772 = vadd.f32 0.0, %v2771
    %v2773 = vpop.f32.mrb[0].mxu0
    %2774 = vdwg.mxu0
    %s2775 = scalar_lea.vmem [#allocation8], 32
    %2776 = vst.msk [vmem:[%s2775] sm:$0xff] %vm137, %v2772
    %v2777 = vld [vmem:[%s664] sm:$0xff]
    %v2778 = vld [vmem:[%s664 + $0x8] sm:$0xff]
    %v2779 = vld [vmem:[%s664 + $0x10] sm:$0xff]
    %v2780 = vld [vmem:[%s664 + $0x18] sm:$0xff]
    %v2781 = vld [vmem:[#allocation4] sm:$0xff]
    %v2782 = vld [vmem:[#allocation4 + $0x8] sm:$0xff]
    %v2783 = vld [vmem:[#allocation4 + $0x10] sm:$0xff]
    %v2784 = vld [vmem:[#allocation4 + $0x18] sm:$0xff]
    %v2785 = vmul.f32 %v2777, %v2781
    %v2786 = vmul.f32 %v2778, %v2782
    %v2787 = vmul.f32 %v2779, %v2783
    %v2788 = vmul.f32 %v2780, %v2784
    %2789 = vmatprep.subr.mxu0 0.0
    %2790 = vmatpush1.msra.mxu0 %v2785
    %2791 = vmatprep.subr.mxu0 0.0
    %2792 = vmatpush1.msra.mxu0 %v2786
    %2793 = vmatprep.subr.mxu0 0.0
    %2794 = vmatpush1.msra.mxu0 %v2787
    %2795 = vmatprep.subr.mxu0 0.0
    %2796 = vmatpush1.msra.mxu0 %v2788
    %2797 = vmatprep.subr.mxu0 0.0
    %2798 = vmatpush1.msra.mxu0 0.0
    %2799 = vmatprep.subr.mxu0 0.0
    %2800 = vmatpush1.msra.mxu0 0.0
    %2801 = vmatprep.subr.mxu0 0.0
    %2802 = vmatpush1.msra.mxu0 0.0
    %2803 = vmatprep.subr.mxu0 0.0
    %2804 = vmatpush1.msra.mxu0 0.0
    %2805 = vmatprep.subr.mxu0 0.0
    %2806 = vmatpush1.msra.mxu0 0.0
    %2807 = vmatprep.subr.mxu0 0.0
    %2808 = vmatpush1.msra.mxu0 0.0
    %2809 = vmatprep.subr.mxu0 0.0
    %2810 = vmatpush1.msra.mxu0 0.0
    %2811 = vmatprep.subr.mxu0 0.0
    %2812 = vmatpush1.msra.mxu0 0.0
    %2813 = vmatprep.subr.mxu0 0.0
    %2814 = vmatpush1.msra.mxu0 0.0
    %2815 = vmatprep.subr.mxu0 0.0
    %2816 = vmatpush1.msra.mxu0 0.0
    %2817 = vmatprep.subr.mxu0 0.0
    %2818 = vmatpush1.msra.mxu0 0.0
    %2819 = vmatprep.subr.mxu0 0.0
    %2820 = vmatpush1.msra.mxu0 0.0
    %2821 = vmatprep.subr.mxu0 0.0
    %2822 = vmatpush1.msra.mxu0 0.0
    %2823 = vmatprep.subr.mxu0 0.0
    %2824 = vmatpush1.msra.mxu0 0.0
    %2825 = vmatprep.subr.mxu0 0.0
    %2826 = vmatpush1.msra.mxu0 0.0
    %2827 = vmatprep.subr.mxu0 0.0
    %2828 = vmatpush1.msra.mxu0 0.0
    %2829 = vmatprep.subr.mxu0 0.0
    %2830 = vmatpush1.msra.mxu0 0.0
    %2831 = vmatprep.subr.mxu0 0.0
    %2832 = vmatpush1.msra.mxu0 0.0
    %2833 = vmatprep.subr.mxu0 0.0
    %2834 = vmatpush1.msra.mxu0 0.0
    %2835 = vmatprep.subr.mxu0 0.0
    %2836 = vmatpush1.msra.mxu0 0.0
    %2837 = vmatprep.subr.mxu0 0.0
    %2838 = vmatpush1.msra.mxu0 0.0
    %2839 = vmatprep.subr.mxu0 0.0
    %2840 = vmatpush1.msra.mxu0 0.0
    %2841 = vmatprep.subr.mxu0 0.0
    %2842 = vmatpush1.msra.mxu0 0.0
    %2843 = vmatprep.subr.mxu0 0.0
    %2844 = vmatpush1.msra.mxu0 0.0
    %2845 = vmatprep.subr.mxu0 0.0
    %2846 = vmatpush1.msra.mxu0 0.0
    %2847 = vmatprep.subr.mxu0 0.0
    %2848 = vmatpush1.msra.mxu0 0.0
    %2849 = vmatprep.subr.mxu0 0.0
    %2850 = vmatpush1.msra.mxu0 0.0
    %2851 = vmatprep.subr.mxu0 0.0
    %2852 = vmatpush1.msra.mxu0 0.0
    %2853 = vmatprep.mubr.f32.mxu0 0.0
    %2854 = vmatmul.mubr.f32.gmra.mrb[0].mxu0 %v2368
    %v2855 = vpop.f32.mrb[0].mxu0
    %v2856 = vadd.f32 0.0, %v2855
    %v2857 = vpop.f32.mrb[0].mxu0
    %2858 = vdwg.mxu0
    %s2859 = scalar_lea.vmem [#allocation8], 40
    %2860 = vst.msk [vmem:[%s2859] sm:$0xff] %vm137, %v2856
    %v2861 = vld [vmem:[%s771] sm:$0xff]
    %v2862 = vld [vmem:[%s771 + $0x8] sm:$0xff]
    %v2863 = vld [vmem:[%s771 + $0x10] sm:$0xff]
    %v2864 = vld [vmem:[%s771 + $0x18] sm:$0xff]
    %v2865 = vld [vmem:[#allocation4] sm:$0xff]
    %v2866 = vld [vmem:[#allocation4 + $0x8] sm:$0xff]
    %v2867 = vld [vmem:[#allocation4 + $0x10] sm:$0xff]
    %v2868 = vld [vmem:[#allocation4 + $0x18] sm:$0xff]
    %v2869 = vmul.f32 %v2861, %v2865
    %v2870 = vmul.f32 %v2862, %v2866
    %v2871 = vmul.f32 %v2863, %v2867
    %v2872 = vmul.f32 %v2864, %v2868
    %2873 = vmatprep.subr.mxu0 0.0
    %2874 = vmatpush1.msra.mxu0 %v2869
    %2875 = vmatprep.subr.mxu0 0.0
    %2876 = vmatpush1.msra.mxu0 %v2870
    %2877 = vmatprep.subr.mxu0 0.0
    %2878 = vmatpush1.msra.mxu0 %v2871
    %2879 = vmatprep.subr.mxu0 0.0
    %2880 = vmatpush1.msra.mxu0 %v2872
    %2881 = vmatprep.subr.mxu0 0.0
    %2882 = vmatpush1.msra.mxu0 0.0
    %2883 = vmatprep.subr.mxu0 0.0
    %2884 = vmatpush1.msra.mxu0 0.0
    %2885 = vmatprep.subr.mxu0 0.0
    %2886 = vmatpush1.msra.mxu0 0.0
    %2887 = vmatprep.subr.mxu0 0.0
    %2888 = vmatpush1.msra.mxu0 0.0
    %2889 = vmatprep.subr.mxu0 0.0
    %2890 = vmatpush1.msra.mxu0 0.0
    %2891 = vmatprep.subr.mxu0 0.0
    %2892 = vmatpush1.msra.mxu0 0.0
    %2893 = vmatprep.subr.mxu0 0.0
    %2894 = vmatpush1.msra.mxu0 0.0
    %2895 = vmatprep.subr.mxu0 0.0
    %2896 = vmatpush1.msra.mxu0 0.0
    %2897 = vmatprep.subr.mxu0 0.0
    %2898 = vmatpush1.msra.mxu0 0.0
    %2899 = vmatprep.subr.mxu0 0.0
    %2900 = vmatpush1.msra.mxu0 0.0
    %2901 = vmatprep.subr.mxu0 0.0
    %2902 = vmatpush1.msra.mxu0 0.0
    %2903 = vmatprep.subr.mxu0 0.0
    %2904 = vmatpush1.msra.mxu0 0.0
    %2905 = vmatprep.subr.mxu0 0.0
    %2906 = vmatpush1.msra.mxu0 0.0
    %2907 = vmatprep.subr.mxu0 0.0
    %2908 = vmatpush1.msra.mxu0 0.0
    %2909 = vmatprep.subr.mxu0 0.0
    %2910 = vmatpush1.msra.mxu0 0.0
    %2911 = vmatprep.subr.mxu0 0.0
    %2912 = vmatpush1.msra.mxu0 0.0
    %2913 = vmatprep.subr.mxu0 0.0
    %2914 = vmatpush1.msra.mxu0 0.0
    %2915 = vmatprep.subr.mxu0 0.0
    %2916 = vmatpush1.msra.mxu0 0.0
    %2917 = vmatprep.subr.mxu0 0.0
    %2918 = vmatpush1.msra.mxu0 0.0
    %2919 = vmatprep.subr.mxu0 0.0
    %2920 = vmatpush1.msra.mxu0 0.0
    %2921 = vmatprep.subr.mxu0 0.0
    %2922 = vmatpush1.msra.mxu0 0.0
    %2923 = vmatprep.subr.mxu0 0.0
    %2924 = vmatpush1.msra.mxu0 0.0
    %2925 = vmatprep.subr.mxu0 0.0
    %2926 = vmatpush1.msra.mxu0 0.0
    %2927 = vmatprep.subr.mxu0 0.0
    %2928 = vmatpush1.msra.mxu0 0.0
    %2929 = vmatprep.subr.mxu0 0.0
    %2930 = vmatpush1.msra.mxu0 0.0
    %2931 = vmatprep.subr.mxu0 0.0
    %2932 = vmatpush1.msra.mxu0 0.0
    %2933 = vmatprep.subr.mxu0 0.0
    %2934 = vmatpush1.msra.mxu0 0.0
    %2935 = vmatprep.subr.mxu0 0.0
    %2936 = vmatpush1.msra.mxu0 0.0
    %2937 = vmatprep.mubr.f32.mxu0 0.0
    %2938 = vmatmul.mubr.f32.gmra.mrb[0].mxu0 %v2368
    %v2939 = vpop.f32.mrb[0].mxu0
    %v2940 = vadd.f32 0.0, %v2939
    %v2941 = vpop.f32.mrb[0].mxu0
    %2942 = vdwg.mxu0
    %s2943 = scalar_lea.vmem [#allocation8], 48
    %2944 = vst.msk [vmem:[%s2943] sm:$0xff] %vm137, %v2940
    %v2945 = vld [vmem:[%s878] sm:$0xff]
    %v2946 = vld [vmem:[%s878 + $0x8] sm:$0xff]
    %v2947 = vld [vmem:[%s878 + $0x10] sm:$0xff]
    %v2948 = vld [vmem:[%s878 + $0x18] sm:$0xff]
    %v2949 = vld [vmem:[#allocation4] sm:$0xff]
    %v2950 = vld [vmem:[#allocation4 + $0x8] sm:$0xff]
    %v2951 = vld [vmem:[#allocation4 + $0x10] sm:$0xff]
    %v2952 = vld [vmem:[#allocation4 + $0x18] sm:$0xff]
    %v2953 = vmul.f32 %v2945, %v2949
    %v2954 = vmul.f32 %v2946, %v2950
    %v2955 = vmul.f32 %v2947, %v2951
    %v2956 = vmul.f32 %v2948, %v2952
    %2957 = vmatprep.subr.mxu0 0.0
    %2958 = vmatpush1.msra.mxu0 %v2953
    %2959 = vmatprep.subr.mxu0 0.0
    %2960 = vmatpush1.msra.mxu0 %v2954
    %2961 = vmatprep.subr.mxu0 0.0
    %2962 = vmatpush1.msra.mxu0 %v2955
    %2963 = vmatprep.subr.mxu0 0.0
    %2964 = vmatpush1.msra.mxu0 %v2956
    %2965 = vmatprep.subr.mxu0 0.0
    %2966 = vmatpush1.msra.mxu0 0.0
    %2967 = vmatprep.subr.mxu0 0.0
    %2968 = vmatpush1.msra.mxu0 0.0
    %2969 = vmatprep.subr.mxu0 0.0
    %2970 = vmatpush1.msra.mxu0 0.0
    %2971 = vmatprep.subr.mxu0 0.0
    %2972 = vmatpush1.msra.mxu0 0.0
    %2973 = vmatprep.subr.mxu0 0.0
    %2974 = vmatpush1.msra.mxu0 0.0
    %2975 = vmatprep.subr.mxu0 0.0
    %2976 = vmatpush1.msra.mxu0 0.0
    %2977 = vmatprep.subr.mxu0 0.0
    %2978 = vmatpush1.msra.mxu0 0.0
    %2979 = vmatprep.subr.mxu0 0.0
    %2980 = vmatpush1.msra.mxu0 0.0
    %2981 = vmatprep.subr.mxu0 0.0
    %2982 = vmatpush1.msra.mxu0 0.0
    %2983 = vmatprep.subr.mxu0 0.0
    %2984 = vmatpush1.msra.mxu0 0.0
    %2985 = vmatprep.subr.mxu0 0.0
    %2986 = vmatpush1.msra.mxu0 0.0
    %2987 = vmatprep.subr.mxu0 0.0
    %2988 = vmatpush1.msra.mxu0 0.0
    %2989 = vmatprep.subr.mxu0 0.0
    %2990 = vmatpush1.msra.mxu0 0.0
    %2991 = vmatprep.subr.mxu0 0.0
    %2992 = vmatpush1.msra.mxu0 0.0
    %2993 = vmatprep.subr.mxu0 0.0
    %2994 = vmatpush1.msra.mxu0 0.0
    %2995 = vmatprep.subr.mxu0 0.0
    %2996 = vmatpush1.msra.mxu0 0.0
    %2997 = vmatprep.subr.mxu0 0.0
    %2998 = vmatpush1.msra.mxu0 0.0
    %2999 = vmatprep.subr.mxu0 0.0
    %3000 = vmatpush1.msra.mxu0 0.0
    %3001 = vmatprep.subr.mxu0 0.0
    %3002 = vmatpush1.msra.mxu0 0.0
    %3003 = vmatprep.subr.mxu0 0.0
    %3004 = vmatpush1.msra.mxu0 0.0
    %3005 = vmatprep.subr.mxu0 0.0
    %3006 = vmatpush1.msra.mxu0 0.0
    %3007 = vmatprep.subr.mxu0 0.0
    %3008 = vmatpush1.msra.mxu0 0.0
    %3009 = vmatprep.subr.mxu0 0.0
    %3010 = vmatpush1.msra.mxu0 0.0
    %3011 = vmatprep.subr.mxu0 0.0
    %3012 = vmatpush1.msra.mxu0 0.0
    %3013 = vmatprep.subr.mxu0 0.0
    %3014 = vmatpush1.msra.mxu0 0.0
    %3015 = vmatprep.subr.mxu0 0.0
    %3016 = vmatpush1.msra.mxu0 0.0
    %3017 = vmatprep.subr.mxu0 0.0
    %3018 = vmatpush1.msra.mxu0 0.0
    %3019 = vmatprep.subr.mxu0 0.0
    %3020 = vmatpush1.msra.mxu0 0.0
    %3021 = vmatprep.mubr.f32.mxu0 0.0
    %3022 = vmatmul.mubr.f32.gmra.mrb[0].mxu0 %v2368
    %v3023 = vpop.f32.mrb[0].mxu0
    %v3024 = vadd.f32 0.0, %v3023
    %v3025 = vpop.f32.mrb[0].mxu0
    %3026 = vdwg.mxu0
    %s3027 = scalar_lea.vmem [#allocation8], 56
    %3028 = vst.msk [vmem:[%s3027] sm:$0xff] %vm137, %v3024
    %v3029 = vld [vmem:[%s985] sm:$0xff]
    %v3030 = vld [vmem:[%s985 + $0x8] sm:$0xff]
    %v3031 = vld [vmem:[%s985 + $0x10] sm:$0xff]
    %v3032 = vld [vmem:[%s985 + $0x18] sm:$0xff]
    %v3033 = vld [vmem:[#allocation4] sm:$0xff]
    %v3034 = vld [vmem:[#allocation4 + $0x8] sm:$0xff]
    %v3035 = vld [vmem:[#allocation4 + $0x10] sm:$0xff]
    %v3036 = vld [vmem:[#allocation4 + $0x18] sm:$0xff]
    %v3037 = vmul.f32 %v3029, %v3033
    %v3038 = vmul.f32 %v3030, %v3034
    %v3039 = vmul.f32 %v3031, %v3035
    %v3040 = vmul.f32 %v3032, %v3036
    %3041 = vmatprep.subr.mxu0 0.0
    %3042 = vmatpush1.msra.mxu0 %v3037
    %3043 = vmatprep.subr.mxu0 0.0
    %3044 = vmatpush1.msra.mxu0 %v3038
    %3045 = vmatprep.subr.mxu0 0.0
    %3046 = vmatpush1.msra.mxu0 %v3039
    %3047 = vmatprep.subr.mxu0 0.0
    %3048 = vmatpush1.msra.mxu0 %v3040
    %3049 = vmatprep.subr.mxu0 0.0
    %3050 = vmatpush1.msra.mxu0 0.0
    %3051 = vmatprep.subr.mxu0 0.0
    %3052 = vmatpush1.msra.mxu0 0.0
    %3053 = vmatprep.subr.mxu0 0.0
    %3054 = vmatpush1.msra.mxu0 0.0
    %3055 = vmatprep.subr.mxu0 0.0
    %3056 = vmatpush1.msra.mxu0 0.0
    %3057 = vmatprep.subr.mxu0 0.0
    %3058 = vmatpush1.msra.mxu0 0.0
    %3059 = vmatprep.subr.mxu0 0.0
    %3060 = vmatpush1.msra.mxu0 0.0
    %3061 = vmatprep.subr.mxu0 0.0
    %3062 = vmatpush1.msra.mxu0 0.0
    %3063 = vmatprep.subr.mxu0 0.0
    %3064 = vmatpush1.msra.mxu0 0.0
    %3065 = vmatprep.subr.mxu0 0.0
    %3066 = vmatpush1.msra.mxu0 0.0
    %3067 = vmatprep.subr.mxu0 0.0
    %3068 = vmatpush1.msra.mxu0 0.0
    %3069 = vmatprep.subr.mxu0 0.0
    %3070 = vmatpush1.msra.mxu0 0.0
    %3071 = vmatprep.subr.mxu0 0.0
    %3072 = vmatpush1.msra.mxu0 0.0
    %3073 = vmatprep.subr.mxu0 0.0
    %3074 = vmatpush1.msra.mxu0 0.0
    %3075 = vmatprep.subr.mxu0 0.0
    %3076 = vmatpush1.msra.mxu0 0.0
    %3077 = vmatprep.subr.mxu0 0.0
    %3078 = vmatpush1.msra.mxu0 0.0
    %3079 = vmatprep.subr.mxu0 0.0
    %3080 = vmatpush1.msra.mxu0 0.0
    %3081 = vmatprep.subr.mxu0 0.0
    %3082 = vmatpush1.msra.mxu0 0.0
    %3083 = vmatprep.subr.mxu0 0.0
    %3084 = vmatpush1.msra.mxu0 0.0
    %3085 = vmatprep.subr.mxu0 0.0
    %3086 = vmatpush1.msra.mxu0 0.0
    %3087 = vmatprep.subr.mxu0 0.0
    %3088 = vmatpush1.msra.mxu0 0.0
    %3089 = vmatprep.subr.mxu0 0.0
    %3090 = vmatpush1.msra.mxu0 0.0
    %3091 = vmatprep.subr.mxu0 0.0
    %3092 = vmatpush1.msra.mxu0 0.0
    %3093 = vmatprep.subr.mxu0 0.0
    %3094 = vmatpush1.msra.mxu0 0.0
    %3095 = vmatprep.subr.mxu0 0.0
    %3096 = vmatpush1.msra.mxu0 0.0
    %3097 = vmatprep.subr.mxu0 0.0
    %3098 = vmatpush1.msra.mxu0 0.0
    %3099 = vmatprep.subr.mxu0 0.0
    %3100 = vmatpush1.msra.mxu0 0.0
    %3101 = vmatprep.subr.mxu0 0.0
    %3102 = vmatpush1.msra.mxu0 0.0
    %3103 = vmatprep.subr.mxu0 0.0
    %3104 = vmatpush1.msra.mxu0 0.0
    %3105 = vmatprep.mubr.f32.mxu0 0.0
    %3106 = vmatmul.mubr.f32.gmra.mrb[0].mxu0 %v2368
    %v3107 = vpop.f32.mrb[0].mxu0
    %v3108 = vadd.f32 0.0, %v3107
    %v3109 = vpop.f32.mrb[0].mxu0
    %3110 = vdwg.mxu0
    %s3111 = scalar_lea.vmem [#allocation8], 64
    %3112 = vst.msk [vmem:[%s3111] sm:$0xff] %vm137, %v3108
    %v3113 = vld [vmem:[%s1092] sm:$0xff]
    %v3114 = vld [vmem:[%s1092 + $0x8] sm:$0xff]
    %v3115 = vld [vmem:[%s1092 + $0x10] sm:$0xff]
    %v3116 = vld [vmem:[%s1092 + $0x18] sm:$0xff]
    %v3117 = vld [vmem:[#allocation4] sm:$0xff]
    %v3118 = vld [vmem:[#allocation4 + $0x8] sm:$0xff]
    %v3119 = vld [vmem:[#allocation4 + $0x10] sm:$0xff]
    %v3120 = vld [vmem:[#allocation4 + $0x18] sm:$0xff]
    %v3121 = vmul.f32 %v3113, %v3117
    %v3122 = vmul.f32 %v3114, %v3118
    %v3123 = vmul.f32 %v3115, %v3119
    %v3124 = vmul.f32 %v3116, %v3120
    %3125 = vmatprep.subr.mxu0 0.0
    %3126 = vmatpush1.msra.mxu0 %v3121
    %3127 = vmatprep.subr.mxu0 0.0
    %3128 = vmatpush1.msra.mxu0 %v3122
    %3129 = vmatprep.subr.mxu0 0.0
    %3130 = vmatpush1.msra.mxu0 %v3123
    %3131 = vmatprep.subr.mxu0 0.0
    %3132 = vmatpush1.msra.mxu0 %v3124
    %3133 = vmatprep.subr.mxu0 0.0
    %3134 = vmatpush1.msra.mxu0 0.0
    %3135 = vmatprep.subr.mxu0 0.0
    %3136 = vmatpush1.msra.mxu0 0.0
    %3137 = vmatprep.subr.mxu0 0.0
    %3138 = vmatpush1.msra.mxu0 0.0
    %3139 = vmatprep.subr.mxu0 0.0
    %3140 = vmatpush1.msra.mxu0 0.0
    %3141 = vmatprep.subr.mxu0 0.0
    %3142 = vmatpush1.msra.mxu0 0.0
    %3143 = vmatprep.subr.mxu0 0.0
    %3144 = vmatpush1.msra.mxu0 0.0
    %3145 = vmatprep.subr.mxu0 0.0
    %3146 = vmatpush1.msra.mxu0 0.0
    %3147 = vmatprep.subr.mxu0 0.0
    %3148 = vmatpush1.msra.mxu0 0.0
    %3149 = vmatprep.subr.mxu0 0.0
    %3150 = vmatpush1.msra.mxu0 0.0
    %3151 = vmatprep.subr.mxu0 0.0
    %3152 = vmatpush1.msra.mxu0 0.0
    %3153 = vmatprep.subr.mxu0 0.0
    %3154 = vmatpush1.msra.mxu0 0.0
    %3155 = vmatprep.subr.mxu0 0.0
    %3156 = vmatpush1.msra.mxu0 0.0
    %3157 = vmatprep.subr.mxu0 0.0
    %3158 = vmatpush1.msra.mxu0 0.0
    %3159 = vmatprep.subr.mxu0 0.0
    %3160 = vmatpush1.msra.mxu0 0.0
    %3161 = vmatprep.subr.mxu0 0.0
    %3162 = vmatpush1.msra.mxu0 0.0
    %3163 = vmatprep.subr.mxu0 0.0
    %3164 = vmatpush1.msra.mxu0 0.0
    %3165 = vmatprep.subr.mxu0 0.0
    %3166 = vmatpush1.msra.mxu0 0.0
    %3167 = vmatprep.subr.mxu0 0.0
    %3168 = vmatpush1.msra.mxu0 0.0
    %3169 = vmatprep.subr.mxu0 0.0
    %3170 = vmatpush1.msra.mxu0 0.0
    %3171 = vmatprep.subr.mxu0 0.0
    %3172 = vmatpush1.msra.mxu0 0.0
    %3173 = vmatprep.subr.mxu0 0.0
    %3174 = vmatpush1.msra.mxu0 0.0
    %3175 = vmatprep.subr.mxu0 0.0
    %3176 = vmatpush1.msra.mxu0 0.0
    %3177 = vmatprep.subr.mxu0 0.0
    %3178 = vmatpush1.msra.mxu0 0.0
    %3179 = vmatprep.subr.mxu0 0.0
    %3180 = vmatpush1.msra.mxu0 0.0
    %3181 = vmatprep.subr.mxu0 0.0
    %3182 = vmatpush1.msra.mxu0 0.0
    %3183 = vmatprep.subr.mxu0 0.0
    %3184 = vmatpush1.msra.mxu0 0.0
    %3185 = vmatprep.subr.mxu0 0.0
    %3186 = vmatpush1.msra.mxu0 0.0
    %3187 = vmatprep.subr.mxu0 0.0
    %3188 = vmatpush1.msra.mxu0 0.0
    %3189 = vmatprep.mubr.f32.mxu0 0.0
    %3190 = vmatmul.mubr.f32.gmra.mrb[0].mxu0 %v2368
    %v3191 = vpop.f32.mrb[0].mxu0
    %v3192 = vadd.f32 0.0, %v3191
    %v3193 = vpop.f32.mrb[0].mxu0
    %3194 = vdwg.mxu0
    %s3195 = scalar_lea.vmem [#allocation8], 72
    %3196 = vst.msk [vmem:[%s3195] sm:$0xff] %vm137, %v3192
    %v3197 = vld [vmem:[%s1199] sm:$0xff]
    %v3198 = vld [vmem:[%s1199 + $0x8] sm:$0xff]
    %v3199 = vld [vmem:[%s1199 + $0x10] sm:$0xff]
    %v3200 = vld [vmem:[%s1199 + $0x18] sm:$0xff]
    %v3201 = vld [vmem:[#allocation4] sm:$0xff]
    %v3202 = vld [vmem:[#allocation4 + $0x8] sm:$0xff]
    %v3203 = vld [vmem:[#allocation4 + $0x10] sm:$0xff]
    %v3204 = vld [vmem:[#allocation4 + $0x18] sm:$0xff]
    %v3205 = vmul.f32 %v3197, %v3201
    %v3206 = vmul.f32 %v3198, %v3202
    %v3207 = vmul.f32 %v3199, %v3203
    %v3208 = vmul.f32 %v3200, %v3204
    %3209 = vmatprep.subr.mxu0 0.0
    %3210 = vmatpush1.msra.mxu0 %v3205
    %3211 = vmatprep.subr.mxu0 0.0
    %3212 = vmatpush1.msra.mxu0 %v3206
    %3213 = vmatprep.subr.mxu0 0.0
    %3214 = vmatpush1.msra.mxu0 %v3207
    %3215 = vmatprep.subr.mxu0 0.0
    %3216 = vmatpush1.msra.mxu0 %v3208
    %3217 = vmatprep.subr.mxu0 0.0
    %3218 = vmatpush1.msra.mxu0 0.0
    %3219 = vmatprep.subr.mxu0 0.0
    %3220 = vmatpush1.msra.mxu0 0.0
    %3221 = vmatprep.subr.mxu0 0.0
    %3222 = vmatpush1.msra.mxu0 0.0
    %3223 = vmatprep.subr.mxu0 0.0
    %3224 = vmatpush1.msra.mxu0 0.0
    %3225 = vmatprep.subr.mxu0 0.0
    %3226 = vmatpush1.msra.mxu0 0.0
    %3227 = vmatprep.subr.mxu0 0.0
    %3228 = vmatpush1.msra.mxu0 0.0
    %3229 = vmatprep.subr.mxu0 0.0
    %3230 = vmatpush1.msra.mxu0 0.0
    %3231 = vmatprep.subr.mxu0 0.0
    %3232 = vmatpush1.msra.mxu0 0.0
    %3233 = vmatprep.subr.mxu0 0.0
    %3234 = vmatpush1.msra.mxu0 0.0
    %3235 = vmatprep.subr.mxu0 0.0
    %3236 = vmatpush1.msra.mxu0 0.0
    %3237 = vmatprep.subr.mxu0 0.0
    %3238 = vmatpush1.msra.mxu0 0.0
    %3239 = vmatprep.subr.mxu0 0.0
    %3240 = vmatpush1.msra.mxu0 0.0
    %3241 = vmatprep.subr.mxu0 0.0
    %3242 = vmatpush1.msra.mxu0 0.0
    %3243 = vmatprep.subr.mxu0 0.0
    %3244 = vmatpush1.msra.mxu0 0.0
    %3245 = vmatprep.subr.mxu0 0.0
    %3246 = vmatpush1.msra.mxu0 0.0
    %3247 = vmatprep.subr.mxu0 0.0
    %3248 = vmatpush1.msra.mxu0 0.0
    %3249 = vmatprep.subr.mxu0 0.0
    %3250 = vmatpush1.msra.mxu0 0.0
    %3251 = vmatprep.subr.mxu0 0.0
    %3252 = vmatpush1.msra.mxu0 0.0
    %3253 = vmatprep.subr.mxu0 0.0
    %3254 = vmatpush1.msra.mxu0 0.0
    %3255 = vmatprep.subr.mxu0 0.0
    %3256 = vmatpush1.msra.mxu0 0.0
    %3257 = vmatprep.subr.mxu0 0.0
    %3258 = vmatpush1.msra.mxu0 0.0
    %3259 = vmatprep.subr.mxu0 0.0
    %3260 = vmatpush1.msra.mxu0 0.0
    %3261 = vmatprep.subr.mxu0 0.0
    %3262 = vmatpush1.msra.mxu0 0.0
    %3263 = vmatprep.subr.mxu0 0.0
    %3264 = vmatpush1.msra.mxu0 0.0
    %3265 = vmatprep.subr.mxu0 0.0
    %3266 = vmatpush1.msra.mxu0 0.0
    %3267 = vmatprep.subr.mxu0 0.0
    %3268 = vmatpush1.msra.mxu0 0.0
    %3269 = vmatprep.subr.mxu0 0.0
    %3270 = vmatpush1.msra.mxu0 0.0
    %3271 = vmatprep.subr.mxu0 0.0
    %3272 = vmatpush1.msra.mxu0 0.0
    %3273 = vmatprep.mubr.f32.mxu0 0.0
    %3274 = vmatmul.mubr.f32.gmra.mrb[0].mxu0 %v2368
    %v3275 = vpop.f32.mrb[0].mxu0
    %v3276 = vadd.f32 0.0, %v3275
    %v3277 = vpop.f32.mrb[0].mxu0
    %3278 = vdwg.mxu0
    %s3279 = scalar_lea.vmem [#allocation8], 80
    %3280 = vst.msk [vmem:[%s3279] sm:$0xff] %vm137, %v3276
    %v3281 = vld [vmem:[%s1306] sm:$0xff]
    %v3282 = vld [vmem:[%s1306 + $0x8] sm:$0xff]
    %v3283 = vld [vmem:[%s1306 + $0x10] sm:$0xff]
    %v3284 = vld [vmem:[%s1306 + $0x18] sm:$0xff]
    %v3285 = vld [vmem:[#allocation4] sm:$0xff]
    %v3286 = vld [vmem:[#allocation4 + $0x8] sm:$0xff]
    %v3287 = vld [vmem:[#allocation4 + $0x10] sm:$0xff]
    %v3288 = vld [vmem:[#allocation4 + $0x18] sm:$0xff]
    %v3289 = vmul.f32 %v3281, %v3285
    %v3290 = vmul.f32 %v3282, %v3286
    %v3291 = vmul.f32 %v3283, %v3287
    %v3292 = vmul.f32 %v3284, %v3288
    %3293 = vmatprep.subr.mxu0 0.0
    %3294 = vmatpush1.msra.mxu0 %v3289
    %3295 = vmatprep.subr.mxu0 0.0
    %3296 = vmatpush1.msra.mxu0 %v3290
    %3297 = vmatprep.subr.mxu0 0.0
    %3298 = vmatpush1.msra.mxu0 %v3291
    %3299 = vmatprep.subr.mxu0 0.0
    %3300 = vmatpush1.msra.mxu0 %v3292
    %3301 = vmatprep.subr.mxu0 0.0
    %3302 = vmatpush1.msra.mxu0 0.0
    %3303 = vmatprep.subr.mxu0 0.0
    %3304 = vmatpush1.msra.mxu0 0.0
    %3305 = vmatprep.subr.mxu0 0.0
    %3306 = vmatpush1.msra.mxu0 0.0
    %3307 = vmatprep.subr.mxu0 0.0
    %3308 = vmatpush1.msra.mxu0 0.0
    %3309 = vmatprep.subr.mxu0 0.0
    %3310 = vmatpush1.msra.mxu0 0.0
    %3311 = vmatprep.subr.mxu0 0.0
    %3312 = vmatpush1.msra.mxu0 0.0
    %3313 = vmatprep.subr.mxu0 0.0
    %3314 = vmatpush1.msra.mxu0 0.0
    %3315 = vmatprep.subr.mxu0 0.0
    %3316 = vmatpush1.msra.mxu0 0.0
    %3317 = vmatprep.subr.mxu0 0.0
    %3318 = vmatpush1.msra.mxu0 0.0
    %3319 = vmatprep.subr.mxu0 0.0
    %3320 = vmatpush1.msra.mxu0 0.0
    %3321 = vmatprep.subr.mxu0 0.0
    %3322 = vmatpush1.msra.mxu0 0.0
    %3323 = vmatprep.subr.mxu0 0.0
    %3324 = vmatpush1.msra.mxu0 0.0
    %3325 = vmatprep.subr.mxu0 0.0
    %3326 = vmatpush1.msra.mxu0 0.0
    %3327 = vmatprep.subr.mxu0 0.0
    %3328 = vmatpush1.msra.mxu0 0.0
    %3329 = vmatprep.subr.mxu0 0.0
    %3330 = vmatpush1.msra.mxu0 0.0
    %3331 = vmatprep.subr.mxu0 0.0
    %3332 = vmatpush1.msra.mxu0 0.0
    %3333 = vmatprep.subr.mxu0 0.0
    %3334 = vmatpush1.msra.mxu0 0.0
    %3335 = vmatprep.subr.mxu0 0.0
    %3336 = vmatpush1.msra.mxu0 0.0
    %3337 = vmatprep.subr.mxu0 0.0
    %3338 = vmatpush1.msra.mxu0 0.0
    %3339 = vmatprep.subr.mxu0 0.0
    %3340 = vmatpush1.msra.mxu0 0.0
    %3341 = vmatprep.subr.mxu0 0.0
    %3342 = vmatpush1.msra.mxu0 0.0
    %3343 = vmatprep.subr.mxu0 0.0
    %3344 = vmatpush1.msra.mxu0 0.0
    %3345 = vmatprep.subr.mxu0 0.0
    %3346 = vmatpush1.msra.mxu0 0.0
    %3347 = vmatprep.subr.mxu0 0.0
    %3348 = vmatpush1.msra.mxu0 0.0
    %3349 = vmatprep.subr.mxu0 0.0
    %3350 = vmatpush1.msra.mxu0 0.0
    %3351 = vmatprep.subr.mxu0 0.0
    %3352 = vmatpush1.msra.mxu0 0.0
    %3353 = vmatprep.subr.mxu0 0.0
    %3354 = vmatpush1.msra.mxu0 0.0
    %3355 = vmatprep.subr.mxu0 0.0
    %3356 = vmatpush1.msra.mxu0 0.0
    %3357 = vmatprep.mubr.f32.mxu0 0.0
    %3358 = vmatmul.mubr.f32.gmra.mrb[0].mxu0 %v2368
    %v3359 = vpop.f32.mrb[0].mxu0
    %v3360 = vadd.f32 0.0, %v3359
    %v3361 = vpop.f32.mrb[0].mxu0
    %3362 = vdwg.mxu0
    %s3363 = scalar_lea.vmem [#allocation8], 88
    %3364 = vst.msk [vmem:[%s3363] sm:$0xff] %vm137, %v3360
    %v3365 = vld [vmem:[%s1413] sm:$0xff]
    %v3366 = vld [vmem:[%s1413 + $0x8] sm:$0xff]
    %v3367 = vld [vmem:[%s1413 + $0x10] sm:$0xff]
    %v3368 = vld [vmem:[%s1413 + $0x18] sm:$0xff]
    %v3369 = vld [vmem:[#allocation4] sm:$0xff]
    %v3370 = vld [vmem:[#allocation4 + $0x8] sm:$0xff]
    %v3371 = vld [vmem:[#allocation4 + $0x10] sm:$0xff]
    %v3372 = vld [vmem:[#allocation4 + $0x18] sm:$0xff]
    %v3373 = vmul.f32 %v3365, %v3369
    %v3374 = vmul.f32 %v3366, %v3370
    %v3375 = vmul.f32 %v3367, %v3371
    %v3376 = vmul.f32 %v3368, %v3372
    %3377 = vmatprep.subr.mxu0 0.0
    %3378 = vmatpush1.msra.mxu0 %v3373
    %3379 = vmatprep.subr.mxu0 0.0
    %3380 = vmatpush1.msra.mxu0 %v3374
    %3381 = vmatprep.subr.mxu0 0.0
    %3382 = vmatpush1.msra.mxu0 %v3375
    %3383 = vmatprep.subr.mxu0 0.0
    %3384 = vmatpush1.msra.mxu0 %v3376
    %3385 = vmatprep.subr.mxu0 0.0
    %3386 = vmatpush1.msra.mxu0 0.0
    %3387 = vmatprep.subr.mxu0 0.0
    %3388 = vmatpush1.msra.mxu0 0.0
    %3389 = vmatprep.subr.mxu0 0.0
    %3390 = vmatpush1.msra.mxu0 0.0
    %3391 = vmatprep.subr.mxu0 0.0
    %3392 = vmatpush1.msra.mxu0 0.0
    %3393 = vmatprep.subr.mxu0 0.0
    %3394 = vmatpush1.msra.mxu0 0.0
    %3395 = vmatprep.subr.mxu0 0.0
    %3396 = vmatpush1.msra.mxu0 0.0
    %3397 = vmatprep.subr.mxu0 0.0
    %3398 = vmatpush1.msra.mxu0 0.0
    %3399 = vmatprep.subr.mxu0 0.0
    %3400 = vmatpush1.msra.mxu0 0.0
    %3401 = vmatprep.subr.mxu0 0.0
    %3402 = vmatpush1.msra.mxu0 0.0
    %3403 = vmatprep.subr.mxu0 0.0
    %3404 = vmatpush1.msra.mxu0 0.0
    %3405 = vmatprep.subr.mxu0 0.0
    %3406 = vmatpush1.msra.mxu0 0.0
    %3407 = vmatprep.subr.mxu0 0.0
    %3408 = vmatpush1.msra.mxu0 0.0
    %3409 = vmatprep.subr.mxu0 0.0
    %3410 = vmatpush1.msra.mxu0 0.0
    %3411 = vmatprep.subr.mxu0 0.0
    %3412 = vmatpush1.msra.mxu0 0.0
    %3413 = vmatprep.subr.mxu0 0.0
    %3414 = vmatpush1.msra.mxu0 0.0
    %3415 = vmatprep.subr.mxu0 0.0
    %3416 = vmatpush1.msra.mxu0 0.0
    %3417 = vmatprep.subr.mxu0 0.0
    %3418 = vmatpush1.msra.mxu0 0.0
    %3419 = vmatprep.subr.mxu0 0.0
    %3420 = vmatpush1.msra.mxu0 0.0
    %3421 = vmatprep.subr.mxu0 0.0
    %3422 = vmatpush1.msra.mxu0 0.0
    %3423 = vmatprep.subr.mxu0 0.0
    %3424 = vmatpush1.msra.mxu0 0.0
    %3425 = vmatprep.subr.mxu0 0.0
    %3426 = vmatpush1.msra.mxu0 0.0
    %3427 = vmatprep.subr.mxu0 0.0
    %3428 = vmatpush1.msra.mxu0 0.0
    %3429 = vmatprep.subr.mxu0 0.0
    %3430 = vmatpush1.msra.mxu0 0.0
    %3431 = vmatprep.subr.mxu0 0.0
    %3432 = vmatpush1.msra.mxu0 0.0
    %3433 = vmatprep.subr.mxu0 0.0
    %3434 = vmatpush1.msra.mxu0 0.0
    %3435 = vmatprep.subr.mxu0 0.0
    %3436 = vmatpush1.msra.mxu0 0.0
    %3437 = vmatprep.subr.mxu0 0.0
    %3438 = vmatpush1.msra.mxu0 0.0
    %3439 = vmatprep.subr.mxu0 0.0
    %3440 = vmatpush1.msra.mxu0 0.0
    %3441 = vmatprep.mubr.f32.mxu0 0.0
    %3442 = vmatmul.mubr.f32.gmra.mrb[0].mxu0 %v2368
    %v3443 = vpop.f32.mrb[0].mxu0
    %v3444 = vadd.f32 0.0, %v3443
    %v3445 = vpop.f32.mrb[0].mxu0
    %3446 = vdwg.mxu0
    %s3447 = scalar_lea.vmem [#allocation8], 96
    %3448 = vst.msk [vmem:[%s3447] sm:$0xff] %vm137, %v3444
    %v3449 = vld [vmem:[%s1520] sm:$0xff]
    %v3450 = vld [vmem:[%s1520 + $0x8] sm:$0xff]
    %v3451 = vld [vmem:[%s1520 + $0x10] sm:$0xff]
    %v3452 = vld [vmem:[%s1520 + $0x18] sm:$0xff]
    %v3453 = vld [vmem:[#allocation4] sm:$0xff]
    %v3454 = vld [vmem:[#allocation4 + $0x8] sm:$0xff]
    %v3455 = vld [vmem:[#allocation4 + $0x10] sm:$0xff]
    %v3456 = vld [vmem:[#allocation4 + $0x18] sm:$0xff]
    %v3457 = vmul.f32 %v3449, %v3453
    %v3458 = vmul.f32 %v3450, %v3454
    %v3459 = vmul.f32 %v3451, %v3455
    %v3460 = vmul.f32 %v3452, %v3456
    %3461 = vmatprep.subr.mxu0 0.0
    %3462 = vmatpush1.msra.mxu0 %v3457
    %3463 = vmatprep.subr.mxu0 0.0
    %3464 = vmatpush1.msra.mxu0 %v3458
    %3465 = vmatprep.subr.mxu0 0.0
    %3466 = vmatpush1.msra.mxu0 %v3459
    %3467 = vmatprep.subr.mxu0 0.0
    %3468 = vmatpush1.msra.mxu0 %v3460
    %3469 = vmatprep.subr.mxu0 0.0
    %3470 = vmatpush1.msra.mxu0 0.0
    %3471 = vmatprep.subr.mxu0 0.0
    %3472 = vmatpush1.msra.mxu0 0.0
    %3473 = vmatprep.subr.mxu0 0.0
    %3474 = vmatpush1.msra.mxu0 0.0
    %3475 = vmatprep.subr.mxu0 0.0
    %3476 = vmatpush1.msra.mxu0 0.0
    %3477 = vmatprep.subr.mxu0 0.0
    %3478 = vmatpush1.msra.mxu0 0.0
    %3479 = vmatprep.subr.mxu0 0.0
    %3480 = vmatpush1.msra.mxu0 0.0
    %3481 = vmatprep.subr.mxu0 0.0
    %3482 = vmatpush1.msra.mxu0 0.0
    %3483 = vmatprep.subr.mxu0 0.0
    %3484 = vmatpush1.msra.mxu0 0.0
    %3485 = vmatprep.subr.mxu0 0.0
    %3486 = vmatpush1.msra.mxu0 0.0
    %3487 = vmatprep.subr.mxu0 0.0
    %3488 = vmatpush1.msra.mxu0 0.0
    %3489 = vmatprep.subr.mxu0 0.0
    %3490 = vmatpush1.msra.mxu0 0.0
    %3491 = vmatprep.subr.mxu0 0.0
    %3492 = vmatpush1.msra.mxu0 0.0
    %3493 = vmatprep.subr.mxu0 0.0
    %3494 = vmatpush1.msra.mxu0 0.0
    %3495 = vmatprep.subr.mxu0 0.0
    %3496 = vmatpush1.msra.mxu0 0.0
    %3497 = vmatprep.subr.mxu0 0.0
    %3498 = vmatpush1.msra.mxu0 0.0
    %3499 = vmatprep.subr.mxu0 0.0
    %3500 = vmatpush1.msra.mxu0 0.0
    %3501 = vmatprep.subr.mxu0 0.0
    %3502 = vmatpush1.msra.mxu0 0.0
    %3503 = vmatprep.subr.mxu0 0.0
    %3504 = vmatpush1.msra.mxu0 0.0
    %3505 = vmatprep.subr.mxu0 0.0
    %3506 = vmatpush1.msra.mxu0 0.0
    %3507 = vmatprep.subr.mxu0 0.0
    %3508 = vmatpush1.msra.mxu0 0.0
    %3509 = vmatprep.subr.mxu0 0.0
    %3510 = vmatpush1.msra.mxu0 0.0
    %3511 = vmatprep.subr.mxu0 0.0
    %3512 = vmatpush1.msra.mxu0 0.0
    %3513 = vmatprep.subr.mxu0 0.0
    %3514 = vmatpush1.msra.mxu0 0.0
    %3515 = vmatprep.subr.mxu0 0.0
    %3516 = vmatpush1.msra.mxu0 0.0
    %3517 = vmatprep.subr.mxu0 0.0
    %3518 = vmatpush1.msra.mxu0 0.0
    %3519 = vmatprep.subr.mxu0 0.0
    %3520 = vmatpush1.msra.mxu0 0.0
    %3521 = vmatprep.subr.mxu0 0.0
    %3522 = vmatpush1.msra.mxu0 0.0
    %3523 = vmatprep.subr.mxu0 0.0
    %3524 = vmatpush1.msra.mxu0 0.0
    %3525 = vmatprep.mubr.f32.mxu0 0.0
    %3526 = vmatmul.mubr.f32.gmra.mrb[0].mxu0 %v2368
    %v3527 = vpop.f32.mrb[0].mxu0
    %v3528 = vadd.f32 0.0, %v3527
    %v3529 = vpop.f32.mrb[0].mxu0
    %3530 = vdwg.mxu0
    %s3531 = scalar_lea.vmem [#allocation8], 104
    %3532 = vst.msk [vmem:[%s3531] sm:$0xff] %vm137, %v3528
    %v3533 = vld [vmem:[%s1627] sm:$0xff]
    %v3534 = vld [vmem:[%s1627 + $0x8] sm:$0xff]
    %v3535 = vld [vmem:[%s1627 + $0x10] sm:$0xff]
    %v3536 = vld [vmem:[%s1627 + $0x18] sm:$0xff]
    %v3537 = vld [vmem:[#allocation4] sm:$0xff]
    %v3538 = vld [vmem:[#allocation4 + $0x8] sm:$0xff]
    %v3539 = vld [vmem:[#allocation4 + $0x10] sm:$0xff]
    %v3540 = vld [vmem:[#allocation4 + $0x18] sm:$0xff]
    %v3541 = vmul.f32 %v3533, %v3537
    %v3542 = vmul.f32 %v3534, %v3538
    %v3543 = vmul.f32 %v3535, %v3539
    %v3544 = vmul.f32 %v3536, %v3540
    %3545 = vmatprep.subr.mxu0 0.0
    %3546 = vmatpush1.msra.mxu0 %v3541
    %3547 = vmatprep.subr.mxu0 0.0
    %3548 = vmatpush1.msra.mxu0 %v3542
    %3549 = vmatprep.subr.mxu0 0.0
    %3550 = vmatpush1.msra.mxu0 %v3543
    %3551 = vmatprep.subr.mxu0 0.0
    %3552 = vmatpush1.msra.mxu0 %v3544
    %3553 = vmatprep.subr.mxu0 0.0
    %3554 = vmatpush1.msra.mxu0 0.0
    %3555 = vmatprep.subr.mxu0 0.0
    %3556 = vmatpush1.msra.mxu0 0.0
    %3557 = vmatprep.subr.mxu0 0.0
    %3558 = vmatpush1.msra.mxu0 0.0
    %3559 = vmatprep.subr.mxu0 0.0
    %3560 = vmatpush1.msra.mxu0 0.0
    %3561 = vmatprep.subr.mxu0 0.0
    %3562 = vmatpush1.msra.mxu0 0.0
    %3563 = vmatprep.subr.mxu0 0.0
    %3564 = vmatpush1.msra.mxu0 0.0
    %3565 = vmatprep.subr.mxu0 0.0
    %3566 = vmatpush1.msra.mxu0 0.0
    %3567 = vmatprep.subr.mxu0 0.0
    %3568 = vmatpush1.msra.mxu0 0.0
    %3569 = vmatprep.subr.mxu0 0.0
    %3570 = vmatpush1.msra.mxu0 0.0
    %3571 = vmatprep.subr.mxu0 0.0
    %3572 = vmatpush1.msra.mxu0 0.0
    %3573 = vmatprep.subr.mxu0 0.0
    %3574 = vmatpush1.msra.mxu0 0.0
    %3575 = vmatprep.subr.mxu0 0.0
    %3576 = vmatpush1.msra.mxu0 0.0
    %3577 = vmatprep.subr.mxu0 0.0
    %3578 = vmatpush1.msra.mxu0 0.0
    %3579 = vmatprep.subr.mxu0 0.0
    %3580 = vmatpush1.msra.mxu0 0.0
    %3581 = vmatprep.subr.mxu0 0.0
    %3582 = vmatpush1.msra.mxu0 0.0
    %3583 = vmatprep.subr.mxu0 0.0
    %3584 = vmatpush1.msra.mxu0 0.0
    %3585 = vmatprep.subr.mxu0 0.0
    %3586 = vmatpush1.msra.mxu0 0.0
    %3587 = vmatprep.subr.mxu0 0.0
    %3588 = vmatpush1.msra.mxu0 0.0
    %3589 = vmatprep.subr.mxu0 0.0
    %3590 = vmatpush1.msra.mxu0 0.0
    %3591 = vmatprep.subr.mxu0 0.0
    %3592 = vmatpush1.msra.mxu0 0.0
    %3593 = vmatprep.subr.mxu0 0.0
    %3594 = vmatpush1.msra.mxu0 0.0
    %3595 = vmatprep.subr.mxu0 0.0
    %3596 = vmatpush1.msra.mxu0 0.0
    %3597 = vmatprep.subr.mxu0 0.0
    %3598 = vmatpush1.msra.mxu0 0.0
    %3599 = vmatprep.subr.mxu0 0.0
    %3600 = vmatpush1.msra.mxu0 0.0
    %3601 = vmatprep.subr.mxu0 0.0
    %3602 = vmatpush1.msra.mxu0 0.0
    %3603 = vmatprep.subr.mxu0 0.0
    %3604 = vmatpush1.msra.mxu0 0.0
    %3605 = vmatprep.subr.mxu0 0.0
    %3606 = vmatpush1.msra.mxu0 0.0
    %3607 = vmatprep.subr.mxu0 0.0
    %3608 = vmatpush1.msra.mxu0 0.0
    %3609 = vmatprep.mubr.f32.mxu0 0.0
    %3610 = vmatmul.mubr.f32.gmra.mrb[0].mxu0 %v2368
    %v3611 = vpop.f32.mrb[0].mxu0
    %v3612 = vadd.f32 0.0, %v3611
    %v3613 = vpop.f32.mrb[0].mxu0
    %3614 = vdwg.mxu0
    %s3615 = scalar_lea.vmem [#allocation8], 112
    %3616 = vst.msk [vmem:[%s3615] sm:$0xff] %vm137, %v3612
    %v3617 = vld [vmem:[%s1734] sm:$0xff]
    %v3618 = vld [vmem:[%s1734 + $0x8] sm:$0xff]
    %v3619 = vld [vmem:[%s1734 + $0x10] sm:$0xff]
    %v3620 = vld [vmem:[%s1734 + $0x18] sm:$0xff]
    %v3621 = vld [vmem:[#allocation4] sm:$0xff]
    %v3622 = vld [vmem:[#allocation4 + $0x8] sm:$0xff]
    %v3623 = vld [vmem:[#allocation4 + $0x10] sm:$0xff]
    %v3624 = vld [vmem:[#allocation4 + $0x18] sm:$0xff]
    %v3625 = vmul.f32 %v3617, %v3621
    %v3626 = vmul.f32 %v3618, %v3622
    %v3627 = vmul.f32 %v3619, %v3623
    %v3628 = vmul.f32 %v3620, %v3624
    %3629 = vmatprep.subr.mxu0 0.0
    %3630 = vmatpush1.msra.mxu0 %v3625
    %3631 = vmatprep.subr.mxu0 0.0
    %3632 = vmatpush1.msra.mxu0 %v3626
    %3633 = vmatprep.subr.mxu0 0.0
    %3634 = vmatpush1.msra.mxu0 %v3627
    %3635 = vmatprep.subr.mxu0 0.0
    %3636 = vmatpush1.msra.mxu0 %v3628
    %3637 = vmatprep.subr.mxu0 0.0
    %3638 = vmatpush1.msra.mxu0 0.0
    %3639 = vmatprep.subr.mxu0 0.0
    %3640 = vmatpush1.msra.mxu0 0.0
    %3641 = vmatprep.subr.mxu0 0.0
    %3642 = vmatpush1.msra.mxu0 0.0
    %3643 = vmatprep.subr.mxu0 0.0
    %3644 = vmatpush1.msra.mxu0 0.0
    %3645 = vmatprep.subr.mxu0 0.0
    %3646 = vmatpush1.msra.mxu0 0.0
    %3647 = vmatprep.subr.mxu0 0.0
    %3648 = vmatpush1.msra.mxu0 0.0
    %3649 = vmatprep.subr.mxu0 0.0
    %3650 = vmatpush1.msra.mxu0 0.0
    %3651 = vmatprep.subr.mxu0 0.0
    %3652 = vmatpush1.msra.mxu0 0.0
    %3653 = vmatprep.subr.mxu0 0.0
    %3654 = vmatpush1.msra.mxu0 0.0
    %3655 = vmatprep.subr.mxu0 0.0
    %3656 = vmatpush1.msra.mxu0 0.0
    %3657 = vmatprep.subr.mxu0 0.0
    %3658 = vmatpush1.msra.mxu0 0.0
    %3659 = vmatprep.subr.mxu0 0.0
    %3660 = vmatpush1.msra.mxu0 0.0
    %3661 = vmatprep.subr.mxu0 0.0
    %3662 = vmatpush1.msra.mxu0 0.0
    %3663 = vmatprep.subr.mxu0 0.0
    %3664 = vmatpush1.msra.mxu0 0.0
    %3665 = vmatprep.subr.mxu0 0.0
    %3666 = vmatpush1.msra.mxu0 0.0
    %3667 = vmatprep.subr.mxu0 0.0
    %3668 = vmatpush1.msra.mxu0 0.0
    %3669 = vmatprep.subr.mxu0 0.0
    %3670 = vmatpush1.msra.mxu0 0.0
    %3671 = vmatprep.subr.mxu0 0.0
    %3672 = vmatpush1.msra.mxu0 0.0
    %3673 = vmatprep.subr.mxu0 0.0
    %3674 = vmatpush1.msra.mxu0 0.0
    %3675 = vmatprep.subr.mxu0 0.0
    %3676 = vmatpush1.msra.mxu0 0.0
    %3677 = vmatprep.subr.mxu0 0.0
    %3678 = vmatpush1.msra.mxu0 0.0
    %3679 = vmatprep.subr.mxu0 0.0
    %3680 = vmatpush1.msra.mxu0 0.0
    %3681 = vmatprep.subr.mxu0 0.0
    %3682 = vmatpush1.msra.mxu0 0.0
    %3683 = vmatprep.subr.mxu0 0.0
    %3684 = vmatpush1.msra.mxu0 0.0
    %3685 = vmatprep.subr.mxu0 0.0
    %3686 = vmatpush1.msra.mxu0 0.0
    %3687 = vmatprep.subr.mxu0 0.0
    %3688 = vmatpush1.msra.mxu0 0.0
    %3689 = vmatprep.subr.mxu0 0.0
    %3690 = vmatpush1.msra.mxu0 0.0
    %3691 = vmatprep.subr.mxu0 0.0
    %3692 = vmatpush1.msra.mxu0 0.0
    %3693 = vmatprep.mubr.f32.mxu0 0.0
    %3694 = vmatmul.mubr.f32.gmra.mrb[0].mxu0 %v2368
    %v3695 = vpop.f32.mrb[0].mxu0
    %v3696 = vadd.f32 0.0, %v3695
    %v3697 = vpop.f32.mrb[0].mxu0
    %3698 = vdwg.mxu0
    %s3699 = scalar_lea.vmem [#allocation8], 120
    %3700 = vst.msk [vmem:[%s3699] sm:$0xff] %vm137, %v3696
    // Predicated region
    $region18: #{tpu_custom_call.1} parent=1 // pred_check
      _
    $region19: #{tpu_custom_call.1} parent=1 // pred_check_branch
      %3702 = sbr.rel (0) target = $region21
    $region20: #{tpu_custom_call.1} parent=1 // pred_region
      %s3704 = ssub.s32 2048, 2048
      %3705 = vsyncadd [#allocation7], %s3704
      %s3706 = sshll.u32 [#allocation8], 4
      %s3707 = int_to_ptr.vmem [resolvable:$true] %s3706
      %3712 = dma.vmem_to_hbm [thread:$0]  %s3707, 2048, %s3, [#allocation7], 128, 128, 8
    $region21: #{tpu_custom_call.1} parent=1 // pred_fallthru
      _
    // Predicated region
    $region22: #{tpu_custom_call.1} parent=1 // pred_check
      _
    $region23: #{tpu_custom_call.1} parent=1 // pred_check_branch
      %3714 = sbr.rel (0) target = $region25
    $region24: #{tpu_custom_call.1} parent=1 // pred_region
      %3715 = dma.done [#allocation7], 2048
    $region25: #{tpu_custom_call.1} parent=1 // pred_fallthru
      _
    %3716 = vsyncpa [#allocation6], 1
    %3717 = vsyncpa [#allocation7], 1

</llo_original>
